<compile_context>
chip_gen: v7x
topology: tpu7x:2x2x1
jax: 0.10.0
libtpu: 0.0.40
codegen_flags: <defaults>
</compile_context>

<pallas_src>
import jax
import jax.numpy as jnp
from jax.experimental import pallas as pl
from jax.experimental.pallas import tpu as pltpu

# --- model hyperparameters (small, TPU-tile-friendly version of the module) ---
BATCH = 2
SEQ = 128          # seq_len
EMBED = 128        # embed_size
NUM_HEADS = 4
HEAD_DIM = EMBED // NUM_HEADS
HIDDEN = 256       # hidden_dim of FeedForward
LN_EPS = 1e-5

MASK_VALUE = -1e30  # finite large-negative additive mask (avoids inf-inf NaNs)


def _layernorm(x, gamma, beta, eps=LN_EPS):
    # PyTorch nn.LayerNorm: biased variance over last dim, eps inside rsqrt.
    mu = jnp.mean(x, axis=-1, keepdims=True)
    var = jnp.mean((x - mu) ** 2, axis=-1, keepdims=True)
    return (x - mu) * jax.lax.rsqrt(var + eps) * gamma + beta


def transformer_block_kernel(
    x_ref,
    wq_ref, bq_ref, wk_ref, bk_ref, wv_ref, bv_ref, wo_ref, bo_ref,
    g1_ref, be1_ref,
    w1_ref, b1_ref, w2_ref, b2_ref,
    g2_ref, be2_ref,
    o_ref,
):
    # One grid step handles one batch element; everything lives in VMEM.
    x = x_ref[0]                         # (S, E) f32
    xb = x.astype(jnp.bfloat16)          # hoisted matmul operand

    # Finite additive causal mask, hoisted out of the head loop.
    row = jax.lax.broadcasted_iota(jnp.int32, (SEQ, SEQ), 0)
    col = jax.lax.broadcasted_iota(jnp.int32, (SEQ, SEQ), 1)
    mask_bias = jnp.where(col > row, jnp.float32(MASK_VALUE), jnp.float32(0.0))

    # --- masked multi-head self attention (head-major weights, no relayout) ---
    # 1/sqrt(head_dim) is already folded into wq/bq on the host.
    attn = jnp.zeros((SEQ, EMBED), jnp.float32)
    for h in range(NUM_HEADS):           # static unroll; weights indexed on major axis
        qh = jnp.dot(xb, wq_ref[h], preferred_element_type=jnp.float32) + bq_ref[h]
        kh = jnp.dot(xb, wk_ref[h], preferred_element_type=jnp.float32) + bk_ref[h]
        vh = jnp.dot(xb, wv_ref[h], preferred_element_type=jnp.float32) + bv_ref[h]

        # scores = qh @ kh^T, contracting the last dim of both (no materialized .T)
        s = jax.lax.dot_general(
            qh.astype(jnp.bfloat16), kh.astype(jnp.bfloat16),
            dimension_numbers=(((1,), (1,)), ((), ())),
            preferred_element_type=jnp.float32,
        )
        s = s + mask_bias                                 # (S, S) f32
        m = jnp.max(s, axis=-1, keepdims=True)
        p = jnp.exp(s - m)
        p = p * pl.reciprocal(jnp.sum(p, axis=-1, keepdims=True), approx=True)

        ctx = jnp.dot(p.astype(jnp.bfloat16), vh.astype(jnp.bfloat16),
                      preferred_element_type=jnp.float32)  # (S, D)
        # Per-head slab of the output projection, accumulated in f32
        # (replaces a lane-dim concat + single big matmul).
        attn = attn + jnp.dot(ctx.astype(jnp.bfloat16), wo_ref[h],
                              preferred_element_type=jnp.float32)  # (S, E)

    attn = attn + bo_ref[...]

    # --- residual + LayerNorm 1 (dropout = identity at inference) ---
    x1 = _layernorm(x + attn, g1_ref[...], be1_ref[...])

    # --- feed forward: relu(x1 @ W1 + b1) @ W2 + b2 (bf16 operands, f32 acc) ---
    h1 = jnp.dot(x1.astype(jnp.bfloat16), w1_ref[...],
                 preferred_element_type=jnp.float32) + b1_ref[...]
    h1 = jnp.maximum(h1, 0.0)
    ff = jnp.dot(h1.astype(jnp.bfloat16), w2_ref[...],
                 preferred_element_type=jnp.float32) + b2_ref[...]

    # --- residual + LayerNorm 2 (dropout = identity at inference) ---
    x2 = _layernorm(x1 + ff, g2_ref[...], be2_ref[...])

    o_ref[0] = x2.astype(o_ref.dtype)


def transformer_block(x, kparams):
    B, S, E = x.shape
    assert (S, E) == (SEQ, EMBED)

    weight_args = (
        kparams["wq"], kparams["bq"], kparams["wk"], kparams["bk"],
        kparams["wv"], kparams["bv"], kparams["wo"], kparams["bo"],
        kparams["g1"], kparams["be1"],
        kparams["w1"], kparams["b1"], kparams["w2"], kparams["b2"],
        kparams["g2"], kparams["be2"],
    )

    def const_spec(arr):
        # Whole weight resident for every grid step (constant block index =>
        # fetched once, no re-DMA across grid steps).
        zeros = (0,) * arr.ndim
        return pl.BlockSpec(arr.shape, lambda b, _z=zeros: _z)

    in_specs = [pl.BlockSpec((1, S, E), lambda b: (b, 0, 0))] + [
        const_spec(w) for w in weight_args
    ]
    out_spec = pl.BlockSpec((1, S, E), lambda b: (b, 0, 0))

    # Advisory cost estimate (~84 MFLOP total, ~1 MB touched).
    flops = 2 * B * (3 * S * E * E      # QKV projections
                     + 2 * S * S * E    # scores + context (all heads)
                     + S * E * E        # output projection
                     + 2 * S * E * HIDDEN)  # FFN
    bytes_accessed = (x.size * x.dtype.itemsize
                      + sum(int(w.size) * w.dtype.itemsize for w in weight_args)
                      + B * S * E * 4)
    transcendentals = B * NUM_HEADS * S * S  # softmax exp

    return pl.pallas_call(
        transformer_block_kernel,
        out_shape=jax.ShapeDtypeStruct((B, S, E), jnp.float32),
        grid_spec=pltpu.PrefetchScalarGridSpec(
            num_scalar_prefetch=0,
            grid=(B,),
            in_specs=in_specs,
            out_specs=out_spec,
        ),
        compiler_params=pltpu.CompilerParams(
            dimension_semantics=("parallel",),
        ),
        cost_estimate=pl.CostEstimate(
            flops=int(flops),
            transcendentals=int(transcendentals),
            bytes_accessed=int(bytes_accessed),
        ),
    )(x, *weight_args)


def init_params(key):
    """Canonical f32 parameters, Linear weights stored as (in, out)."""
    ks = jax.random.split(key, 16)
    std = 0.02
    return {
        "wq": jax.random.normal(ks[0], (EMBED, EMBED), jnp.float32) * std,
        "bq": jax.random.normal(ks[1], (1, EMBED), jnp.float32) * std,
        "wk": jax.random.normal(ks[2], (EMBED, EMBED), jnp.float32) * std,
        "bk": jax.random.normal(ks[3], (1, EMBED), jnp.float32) * std,
        "wv": jax.random.normal(ks[4], (EMBED, EMBED), jnp.float32) * std,
        "bv": jax.random.normal(ks[5], (1, EMBED), jnp.float32) * std,
        "wo": jax.random.normal(ks[6], (EMBED, EMBED), jnp.float32) * std,
        "bo": jax.random.normal(ks[7], (1, EMBED), jnp.float32) * std,
        "g1": 1.0 + jax.random.normal(ks[8], (1, EMBED), jnp.float32) * 0.1,
        "be1": jax.random.normal(ks[9], (1, EMBED), jnp.float32) * 0.1,
        "g2": 1.0 + jax.random.normal(ks[10], (1, EMBED), jnp.float32) * 0.1,
        "be2": jax.random.normal(ks[11], (1, EMBED), jnp.float32) * 0.1,
        "w1": jax.random.normal(ks[12], (EMBED, HIDDEN), jnp.float32) * std,
        "b1": jax.random.normal(ks[13], (1, HIDDEN), jnp.float32) * std,
        "w2": jax.random.normal(ks[14], (HIDDEN, EMBED), jnp.float32) * std,
        "b2": jax.random.normal(ks[15], (1, EMBED), jnp.float32) * std,
    }


def prep_kernel_params(p):
    """Repack flat f32 params into the kernel layout: head-major attention
    weights, bf16 matmul weights, f32 biases / LayerNorm params.  The
    1/sqrt(head_dim) score scale is folded into the query projection."""
    scale = 1.0 / (HEAD_DIM ** 0.5)

    def heads_out(w):   # (E, E_out) -> (H, E, D): split output features per head
        return jnp.transpose(w.reshape(EMBED, NUM_HEADS, HEAD_DIM), (1, 0, 2))

    def heads_bias(b):  # (1, E) -> (H, 1, D)
        return jnp.transpose(b.reshape(1, NUM_HEADS, HEAD_DIM), (1, 0, 2))

    return {
        "wq": heads_out(p["wq"] * scale).astype(jnp.bfloat16),
        "bq": heads_bias(p["bq"] * scale),
        "wk": heads_out(p["wk"]).astype(jnp.bfloat16),
        "bk": heads_bias(p["bk"]),
        "wv": heads_out(p["wv"]).astype(jnp.bfloat16),
        "bv": heads_bias(p["bv"]),
        "wo": p["wo"].reshape(NUM_HEADS, HEAD_DIM, EMBED).astype(jnp.bfloat16),
        "bo": p["bo"],
        "g1": p["g1"], "be1": p["be1"],
        "w1": p["w1"].astype(jnp.bfloat16), "b1": p["b1"],
        "w2": p["w2"].astype(jnp.bfloat16), "b2": p["b2"],
        "g2": p["g2"], "be2": p["be2"],
    }


def reference_block(x, p):
    """Pure-JAX f32 reference mirroring the PyTorch forward (eval-mode dropout)."""
    B, S, E = x.shape
    q = x @ p["wq"] + p["bq"]
    k = x @ p["wk"] + p["bk"]
    v = x @ p["wv"] + p["bv"]

    def split(t):
        return t.reshape(B, S, NUM_HEADS, HEAD_DIM).transpose(0, 2, 1, 3)

    qh, kh, vh = split(q), split(k), split(v)
    scores = jnp.einsum("bhqd,bhkd->bhqk", qh, kh) / (HEAD_DIM ** 0.5)
    mask = jnp.triu(jnp.ones((S, S), bool), k=1)
    scores = jnp.where(mask[None, None], -jnp.inf, scores)
    w = jax.nn.softmax(scores, axis=-1)
    out = jnp.einsum("bhqk,bhkd->bhqd", w, vh)
    out = out.transpose(0, 2, 1, 3).reshape(B, S, E)
    attn = out @ p["wo"] + p["bo"]

    def ln(t, g, b):
        mu = jnp.mean(t, axis=-1, keepdims=True)
        var = jnp.mean((t - mu) ** 2, axis=-1, keepdims=True)
        return (t - mu) / jnp.sqrt(var + LN_EPS) * g + b

    x1 = ln(x + attn, p["g1"], p["be1"])
    ff = jnp.maximum(x1 @ p["w1"] + p["b1"], 0.0) @ p["w2"] + p["b2"]
    return ln(x1 + ff, p["g2"], p["be2"])


if __name__ == "__main__":
    key = jax.random.PRNGKey(0)
    kx, kp = jax.random.split(key)
    x = jax.random.normal(kx, (BATCH, SEQ, EMBED), jnp.float32)
    params = init_params(kp)
    kparams = prep_kernel_params(params)

    out = transformer_block(x, kparams)
    out = jax.block_until_ready(out)

    ref = reference_block(x, params)
    assert out.shape == (BATCH, SEQ, EMBED)
    # bf16 MXU operands + approx softmax reciprocal vs. a pure-f32 reference,
    # so the tolerance is loosened relative to an all-f32 kernel.
    max_err = float(jnp.max(jnp.abs(out - ref)))
    assert jnp.allclose(out, ref, atol=2e-2, rtol=2e-2), max_err
    print("KERNEL_OK")
</pallas_src>

<mosaic_0001>
module attributes {stable_mosaic.version = 11 : i64} {
  func.func @transformer_block_kernel(%arg0: i32, %arg1: memref<1x128x128xf32, #tpu.memory_space<vmem>>, %arg2: memref<4x128x32xbf16, #tpu.memory_space<vmem>>, %arg3: memref<4x1x32xf32, #tpu.memory_space<vmem>>, %arg4: memref<4x128x32xbf16, #tpu.memory_space<vmem>>, %arg5: memref<4x1x32xf32, #tpu.memory_space<vmem>>, %arg6: memref<4x128x32xbf16, #tpu.memory_space<vmem>>, %arg7: memref<4x1x32xf32, #tpu.memory_space<vmem>>, %arg8: memref<4x32x128xbf16, #tpu.memory_space<vmem>>, %arg9: memref<1x128xf32, #tpu.memory_space<vmem>>, %arg10: memref<1x128xf32, #tpu.memory_space<vmem>>, %arg11: memref<1x128xf32, #tpu.memory_space<vmem>>, %arg12: memref<128x256xbf16, #tpu.memory_space<vmem>>, %arg13: memref<1x256xf32, #tpu.memory_space<vmem>>, %arg14: memref<256x128xbf16, #tpu.memory_space<vmem>>, %arg15: memref<1x128xf32, #tpu.memory_space<vmem>>, %arg16: memref<1x128xf32, #tpu.memory_space<vmem>>, %arg17: memref<1x128xf32, #tpu.memory_space<vmem>>, %arg18: memref<1x128x128xf32, #tpu.memory_space<vmem>>) attributes {dimension_semantics = [#tpu.dimension_semantics<parallel>], iteration_bounds = array<i64: 2>, scalar_prefetch = 0 : i64, scratch_operands = 0 : i64, tpu.core_type = #tpu.core_type<tc>, window_params = [{transform_indices = @transform_0, window_bounds = array<i64: 1, 128, 128>}, {pipeline_mode = #tpu.pipeline_mode<synchronous>, transform_indices = @transform_1, window_bounds = array<i64: 4, 128, 32>}, {pipeline_mode = #tpu.pipeline_mode<synchronous>, transform_indices = @transform_2, window_bounds = array<i64: 4, 1, 32>}, {pipeline_mode = #tpu.pipeline_mode<synchronous>, transform_indices = @transform_3, window_bounds = array<i64: 4, 128, 32>}, {pipeline_mode = #tpu.pipeline_mode<synchronous>, transform_indices = @transform_4, window_bounds = array<i64: 4, 1, 32>}, {pipeline_mode = #tpu.pipeline_mode<synchronous>, transform_indices = @transform_5, window_bounds = array<i64: 4, 128, 32>}, {pipeline_mode = #tpu.pipeline_mode<synchronous>, transform_indices = @transform_6, window_bounds = array<i64: 4, 1, 32>}, {pipeline_mode = #tpu.pipeline_mode<synchronous>, transform_indices = @transform_7, window_bounds = array<i64: 4, 32, 128>}, {pipeline_mode = #tpu.pipeline_mode<synchronous>, transform_indices = @transform_8, window_bounds = array<i64: 1, 128>}, {pipeline_mode = #tpu.pipeline_mode<synchronous>, transform_indices = @transform_9, window_bounds = array<i64: 1, 128>}, {pipeline_mode = #tpu.pipeline_mode<synchronous>, transform_indices = @transform_10, window_bounds = array<i64: 1, 128>}, {pipeline_mode = #tpu.pipeline_mode<synchronous>, transform_indices = @transform_11, window_bounds = array<i64: 128, 256>}, {pipeline_mode = #tpu.pipeline_mode<synchronous>, transform_indices = @transform_12, window_bounds = array<i64: 1, 256>}, {pipeline_mode = #tpu.pipeline_mode<synchronous>, transform_indices = @transform_13, window_bounds = array<i64: 256, 128>}, {pipeline_mode = #tpu.pipeline_mode<synchronous>, transform_indices = @transform_14, window_bounds = array<i64: 1, 128>}, {pipeline_mode = #tpu.pipeline_mode<synchronous>, transform_indices = @transform_15, window_bounds = array<i64: 1, 128>}, {pipeline_mode = #tpu.pipeline_mode<synchronous>, transform_indices = @transform_16, window_bounds = array<i64: 1, 128>}, {transform_indices = @transform_17, window_bounds = array<i64: 1, 128, 128>}]} {
    %c0 = arith.constant 0 : index
    %c0_0 = arith.constant 0 : index
    %c0_1 = arith.constant 0 : index
    %0 = vector.load %arg1[%c0, %c0_0, %c0_1] : memref<1x128x128xf32, #tpu.memory_space<vmem>>, vector<1x128x128xf32>
    %1 = vector.shape_cast %0 : vector<1x128x128xf32> to vector<128x128xf32>
    %2 = arith.truncf %1 : vector<128x128xf32> to vector<128x128xbf16>
    %3 = tpu.iota {dimensions = array<i32: 0>} : vector<128x128xi32>
    %4 = tpu.iota {dimensions = array<i32: 1>} : vector<128x128xi32>
    %5 = arith.cmpi sgt, %4, %3 : vector<128x128xi32>
    %cst = arith.constant -1.000000e+30 : f32
    %cst_2 = arith.constant 0.000000e+00 : f32
    %6 = vector.broadcast %cst : f32 to vector<128x128xf32>
    %7 = vector.broadcast %cst_2 : f32 to vector<128x128xf32>
    %8 = arith.select %5, %6, %7 : vector<128x128xi1>, vector<128x128xf32>
    %cst_3 = arith.constant 0.000000e+00 : f32
    %9 = vector.broadcast %cst_3 : f32 to vector<128x128xf32>
    %c0_4 = arith.constant 0 : index
    %c0_5 = arith.constant 0 : index
    %c0_6 = arith.constant 0 : index
    %10 = vector.load %arg2[%c0_4, %c0_5, %c0_6] : memref<4x128x32xbf16, #tpu.memory_space<vmem>>, vector<1x128x32xbf16>
    %11 = vector.shape_cast %10 : vector<1x128x32xbf16> to vector<128x32xbf16>
    %cst_7 = arith.constant dense<0.000000e+00> : vector<128x32xf32>
    %12 = tpu.matmul %2, %11, %cst_7 {dimension_numbers = #tpu.dot_dimension_numbers<[1], [0], [0], [1], [0, 0, 1, 1], [], []>} : vector<128x128xbf16>, vector<128x32xbf16>, vector<128x32xf32> -> vector<128x32xf32>
    %c0_8 = arith.constant 0 : index
    %c0_9 = arith.constant 0 : index
    %c0_10 = arith.constant 0 : index
    %13 = vector.load %arg3[%c0_8, %c0_9, %c0_10] : memref<4x1x32xf32, #tpu.memory_space<vmem>>, vector<1x1x32xf32>
    %14 = vector.shape_cast %13 : vector<1x1x32xf32> to vector<1x32xf32>
    %15 = vector.broadcast %14 : vector<1x32xf32> to vector<128x32xf32>
    %16 = arith.addf %12, %15 : vector<128x32xf32>
    %c0_11 = arith.constant 0 : index
    %c0_12 = arith.constant 0 : index
    %c0_13 = arith.constant 0 : index
    %17 = vector.load %arg4[%c0_11, %c0_12, %c0_13] : memref<4x128x32xbf16, #tpu.memory_space<vmem>>, vector<1x128x32xbf16>
    %18 = vector.shape_cast %17 : vector<1x128x32xbf16> to vector<128x32xbf16>
    %cst_14 = arith.constant dense<0.000000e+00> : vector<128x32xf32>
    %19 = tpu.matmul %2, %18, %cst_14 {dimension_numbers = #tpu.dot_dimension_numbers<[1], [0], [0], [1], [0, 0, 1, 1], [], []>} : vector<128x128xbf16>, vector<128x32xbf16>, vector<128x32xf32> -> vector<128x32xf32>
    %c0_15 = arith.constant 0 : index
    %c0_16 = arith.constant 0 : index
    %c0_17 = arith.constant 0 : index
    %20 = vector.load %arg5[%c0_15, %c0_16, %c0_17] : memref<4x1x32xf32, #tpu.memory_space<vmem>>, vector<1x1x32xf32>
    %21 = vector.shape_cast %20 : vector<1x1x32xf32> to vector<1x32xf32>
    %22 = vector.broadcast %21 : vector<1x32xf32> to vector<128x32xf32>
    %23 = arith.addf %19, %22 : vector<128x32xf32>
    %c0_18 = arith.constant 0 : index
    %c0_19 = arith.constant 0 : index
    %c0_20 = arith.constant 0 : index
    %24 = vector.load %arg6[%c0_18, %c0_19, %c0_20] : memref<4x128x32xbf16, #tpu.memory_space<vmem>>, vector<1x128x32xbf16>
    %25 = vector.shape_cast %24 : vector<1x128x32xbf16> to vector<128x32xbf16>
    %cst_21 = arith.constant dense<0.000000e+00> : vector<128x32xf32>
    %26 = tpu.matmul %2, %25, %cst_21 {dimension_numbers = #tpu.dot_dimension_numbers<[1], [0], [0], [1], [0, 0, 1, 1], [], []>} : vector<128x128xbf16>, vector<128x32xbf16>, vector<128x32xf32> -> vector<128x32xf32>
    %c0_22 = arith.constant 0 : index
    %c0_23 = arith.constant 0 : index
    %c0_24 = arith.constant 0 : index
    %27 = vector.load %arg7[%c0_22, %c0_23, %c0_24] : memref<4x1x32xf32, #tpu.memory_space<vmem>>, vector<1x1x32xf32>
    %28 = vector.shape_cast %27 : vector<1x1x32xf32> to vector<1x32xf32>
    %29 = vector.broadcast %28 : vector<1x32xf32> to vector<128x32xf32>
    %30 = arith.addf %26, %29 : vector<128x32xf32>
    %31 = arith.truncf %16 : vector<128x32xf32> to vector<128x32xbf16>
    %32 = arith.truncf %23 : vector<128x32xf32> to vector<128x32xbf16>
    %cst_25 = arith.constant dense<0.000000e+00> : vector<128x128xf32>
    %33 = tpu.matmul %31, %32, %cst_25 {dimension_numbers = #tpu.dot_dimension_numbers<[1], [1], [0], [0], [0, 0, 1, 0], [], []>} : vector<128x32xbf16>, vector<128x32xbf16>, vector<128x128xf32> -> vector<128x128xf32>
    %34 = arith.addf %33, %8 : vector<128x128xf32>
    %cst_26 = arith.constant dense<0xFF800000> : vector<128xf32>
    %35 = vector.multi_reduction <maximumf>, %34, %cst_26 [1] : vector<128x128xf32> to vector<128xf32>
    %36 = vector.shape_cast %35 : vector<128xf32> to vector<128x1xf32>
    %37 = vector.broadcast %36 : vector<128x1xf32> to vector<128x128xf32>
    %38 = arith.subf %34, %37 : vector<128x128xf32>
    %39 = math.exp %38 : vector<128x128xf32>
    %cst_27 = arith.constant dense<0.000000e+00> : vector<128xf32>
    %40 = vector.multi_reduction <add>, %39, %cst_27 [1] : vector<128x128xf32> to vector<128xf32>
    %41 = vector.shape_cast %40 : vector<128xf32> to vector<128x1xf32>
    %42 = tpu.reciprocal %41 {approx = true} : vector<128x1xf32> -> vector<128x1xf32>
    %43 = vector.broadcast %42 : vector<128x1xf32> to vector<128x128xf32>
    %44 = arith.mulf %39, %43 : vector<128x128xf32>
    %45 = arith.truncf %44 : vector<128x128xf32> to vector<128x128xbf16>
    %46 = arith.truncf %30 : vector<128x32xf32> to vector<128x32xbf16>
    %cst_28 = arith.constant dense<0.000000e+00> : vector<128x32xf32>
    %47 = tpu.matmul %45, %46, %cst_28 {dimension_numbers = #tpu.dot_dimension_numbers<[1], [0], [0], [1], [0, 0, 1, 1], [], []>} : vector<128x128xbf16>, vector<128x32xbf16>, vector<128x32xf32> -> vector<128x32xf32>
    %48 = arith.truncf %47 : vector<128x32xf32> to vector<128x32xbf16>
    %c0_29 = arith.constant 0 : index
    %c0_30 = arith.constant 0 : index
    %c0_31 = arith.constant 0 : index
    %49 = vector.load %arg8[%c0_29, %c0_30, %c0_31] : memref<4x32x128xbf16, #tpu.memory_space<vmem>>, vector<1x32x128xbf16>
    %50 = vector.shape_cast %49 : vector<1x32x128xbf16> to vector<32x128xbf16>
    %cst_32 = arith.constant dense<0.000000e+00> : vector<128x128xf32>
    %51 = tpu.matmul %48, %50, %cst_32 {dimension_numbers = #tpu.dot_dimension_numbers<[1], [0], [0], [1], [0, 0, 1, 1], [], []>} : vector<128x32xbf16>, vector<32x128xbf16>, vector<128x128xf32> -> vector<128x128xf32>
    %52 = arith.addf %9, %51 : vector<128x128xf32>
    %c1 = arith.constant 1 : index
    %c0_33 = arith.constant 0 : index
    %c0_34 = arith.constant 0 : index
    %53 = vector.load %arg2[%c1, %c0_33, %c0_34] : memref<4x128x32xbf16, #tpu.memory_space<vmem>>, vector<1x128x32xbf16>
    %54 = vector.shape_cast %53 : vector<1x128x32xbf16> to vector<128x32xbf16>
    %cst_35 = arith.constant dense<0.000000e+00> : vector<128x32xf32>
    %55 = tpu.matmul %2, %54, %cst_35 {dimension_numbers = #tpu.dot_dimension_numbers<[1], [0], [0], [1], [0, 0, 1, 1], [], []>} : vector<128x128xbf16>, vector<128x32xbf16>, vector<128x32xf32> -> vector<128x32xf32>
    %c1_36 = arith.constant 1 : index
    %c0_37 = arith.constant 0 : index
    %c0_38 = arith.constant 0 : index
    %56 = vector.load %arg3[%c1_36, %c0_37, %c0_38] : memref<4x1x32xf32, #tpu.memory_space<vmem>>, vector<1x1x32xf32>
    %57 = vector.shape_cast %56 : vector<1x1x32xf32> to vector<1x32xf32>
    %58 = vector.broadcast %57 : vector<1x32xf32> to vector<128x32xf32>
    %59 = arith.addf %55, %58 : vector<128x32xf32>
    %c1_39 = arith.constant 1 : index
    %c0_40 = arith.constant 0 : index
    %c0_41 = arith.constant 0 : index
    %60 = vector.load %arg4[%c1_39, %c0_40, %c0_41] : memref<4x128x32xbf16, #tpu.memory_space<vmem>>, vector<1x128x32xbf16>
    %61 = vector.shape_cast %60 : vector<1x128x32xbf16> to vector<128x32xbf16>
    %cst_42 = arith.constant dense<0.000000e+00> : vector<128x32xf32>
    %62 = tpu.matmul %2, %61, %cst_42 {dimension_numbers = #tpu.dot_dimension_numbers<[1], [0], [0], [1], [0, 0, 1, 1], [], []>} : vector<128x128xbf16>, vector<128x32xbf16>, vector<128x32xf32> -> vector<128x32xf32>
    %c1_43 = arith.constant 1 : index
    %c0_44 = arith.constant 0 : index
    %c0_45 = arith.constant 0 : index
    %63 = vector.load %arg5[%c1_43, %c0_44, %c0_45] : memref<4x1x32xf32, #tpu.memory_space<vmem>>, vector<1x1x32xf32>
    %64 = vector.shape_cast %63 : vector<1x1x32xf32> to vector<1x32xf32>
    %65 = vector.broadcast %64 : vector<1x32xf32> to vector<128x32xf32>
    %66 = arith.addf %62, %65 : vector<128x32xf32>
    %c1_46 = arith.constant 1 : index
    %c0_47 = arith.constant 0 : index
    %c0_48 = arith.constant 0 : index
    %67 = vector.load %arg6[%c1_46, %c0_47, %c0_48] : memref<4x128x32xbf16, #tpu.memory_space<vmem>>, vector<1x128x32xbf16>
    %68 = vector.shape_cast %67 : vector<1x128x32xbf16> to vector<128x32xbf16>
    %cst_49 = arith.constant dense<0.000000e+00> : vector<128x32xf32>
    %69 = tpu.matmul %2, %68, %cst_49 {dimension_numbers = #tpu.dot_dimension_numbers<[1], [0], [0], [1], [0, 0, 1, 1], [], []>} : vector<128x128xbf16>, vector<128x32xbf16>, vector<128x32xf32> -> vector<128x32xf32>
    %c1_50 = arith.constant 1 : index
    %c0_51 = arith.constant 0 : index
    %c0_52 = arith.constant 0 : index
    %70 = vector.load %arg7[%c1_50, %c0_51, %c0_52] : memref<4x1x32xf32, #tpu.memory_space<vmem>>, vector<1x1x32xf32>
    %71 = vector.shape_cast %70 : vector<1x1x32xf32> to vector<1x32xf32>
    %72 = vector.broadcast %71 : vector<1x32xf32> to vector<128x32xf32>
    %73 = arith.addf %69, %72 : vector<128x32xf32>
    %74 = arith.truncf %59 : vector<128x32xf32> to vector<128x32xbf16>
    %75 = arith.truncf %66 : vector<128x32xf32> to vector<128x32xbf16>
    %cst_53 = arith.constant dense<0.000000e+00> : vector<128x128xf32>
    %76 = tpu.matmul %74, %75, %cst_53 {dimension_numbers = #tpu.dot_dimension_numbers<[1], [1], [0], [0], [0, 0, 1, 0], [], []>} : vector<128x32xbf16>, vector<128x32xbf16>, vector<128x128xf32> -> vector<128x128xf32>
    %77 = arith.addf %76, %8 : vector<128x128xf32>
    %cst_54 = arith.constant dense<0xFF800000> : vector<128xf32>
    %78 = vector.multi_reduction <maximumf>, %77, %cst_54 [1] : vector<128x128xf32> to vector<128xf32>
    %79 = vector.shape_cast %78 : vector<128xf32> to vector<128x1xf32>
    %80 = vector.broadcast %79 : vector<128x1xf32> to vector<128x128xf32>
    %81 = arith.subf %77, %80 : vector<128x128xf32>
    %82 = math.exp %81 : vector<128x128xf32>
    %cst_55 = arith.constant dense<0.000000e+00> : vector<128xf32>
    %83 = vector.multi_reduction <add>, %82, %cst_55 [1] : vector<128x128xf32> to vector<128xf32>
    %84 = vector.shape_cast %83 : vector<128xf32> to vector<128x1xf32>
    %85 = tpu.reciprocal %84 {approx = true} : vector<128x1xf32> -> vector<128x1xf32>
    %86 = vector.broadcast %85 : vector<128x1xf32> to vector<128x128xf32>
    %87 = arith.mulf %82, %86 : vector<128x128xf32>
    %88 = arith.truncf %87 : vector<128x128xf32> to vector<128x128xbf16>
    %89 = arith.truncf %73 : vector<128x32xf32> to vector<128x32xbf16>
    %cst_56 = arith.constant dense<0.000000e+00> : vector<128x32xf32>
    %90 = tpu.matmul %88, %89, %cst_56 {dimension_numbers = #tpu.dot_dimension_numbers<[1], [0], [0], [1], [0, 0, 1, 1], [], []>} : vector<128x128xbf16>, vector<128x32xbf16>, vector<128x32xf32> -> vector<128x32xf32>
    %91 = arith.truncf %90 : vector<128x32xf32> to vector<128x32xbf16>
    %c1_57 = arith.constant 1 : index
    %c0_58 = arith.constant 0 : index
    %c0_59 = arith.constant 0 : index
    %92 = vector.load %arg8[%c1_57, %c0_58, %c0_59] : memref<4x32x128xbf16, #tpu.memory_space<vmem>>, vector<1x32x128xbf16>
    %93 = vector.shape_cast %92 : vector<1x32x128xbf16> to vector<32x128xbf16>
    %cst_60 = arith.constant dense<0.000000e+00> : vector<128x128xf32>
    %94 = tpu.matmul %91, %93, %cst_60 {dimension_numbers = #tpu.dot_dimension_numbers<[1], [0], [0], [1], [0, 0, 1, 1], [], []>} : vector<128x32xbf16>, vector<32x128xbf16>, vector<128x128xf32> -> vector<128x128xf32>
    %95 = arith.addf %52, %94 : vector<128x128xf32>
    %c2 = arith.constant 2 : index
    %c0_61 = arith.constant 0 : index
    %c0_62 = arith.constant 0 : index
    %96 = vector.load %arg2[%c2, %c0_61, %c0_62] : memref<4x128x32xbf16, #tpu.memory_space<vmem>>, vector<1x128x32xbf16>
    %97 = vector.shape_cast %96 : vector<1x128x32xbf16> to vector<128x32xbf16>
    %cst_63 = arith.constant dense<0.000000e+00> : vector<128x32xf32>
    %98 = tpu.matmul %2, %97, %cst_63 {dimension_numbers = #tpu.dot_dimension_numbers<[1], [0], [0], [1], [0, 0, 1, 1], [], []>} : vector<128x128xbf16>, vector<128x32xbf16>, vector<128x32xf32> -> vector<128x32xf32>
    %c2_64 = arith.constant 2 : index
    %c0_65 = arith.constant 0 : index
    %c0_66 = arith.constant 0 : index
    %99 = vector.load %arg3[%c2_64, %c0_65, %c0_66] : memref<4x1x32xf32, #tpu.memory_space<vmem>>, vector<1x1x32xf32>
    %100 = vector.shape_cast %99 : vector<1x1x32xf32> to vector<1x32xf32>
    %101 = vector.broadcast %100 : vector<1x32xf32> to vector<128x32xf32>
    %102 = arith.addf %98, %101 : vector<128x32xf32>
    %c2_67 = arith.constant 2 : index
    %c0_68 = arith.constant 0 : index
    %c0_69 = arith.constant 0 : index
    %103 = vector.load %arg4[%c2_67, %c0_68, %c0_69] : memref<4x128x32xbf16, #tpu.memory_space<vmem>>, vector<1x128x32xbf16>
    %104 = vector.shape_cast %103 : vector<1x128x32xbf16> to vector<128x32xbf16>
    %cst_70 = arith.constant dense<0.000000e+00> : vector<128x32xf32>
    %105 = tpu.matmul %2, %104, %cst_70 {dimension_numbers = #tpu.dot_dimension_numbers<[1], [0], [0], [1], [0, 0, 1, 1], [], []>} : vector<128x128xbf16>, vector<128x32xbf16>, vector<128x32xf32> -> vector<128x32xf32>
    %c2_71 = arith.constant 2 : index
    %c0_72 = arith.constant 0 : index
    %c0_73 = arith.constant 0 : index
    %106 = vector.load %arg5[%c2_71, %c0_72, %c0_73] : memref<4x1x32xf32, #tpu.memory_space<vmem>>, vector<1x1x32xf32>
    %107 = vector.shape_cast %106 : vector<1x1x32xf32> to vector<1x32xf32>
    %108 = vector.broadcast %107 : vector<1x32xf32> to vector<128x32xf32>
    %109 = arith.addf %105, %108 : vector<128x32xf32>
    %c2_74 = arith.constant 2 : index
    %c0_75 = arith.constant 0 : index
    %c0_76 = arith.constant 0 : index
    %110 = vector.load %arg6[%c2_74, %c0_75, %c0_76] : memref<4x128x32xbf16, #tpu.memory_space<vmem>>, vector<1x128x32xbf16>
    %111 = vector.shape_cast %110 : vector<1x128x32xbf16> to vector<128x32xbf16>
    %cst_77 = arith.constant dense<0.000000e+00> : vector<128x32xf32>
    %112 = tpu.matmul %2, %111, %cst_77 {dimension_numbers = #tpu.dot_dimension_numbers<[1], [0], [0], [1], [0, 0, 1, 1], [], []>} : vector<128x128xbf16>, vector<128x32xbf16>, vector<128x32xf32> -> vector<128x32xf32>
    %c2_78 = arith.constant 2 : index
    %c0_79 = arith.constant 0 : index
    %c0_80 = arith.constant 0 : index
    %113 = vector.load %arg7[%c2_78, %c0_79, %c0_80] : memref<4x1x32xf32, #tpu.memory_space<vmem>>, vector<1x1x32xf32>
    %114 = vector.shape_cast %113 : vector<1x1x32xf32> to vector<1x32xf32>
    %115 = vector.broadcast %114 : vector<1x32xf32> to vector<128x32xf32>
    %116 = arith.addf %112, %115 : vector<128x32xf32>
    %117 = arith.truncf %102 : vector<128x32xf32> to vector<128x32xbf16>
    %118 = arith.truncf %109 : vector<128x32xf32> to vector<128x32xbf16>
    %cst_81 = arith.constant dense<0.000000e+00> : vector<128x128xf32>
    %119 = tpu.matmul %117, %118, %cst_81 {dimension_numbers = #tpu.dot_dimension_numbers<[1], [1], [0], [0], [0, 0, 1, 0], [], []>} : vector<128x32xbf16>, vector<128x32xbf16>, vector<128x128xf32> -> vector<128x128xf32>
    %120 = arith.addf %119, %8 : vector<128x128xf32>
    %cst_82 = arith.constant dense<0xFF800000> : vector<128xf32>
    %121 = vector.multi_reduction <maximumf>, %120, %cst_82 [1] : vector<128x128xf32> to vector<128xf32>
    %122 = vector.shape_cast %121 : vector<128xf32> to vector<128x1xf32>
    %123 = vector.broadcast %122 : vector<128x1xf32> to vector<128x128xf32>
    %124 = arith.subf %120, %123 : vector<128x128xf32>
    %125 = math.exp %124 : vector<128x128xf32>
    %cst_83 = arith.constant dense<0.000000e+00> : vector<128xf32>
    %126 = vector.multi_reduction <add>, %125, %cst_83 [1] : vector<128x128xf32> to vector<128xf32>
    %127 = vector.shape_cast %126 : vector<128xf32> to vector<128x1xf32>
    %128 = tpu.reciprocal %127 {approx = true} : vector<128x1xf32> -> vector<128x1xf32>
    %129 = vector.broadcast %128 : vector<128x1xf32> to vector<128x128xf32>
    %130 = arith.mulf %125, %129 : vector<128x128xf32>
    %131 = arith.truncf %130 : vector<128x128xf32> to vector<128x128xbf16>
    %132 = arith.truncf %116 : vector<128x32xf32> to vector<128x32xbf16>
    %cst_84 = arith.constant dense<0.000000e+00> : vector<128x32xf32>
    %133 = tpu.matmul %131, %132, %cst_84 {dimension_numbers = #tpu.dot_dimension_numbers<[1], [0], [0], [1], [0, 0, 1, 1], [], []>} : vector<128x128xbf16>, vector<128x32xbf16>, vector<128x32xf32> -> vector<128x32xf32>
    %134 = arith.truncf %133 : vector<128x32xf32> to vector<128x32xbf16>
    %c2_85 = arith.constant 2 : index
    %c0_86 = arith.constant 0 : index
    %c0_87 = arith.constant 0 : index
    %135 = vector.load %arg8[%c2_85, %c0_86, %c0_87] : memref<4x32x128xbf16, #tpu.memory_space<vmem>>, vector<1x32x128xbf16>
    %136 = vector.shape_cast %135 : vector<1x32x128xbf16> to vector<32x128xbf16>
    %cst_88 = arith.constant dense<0.000000e+00> : vector<128x128xf32>
    %137 = tpu.matmul %134, %136, %cst_88 {dimension_numbers = #tpu.dot_dimension_numbers<[1], [0], [0], [1], [0, 0, 1, 1], [], []>} : vector<128x32xbf16>, vector<32x128xbf16>, vector<128x128xf32> -> vector<128x128xf32>
    %138 = arith.addf %95, %137 : vector<128x128xf32>
    %c3 = arith.constant 3 : index
    %c0_89 = arith.constant 0 : index
    %c0_90 = arith.constant 0 : index
    %139 = vector.load %arg2[%c3, %c0_89, %c0_90] : memref<4x128x32xbf16, #tpu.memory_space<vmem>>, vector<1x128x32xbf16>
    %140 = vector.shape_cast %139 : vector<1x128x32xbf16> to vector<128x32xbf16>
    %cst_91 = arith.constant dense<0.000000e+00> : vector<128x32xf32>
    %141 = tpu.matmul %2, %140, %cst_91 {dimension_numbers = #tpu.dot_dimension_numbers<[1], [0], [0], [1], [0, 0, 1, 1], [], []>} : vector<128x128xbf16>, vector<128x32xbf16>, vector<128x32xf32> -> vector<128x32xf32>
    %c3_92 = arith.constant 3 : index
    %c0_93 = arith.constant 0 : index
    %c0_94 = arith.constant 0 : index
    %142 = vector.load %arg3[%c3_92, %c0_93, %c0_94] : memref<4x1x32xf32, #tpu.memory_space<vmem>>, vector<1x1x32xf32>
    %143 = vector.shape_cast %142 : vector<1x1x32xf32> to vector<1x32xf32>
    %144 = vector.broadcast %143 : vector<1x32xf32> to vector<128x32xf32>
    %145 = arith.addf %141, %144 : vector<128x32xf32>
    %c3_95 = arith.constant 3 : index
    %c0_96 = arith.constant 0 : index
    %c0_97 = arith.constant 0 : index
    %146 = vector.load %arg4[%c3_95, %c0_96, %c0_97] : memref<4x128x32xbf16, #tpu.memory_space<vmem>>, vector<1x128x32xbf16>
    %147 = vector.shape_cast %146 : vector<1x128x32xbf16> to vector<128x32xbf16>
    %cst_98 = arith.constant dense<0.000000e+00> : vector<128x32xf32>
    %148 = tpu.matmul %2, %147, %cst_98 {dimension_numbers = #tpu.dot_dimension_numbers<[1], [0], [0], [1], [0, 0, 1, 1], [], []>} : vector<128x128xbf16>, vector<128x32xbf16>, vector<128x32xf32> -> vector<128x32xf32>
    %c3_99 = arith.constant 3 : index
    %c0_100 = arith.constant 0 : index
    %c0_101 = arith.constant 0 : index
    %149 = vector.load %arg5[%c3_99, %c0_100, %c0_101] : memref<4x1x32xf32, #tpu.memory_space<vmem>>, vector<1x1x32xf32>
    %150 = vector.shape_cast %149 : vector<1x1x32xf32> to vector<1x32xf32>
    %151 = vector.broadcast %150 : vector<1x32xf32> to vector<128x32xf32>
    %152 = arith.addf %148, %151 : vector<128x32xf32>
    %c3_102 = arith.constant 3 : index
    %c0_103 = arith.constant 0 : index
    %c0_104 = arith.constant 0 : index
    %153 = vector.load %arg6[%c3_102, %c0_103, %c0_104] : memref<4x128x32xbf16, #tpu.memory_space<vmem>>, vector<1x128x32xbf16>
    %154 = vector.shape_cast %153 : vector<1x128x32xbf16> to vector<128x32xbf16>
    %cst_105 = arith.constant dense<0.000000e+00> : vector<128x32xf32>
    %155 = tpu.matmul %2, %154, %cst_105 {dimension_numbers = #tpu.dot_dimension_numbers<[1], [0], [0], [1], [0, 0, 1, 1], [], []>} : vector<128x128xbf16>, vector<128x32xbf16>, vector<128x32xf32> -> vector<128x32xf32>
    %c3_106 = arith.constant 3 : index
    %c0_107 = arith.constant 0 : index
    %c0_108 = arith.constant 0 : index
    %156 = vector.load %arg7[%c3_106, %c0_107, %c0_108] : memref<4x1x32xf32, #tpu.memory_space<vmem>>, vector<1x1x32xf32>
    %157 = vector.shape_cast %156 : vector<1x1x32xf32> to vector<1x32xf32>
    %158 = vector.broadcast %157 : vector<1x32xf32> to vector<128x32xf32>
    %159 = arith.addf %155, %158 : vector<128x32xf32>
    %160 = arith.truncf %145 : vector<128x32xf32> to vector<128x32xbf16>
    %161 = arith.truncf %152 : vector<128x32xf32> to vector<128x32xbf16>
    %cst_109 = arith.constant dense<0.000000e+00> : vector<128x128xf32>
    %162 = tpu.matmul %160, %161, %cst_109 {dimension_numbers = #tpu.dot_dimension_numbers<[1], [1], [0], [0], [0, 0, 1, 0], [], []>} : vector<128x32xbf16>, vector<128x32xbf16>, vector<128x128xf32> -> vector<128x128xf32>
    %163 = arith.addf %162, %8 : vector<128x128xf32>
    %cst_110 = arith.constant dense<0xFF800000> : vector<128xf32>
    %164 = vector.multi_reduction <maximumf>, %163, %cst_110 [1] : vector<128x128xf32> to vector<128xf32>
    %165 = vector.shape_cast %164 : vector<128xf32> to vector<128x1xf32>
    %166 = vector.broadcast %165 : vector<128x1xf32> to vector<128x128xf32>
    %167 = arith.subf %163, %166 : vector<128x128xf32>
    %168 = math.exp %167 : vector<128x128xf32>
    %cst_111 = arith.constant dense<0.000000e+00> : vector<128xf32>
    %169 = vector.multi_reduction <add>, %168, %cst_111 [1] : vector<128x128xf32> to vector<128xf32>
    %170 = vector.shape_cast %169 : vector<128xf32> to vector<128x1xf32>
    %171 = tpu.reciprocal %170 {approx = true} : vector<128x1xf32> -> vector<128x1xf32>
    %172 = vector.broadcast %171 : vector<128x1xf32> to vector<128x128xf32>
    %173 = arith.mulf %168, %172 : vector<128x128xf32>
    %174 = arith.truncf %173 : vector<128x128xf32> to vector<128x128xbf16>
    %175 = arith.truncf %159 : vector<128x32xf32> to vector<128x32xbf16>
    %cst_112 = arith.constant dense<0.000000e+00> : vector<128x32xf32>
    %176 = tpu.matmul %174, %175, %cst_112 {dimension_numbers = #tpu.dot_dimension_numbers<[1], [0], [0], [1], [0, 0, 1, 1], [], []>} : vector<128x128xbf16>, vector<128x32xbf16>, vector<128x32xf32> -> vector<128x32xf32>
    %177 = arith.truncf %176 : vector<128x32xf32> to vector<128x32xbf16>
    %c3_113 = arith.constant 3 : index
    %c0_114 = arith.constant 0 : index
    %c0_115 = arith.constant 0 : index
    %178 = vector.load %arg8[%c3_113, %c0_114, %c0_115] : memref<4x32x128xbf16, #tpu.memory_space<vmem>>, vector<1x32x128xbf16>
    %179 = vector.shape_cast %178 : vector<1x32x128xbf16> to vector<32x128xbf16>
    %cst_116 = arith.constant dense<0.000000e+00> : vector<128x128xf32>
    %180 = tpu.matmul %177, %179, %cst_116 {dimension_numbers = #tpu.dot_dimension_numbers<[1], [0], [0], [1], [0, 0, 1, 1], [], []>} : vector<128x32xbf16>, vector<32x128xbf16>, vector<128x128xf32> -> vector<128x128xf32>
    %181 = arith.addf %138, %180 : vector<128x128xf32>
    %c0_117 = arith.constant 0 : index
    %c0_118 = arith.constant 0 : index
    %182 = vector.load %arg9[%c0_117, %c0_118] : memref<1x128xf32, #tpu.memory_space<vmem>>, vector<1x128xf32>
    %183 = vector.broadcast %182 : vector<1x128xf32> to vector<128x128xf32>
    %184 = arith.addf %181, %183 : vector<128x128xf32>
    %185 = arith.addf %1, %184 : vector<128x128xf32>
    %c0_119 = arith.constant 0 : index
    %c0_120 = arith.constant 0 : index
    %186 = vector.load %arg10[%c0_119, %c0_120] : memref<1x128xf32, #tpu.memory_space<vmem>>, vector<1x128xf32>
    %c0_121 = arith.constant 0 : index
    %c0_122 = arith.constant 0 : index
    %187 = vector.load %arg11[%c0_121, %c0_122] : memref<1x128xf32, #tpu.memory_space<vmem>>, vector<1x128xf32>
    %cst_123 = arith.constant dense<0.000000e+00> : vector<128xf32>
    %188 = vector.multi_reduction <add>, %185, %cst_123 [1] : vector<128x128xf32> to vector<128xf32>
    %189 = vector.shape_cast %188 : vector<128xf32> to vector<128x1xf32>
    %cst_124 = arith.constant 1.280000e+02 : f32
    %190 = vector.broadcast %cst_124 : f32 to vector<128x1xf32>
    %191 = arith.divf %189, %190 : vector<128x1xf32>
    %192 = vector.broadcast %191 : vector<128x1xf32> to vector<128x128xf32>
    %193 = arith.subf %185, %192 : vector<128x128xf32>
    %194 = arith.mulf %193, %193 : vector<128x128xf32>
    %cst_125 = arith.constant dense<0.000000e+00> : vector<128xf32>
    %195 = vector.multi_reduction <add>, %194, %cst_125 [1] : vector<128x128xf32> to vector<128xf32>
    %196 = vector.shape_cast %195 : vector<128xf32> to vector<128x1xf32>
    %cst_126 = arith.constant 1.280000e+02 : f32
    %197 = vector.broadcast %cst_126 : f32 to vector<128x1xf32>
    %198 = arith.divf %196, %197 : vector<128x1xf32>
    %199 = vector.broadcast %191 : vector<128x1xf32> to vector<128x128xf32>
    %200 = arith.subf %185, %199 : vector<128x128xf32>
    %cst_127 = arith.constant 9.99999974E-6 : f32
    %201 = vector.broadcast %cst_127 : f32 to vector<128x1xf32>
    %202 = arith.addf %198, %201 : vector<128x1xf32>
    %203 = math.rsqrt %202 : vector<128x1xf32>
    %204 = vector.broadcast %203 : vector<128x1xf32> to vector<128x128xf32>
    %205 = arith.mulf %200, %204 : vector<128x128xf32>
    %206 = vector.broadcast %186 : vector<1x128xf32> to vector<128x128xf32>
    %207 = arith.mulf %205, %206 : vector<128x128xf32>
    %208 = vector.broadcast %187 : vector<1x128xf32> to vector<128x128xf32>
    %209 = arith.addf %207, %208 : vector<128x128xf32>
    %210 = arith.truncf %209 : vector<128x128xf32> to vector<128x128xbf16>
    %c0_128 = arith.constant 0 : index
    %c0_129 = arith.constant 0 : index
    %211 = vector.load %arg12[%c0_128, %c0_129] : memref<128x256xbf16, #tpu.memory_space<vmem>>, vector<128x256xbf16>
    %cst_130 = arith.constant dense<0.000000e+00> : vector<128x256xf32>
    %212 = tpu.matmul %210, %211, %cst_130 {dimension_numbers = #tpu.dot_dimension_numbers<[1], [0], [0], [1], [0, 0, 1, 1], [], []>} : vector<128x128xbf16>, vector<128x256xbf16>, vector<128x256xf32> -> vector<128x256xf32>
    %c0_131 = arith.constant 0 : index
    %c0_132 = arith.constant 0 : index
    %213 = vector.load %arg13[%c0_131, %c0_132] : memref<1x256xf32, #tpu.memory_space<vmem>>, vector<1x256xf32>
    %214 = vector.broadcast %213 : vector<1x256xf32> to vector<128x256xf32>
    %215 = arith.addf %212, %214 : vector<128x256xf32>
    %cst_133 = arith.constant 0.000000e+00 : f32
    %216 = vector.broadcast %cst_133 : f32 to vector<128x256xf32>
    %217 = arith.maximumf %215, %216 : vector<128x256xf32>
    %218 = arith.truncf %217 : vector<128x256xf32> to vector<128x256xbf16>
    %c0_134 = arith.constant 0 : index
    %c0_135 = arith.constant 0 : index
    %219 = vector.load %arg14[%c0_134, %c0_135] : memref<256x128xbf16, #tpu.memory_space<vmem>>, vector<256x128xbf16>
    %cst_136 = arith.constant dense<0.000000e+00> : vector<128x128xf32>
    %220 = tpu.matmul %218, %219, %cst_136 {dimension_numbers = #tpu.dot_dimension_numbers<[1], [0], [0], [1], [0, 0, 1, 1], [], []>} : vector<128x256xbf16>, vector<256x128xbf16>, vector<128x128xf32> -> vector<128x128xf32>
    %c0_137 = arith.constant 0 : index
    %c0_138 = arith.constant 0 : index
    %221 = vector.load %arg15[%c0_137, %c0_138] : memref<1x128xf32, #tpu.memory_space<vmem>>, vector<1x128xf32>
    %222 = vector.broadcast %221 : vector<1x128xf32> to vector<128x128xf32>
    %223 = arith.addf %220, %222 : vector<128x128xf32>
    %224 = arith.addf %209, %223 : vector<128x128xf32>
    %c0_139 = arith.constant 0 : index
    %c0_140 = arith.constant 0 : index
    %225 = vector.load %arg16[%c0_139, %c0_140] : memref<1x128xf32, #tpu.memory_space<vmem>>, vector<1x128xf32>
    %c0_141 = arith.constant 0 : index
    %c0_142 = arith.constant 0 : index
    %226 = vector.load %arg17[%c0_141, %c0_142] : memref<1x128xf32, #tpu.memory_space<vmem>>, vector<1x128xf32>
    %cst_143 = arith.constant dense<0.000000e+00> : vector<128xf32>
    %227 = vector.multi_reduction <add>, %224, %cst_143 [1] : vector<128x128xf32> to vector<128xf32>
    %228 = vector.shape_cast %227 : vector<128xf32> to vector<128x1xf32>
    %cst_144 = arith.constant 1.280000e+02 : f32
    %229 = vector.broadcast %cst_144 : f32 to vector<128x1xf32>
    %230 = arith.divf %228, %229 : vector<128x1xf32>
    %231 = vector.broadcast %230 : vector<128x1xf32> to vector<128x128xf32>
    %232 = arith.subf %224, %231 : vector<128x128xf32>
    %233 = arith.mulf %232, %232 : vector<128x128xf32>
    %cst_145 = arith.constant dense<0.000000e+00> : vector<128xf32>
    %234 = vector.multi_reduction <add>, %233, %cst_145 [1] : vector<128x128xf32> to vector<128xf32>
    %235 = vector.shape_cast %234 : vector<128xf32> to vector<128x1xf32>
    %cst_146 = arith.constant 1.280000e+02 : f32
    %236 = vector.broadcast %cst_146 : f32 to vector<128x1xf32>
    %237 = arith.divf %235, %236 : vector<128x1xf32>
    %238 = vector.broadcast %230 : vector<128x1xf32> to vector<128x128xf32>
    %239 = arith.subf %224, %238 : vector<128x128xf32>
    %cst_147 = arith.constant 9.99999974E-6 : f32
    %240 = vector.broadcast %cst_147 : f32 to vector<128x1xf32>
    %241 = arith.addf %237, %240 : vector<128x1xf32>
    %242 = math.rsqrt %241 : vector<128x1xf32>
    %243 = vector.broadcast %242 : vector<128x1xf32> to vector<128x128xf32>
    %244 = arith.mulf %239, %243 : vector<128x128xf32>
    %245 = vector.broadcast %225 : vector<1x128xf32> to vector<128x128xf32>
    %246 = arith.mulf %244, %245 : vector<128x128xf32>
    %247 = vector.broadcast %226 : vector<1x128xf32> to vector<128x128xf32>
    %248 = arith.addf %246, %247 : vector<128x128xf32>
    %c0_148 = arith.constant 0 : index
    %c0_149 = arith.constant 0 : index
    %c0_150 = arith.constant 0 : index
    %249 = vector.load %arg18[%c0_148, %c0_149, %c0_150] : memref<1x128x128xf32, #tpu.memory_space<vmem>>, vector<1x128x128xf32>
    %250 = vector.shape_cast %249 : vector<1x128x128xf32> to vector<128x128xf32>
    %251 = vector.shape_cast %248 : vector<128x128xf32> to vector<1x128x128xf32>
    tpu.vector_store %arg18[%c0_148, %c0_149, %c0_150], %251 {strides = array<i32>} : memref<1x128x128xf32, #tpu.memory_space<vmem>>, vector<1x128x128xf32>,
    return
  }
  func.func @transform_0(%arg0: i32) -> (i32, i32, i32) {
    %c0_i32 = arith.constant 0 : i32
    %c0_i32_0 = arith.constant 0 : i32
    %c0_i32_1 = arith.constant 0 : i32
    return %arg0, %c0_i32, %c0_i32_0 : i32, i32, i32
  }
  func.func @transform_1(%arg0: i32) -> (i32, i32, i32) {
    %c0_i32 = arith.constant 0 : i32
    %c0_i32_0 = arith.constant 0 : i32
    %c0_i32_1 = arith.constant 0 : i32
    %c0_i32_2 = arith.constant 0 : i32
    return %c0_i32, %c0_i32_0, %c0_i32_1 : i32, i32, i32
  }
  func.func @transform_2(%arg0: i32) -> (i32, i32, i32) {
    %c0_i32 = arith.constant 0 : i32
    %c0_i32_0 = arith.constant 0 : i32
    %c0_i32_1 = arith.constant 0 : i32
    %c0_i32_2 = arith.constant 0 : i32
    return %c0_i32, %c0_i32_0, %c0_i32_1 : i32, i32, i32
  }
  func.func @transform_3(%arg0: i32) -> (i32, i32, i32) {
    %c0_i32 = arith.constant 0 : i32
    %c0_i32_0 = arith.constant 0 : i32
    %c0_i32_1 = arith.constant 0 : i32
    %c0_i32_2 = arith.constant 0 : i32
    return %c0_i32, %c0_i32_0, %c0_i32_1 : i32, i32, i32
  }
  func.func @transform_4(%arg0: i32) -> (i32, i32, i32) {
    %c0_i32 = arith.constant 0 : i32
    %c0_i32_0 = arith.constant 0 : i32
    %c0_i32_1 = arith.constant 0 : i32
    %c0_i32_2 = arith.constant 0 : i32
    return %c0_i32, %c0_i32_0, %c0_i32_1 : i32, i32, i32
  }
  func.func @transform_5(%arg0: i32) -> (i32, i32, i32) {
    %c0_i32 = arith.constant 0 : i32
    %c0_i32_0 = arith.constant 0 : i32
    %c0_i32_1 = arith.constant 0 : i32
    %c0_i32_2 = arith.constant 0 : i32
    return %c0_i32, %c0_i32_0, %c0_i32_1 : i32, i32, i32
  }
  func.func @transform_6(%arg0: i32) -> (i32, i32, i32) {
    %c0_i32 = arith.constant 0 : i32
    %c0_i32_0 = arith.constant 0 : i32
    %c0_i32_1 = arith.constant 0 : i32
    %c0_i32_2 = arith.constant 0 : i32
    return %c0_i32, %c0_i32_0, %c0_i32_1 : i32, i32, i32
  }
  func.func @transform_7(%arg0: i32) -> (i32, i32, i32) {
    %c0_i32 = arith.constant 0 : i32
    %c0_i32_0 = arith.constant 0 : i32
    %c0_i32_1 = arith.constant 0 : i32
    %c0_i32_2 = arith.constant 0 : i32
    return %c0_i32, %c0_i32_0, %c0_i32_1 : i32, i32, i32
  }
  func.func @transform_8(%arg0: i32) -> (i32, i32) {
    %c0_i32 = arith.constant 0 : i32
    %c0_i32_0 = arith.constant 0 : i32
    %c0_i32_1 = arith.constant 0 : i32
    return %c0_i32, %c0_i32_0 : i32, i32
  }
  func.func @transform_9(%arg0: i32) -> (i32, i32) {
    %c0_i32 = arith.constant 0 : i32
    %c0_i32_0 = arith.constant 0 : i32
    %c0_i32_1 = arith.constant 0 : i32
    return %c0_i32, %c0_i32_0 : i32, i32
  }
  func.func @transform_10(%arg0: i32) -> (i32, i32) {
    %c0_i32 = arith.constant 0 : i32
    %c0_i32_0 = arith.constant 0 : i32
    %c0_i32_1 = arith.constant 0 : i32
    return %c0_i32, %c0_i32_0 : i32, i32
  }
  func.func @transform_11(%arg0: i32) -> (i32, i32) {
    %c0_i32 = arith.constant 0 : i32
    %c0_i32_0 = arith.constant 0 : i32
    %c0_i32_1 = arith.constant 0 : i32
    return %c0_i32, %c0_i32_0 : i32, i32
  }
  func.func @transform_12(%arg0: i32) -> (i32, i32) {
    %c0_i32 = arith.constant 0 : i32
    %c0_i32_0 = arith.constant 0 : i32
    %c0_i32_1 = arith.constant 0 : i32
    return %c0_i32, %c0_i32_0 : i32, i32
  }
  func.func @transform_13(%arg0: i32) -> (i32, i32) {
    %c0_i32 = arith.constant 0 : i32
    %c0_i32_0 = arith.constant 0 : i32
    %c0_i32_1 = arith.constant 0 : i32
    return %c0_i32, %c0_i32_0 : i32, i32
  }
  func.func @transform_14(%arg0: i32) -> (i32, i32) {
    %c0_i32 = arith.constant 0 : i32
    %c0_i32_0 = arith.constant 0 : i32
    %c0_i32_1 = arith.constant 0 : i32
    return %c0_i32, %c0_i32_0 : i32, i32
  }
  func.func @transform_15(%arg0: i32) -> (i32, i32) {
    %c0_i32 = arith.constant 0 : i32
    %c0_i32_0 = arith.constant 0 : i32
    %c0_i32_1 = arith.constant 0 : i32
    return %c0_i32, %c0_i32_0 : i32, i32
  }
  func.func @transform_16(%arg0: i32) -> (i32, i32) {
    %c0_i32 = arith.constant 0 : i32
    %c0_i32_0 = arith.constant 0 : i32
    %c0_i32_1 = arith.constant 0 : i32
    return %c0_i32, %c0_i32_0 : i32, i32
  }
  func.func @transform_17(%arg0: i32) -> (i32, i32, i32) {
    %c0_i32 = arith.constant 0 : i32
    %c0_i32_0 = arith.constant 0 : i32
    %c0_i32_1 = arith.constant 0 : i32
    return %arg0, %c0_i32, %c0_i32_0 : i32, i32, i32
  }
}

</mosaic_0001>

<llo_original>
// kernel: tpu_custom_call.1
$region0: #{tpu_custom_call.1}
  #allocation0 [shape = 'u32[]', space=smem, size = 0x4, offset = 0x4, fixed_abs, tag = 'smem constant byte address 0x4 - core index']
  #allocation1 [shape = 'u32[144,128]{1,0:T(1,128)}', space=vmem, size = 0x12000, scoped, tag = 'internal scratch']
  %s0 = inlined_call_operand.vmem [shape: f32[2,128,128], index: 0, kind: input, shape index: {}]
  %s1 = inlined_call_operand.vmem [shape: bf16[4,128,32], index: 1, kind: input, shape index: {}]
  %s2 = inlined_call_operand.vmem [shape: f32[4,1,32], index: 2, kind: input, shape index: {}]
  %s3 = inlined_call_operand.vmem [shape: bf16[4,128,32], index: 3, kind: input, shape index: {}]
  %s4 = inlined_call_operand.vmem [shape: f32[4,1,32], index: 4, kind: input, shape index: {}]
  %s5 = inlined_call_operand.vmem [shape: bf16[4,128,32], index: 5, kind: input, shape index: {}]
  %s6 = inlined_call_operand.vmem [shape: f32[4,1,32], index: 6, kind: input, shape index: {}]
  %s7 = inlined_call_operand.vmem [shape: bf16[4,32,128], index: 7, kind: input, shape index: {}]
  %s8 = inlined_call_operand.vmem [shape: f32[1,128], index: 8, kind: input, shape index: {}]
  %s9 = inlined_call_operand.vmem [shape: f32[1,128], index: 9, kind: input, shape index: {}]
  %s10 = inlined_call_operand.vmem [shape: f32[1,128], index: 10, kind: input, shape index: {}]
  %s11 = inlined_call_operand.vmem [shape: bf16[128,256], index: 11, kind: input, shape index: {}]
  %s12 = inlined_call_operand.vmem [shape: f32[1,256], index: 12, kind: input, shape index: {}]
  %s13 = inlined_call_operand.vmem [shape: bf16[256,128], index: 13, kind: input, shape index: {}]
  %s14 = inlined_call_operand.vmem [shape: f32[1,128], index: 14, kind: input, shape index: {}]
  %s15 = inlined_call_operand.vmem [shape: f32[1,128], index: 15, kind: input, shape index: {}]
  %s16 = inlined_call_operand.vmem [shape: f32[1,128], index: 16, kind: input, shape index: {}]
  %s17 = inlined_call_operand.hbm [shape: f32[2,128,128], index: 17, kind: output, shape index: {}]
  %s18 = sld [smem:[#allocation0]]
  $region101: #{tpu_custom_call.1} parent=0
    _
  %s20 = ssub.s32 1, %s18
  %s21 = scalar_select 0, %s20, %s18
  $region1: #{tpu_custom_call.1} parent=0
    #allocation2 [shape = 'u8[131072]{0}', space=vmem, size = 0x20000, scoped, tag = 'output window, operand 0']
    #allocation3 [shape = 's32[2]{0}', space=sflag, size = 0x8, scoped, tag = 'scoped memory for tpu_custom_call.1']
    %22 = vsyncpa [#allocation3], 0
    %s23 = scalar_lea.sflag [#allocation3], 1
    %24 = vsyncpa %s23, 0
    loop: start=0, step=1, limit=4
    $region2: #{tpu_custom_call.1} parent=1 // loop_pre_header
      _
    $region3: #{tpu_custom_call.1} parent=1 // loop_header
      %s26 = sphi 0, %s30
      %p27 = scmp.ge.s32.totalorder %s26, 4
      %s36 = sphi 0, %s38
      %s39 = sphi 0, %s36
      %s40 = sphi 0, %s39
      %s56 = sphi 0, %s40
      %s60 = sphi 0, %s60
      %s62 = sphi 0, %s60
      %s63 = sphi 0, %s62
      %s77 = sphi 0, %s63
      %s81 = sphi 0, %s81
      %s83 = sphi 0, %s81
      %s84 = sphi 0, %s83
      %s98 = sphi 0, %s84
      %s102 = sphi 0, %s102
      %s104 = sphi 0, %s102
      %s105 = sphi 0, %s104
      %s119 = sphi 0, %s105
      %s123 = sphi 0, %s123
      %s125 = sphi 0, %s123
      %s126 = sphi 0, %s125
      %s140 = sphi 0, %s126
      %s144 = sphi 0, %s144
      %s146 = sphi 0, %s144
      %s147 = sphi 0, %s146
      %s161 = sphi 0, %s147
      %s165 = sphi 0, %s165
      %s167 = sphi 0, %s165
      %s168 = sphi 0, %s167
      %s182 = sphi 0, %s168
      %s186 = sphi 0, %s186
      %s188 = sphi 0, %s186
      %s189 = sphi 0, %s188
      %s203 = sphi 0, %s189
      %s207 = sphi 0, %s207
      %s209 = sphi 0, %s207
      %s210 = sphi 0, %s209
      %s224 = sphi 0, %s210
      %s228 = sphi 0, %s228
      %s230 = sphi 0, %s228
      %s231 = sphi 0, %s230
      %s245 = sphi 0, %s231
      %s249 = sphi 0, %s249
      %s251 = sphi 0, %s249
      %s252 = sphi 0, %s251
      %s266 = sphi 0, %s252
      %s270 = sphi 0, %s270
      %s272 = sphi 0, %s270
      %s273 = sphi 0, %s272
      %s287 = sphi 0, %s273
      %s291 = sphi 0, %s291
      %s293 = sphi 0, %s291
      %s294 = sphi 0, %s293
      %s308 = sphi 0, %s294
      %s312 = sphi 0, %s312
      %s314 = sphi 0, %s312
      %s315 = sphi 0, %s314
      %s329 = sphi 0, %s315
      %s333 = sphi 0, %s333
      %s335 = sphi 0, %s333
      %s336 = sphi 0, %s335
      %s350 = sphi 0, %s336
      %s354 = sphi 0, %s354
      %s356 = sphi 0, %s354
      %s357 = sphi 0, %s356
      %s371 = sphi 0, %s357
      %s375 = sphi 0, %s375
      %s377 = sphi 0, %s375
      %s378 = sphi 0, %s377
      %s392 = sphi 0, %s378
      %s398 = sphi 0, %s400
      %s401 = sphi 0, %s398
      %s402 = sphi 0, %s401
      %s418 = sphi 0, %s402
    $region4: #{tpu_custom_call.1} parent=1 // loop_header_branch
      %29 = sbr.rel (%p27) target = $region8
    $region5: #{tpu_custom_call.1} parent=1 // loop_body
      %s31 = ssub.s32 %s26, 1
      %s32 = ssub.s32 %s26, 2
      %s33 = sadd.s32 %s26, 1
      %s34 = ssub.s32 %s26, %s33
      %p35 = scmp.eq.s32.totalorder %s34, 0
      %s37 = sadd.s32 %s36, 1
      %s38 = scalar_select %p35, %s36, %s37
      %p41 = pneg %p35
      %p42 = scmp.eq.s32.totalorder %s26, 1
      %p43 = por %p41, %p42
      %p44 = scmp.ne.s32.totalorder %s36, %s39
      %p45 = scmp.eq.s32.totalorder %s26, 0
      %p46 = por %p44, %p45
      %p47 = scmp.ne.s32.totalorder %s36, %s39
      %p48 = scmp.eq.s32.totalorder %s31, 1
      %p49 = por %p47, %p48
      %p50 = scmp.ne.s32.totalorder %s39, %s40
      %p51 = scmp.eq.s32.totalorder %s31, 0
      %p52 = por %p50, %p51
      %p53 = scmp.ne.s32.totalorder %s39, %s40
      %p54 = scmp.eq.s32.totalorder %s32, 1
      %p55 = por %p53, %p54
      %p57 = scmp.ne.s32.totalorder %s40, %s56
      %p58 = scmp.eq.s32.totalorder %s32, 0
      %p59 = por %p57, %p58
      %s61 = sadd.s32 %s60, 1
      %p64 = scmp.eq.s32.totalorder %s26, 1
      %p65 = scmp.ne.s32.totalorder %s60, %s62
      %p66 = scmp.eq.s32.totalorder %s26, 0
      %p67 = por %p65, %p66
      %p68 = scmp.ne.s32.totalorder %s60, %s62
      %p69 = scmp.eq.s32.totalorder %s31, 1
      %p70 = por %p68, %p69
      %p71 = scmp.ne.s32.totalorder %s62, %s63
      %p72 = scmp.eq.s32.totalorder %s31, 0
      %p73 = por %p71, %p72
      %p74 = scmp.ne.s32.totalorder %s62, %s63
      %p75 = scmp.eq.s32.totalorder %s32, 1
      %p76 = por %p74, %p75
      %p78 = scmp.ne.s32.totalorder %s63, %s77
      %p79 = scmp.eq.s32.totalorder %s32, 0
      %p80 = por %p78, %p79
      %s82 = sadd.s32 %s81, 1
      %p85 = scmp.eq.s32.totalorder %s26, 1
      %p86 = scmp.ne.s32.totalorder %s81, %s83
      %p87 = scmp.eq.s32.totalorder %s26, 0
      %p88 = por %p86, %p87
      %p89 = scmp.ne.s32.totalorder %s81, %s83
      %p90 = scmp.eq.s32.totalorder %s31, 1
      %p91 = por %p89, %p90
      %p92 = scmp.ne.s32.totalorder %s83, %s84
      %p93 = scmp.eq.s32.totalorder %s31, 0
      %p94 = por %p92, %p93
      %p95 = scmp.ne.s32.totalorder %s83, %s84
      %p96 = scmp.eq.s32.totalorder %s32, 1
      %p97 = por %p95, %p96
      %p99 = scmp.ne.s32.totalorder %s84, %s98
      %p100 = scmp.eq.s32.totalorder %s32, 0
      %p101 = por %p99, %p100
      %s103 = sadd.s32 %s102, 1
      %p106 = scmp.eq.s32.totalorder %s26, 1
      %p107 = scmp.ne.s32.totalorder %s102, %s104
      %p108 = scmp.eq.s32.totalorder %s26, 0
      %p109 = por %p107, %p108
      %p110 = scmp.ne.s32.totalorder %s102, %s104
      %p111 = scmp.eq.s32.totalorder %s31, 1
      %p112 = por %p110, %p111
      %p113 = scmp.ne.s32.totalorder %s104, %s105
      %p114 = scmp.eq.s32.totalorder %s31, 0
      %p115 = por %p113, %p114
      %p116 = scmp.ne.s32.totalorder %s104, %s105
      %p117 = scmp.eq.s32.totalorder %s32, 1
      %p118 = por %p116, %p117
      %p120 = scmp.ne.s32.totalorder %s105, %s119
      %p121 = scmp.eq.s32.totalorder %s32, 0
      %p122 = por %p120, %p121
      %s124 = sadd.s32 %s123, 1
      %p127 = scmp.eq.s32.totalorder %s26, 1
      %p128 = scmp.ne.s32.totalorder %s123, %s125
      %p129 = scmp.eq.s32.totalorder %s26, 0
      %p130 = por %p128, %p129
      %p131 = scmp.ne.s32.totalorder %s123, %s125
      %p132 = scmp.eq.s32.totalorder %s31, 1
      %p133 = por %p131, %p132
      %p134 = scmp.ne.s32.totalorder %s125, %s126
      %p135 = scmp.eq.s32.totalorder %s31, 0
      %p136 = por %p134, %p135
      %p137 = scmp.ne.s32.totalorder %s125, %s126
      %p138 = scmp.eq.s32.totalorder %s32, 1
      %p139 = por %p137, %p138
      %p141 = scmp.ne.s32.totalorder %s126, %s140
      %p142 = scmp.eq.s32.totalorder %s32, 0
      %p143 = por %p141, %p142
      %s145 = sadd.s32 %s144, 1
      %p148 = scmp.eq.s32.totalorder %s26, 1
      %p149 = scmp.ne.s32.totalorder %s144, %s146
      %p150 = scmp.eq.s32.totalorder %s26, 0
      %p151 = por %p149, %p150
      %p152 = scmp.ne.s32.totalorder %s144, %s146
      %p153 = scmp.eq.s32.totalorder %s31, 1
      %p154 = por %p152, %p153
      %p155 = scmp.ne.s32.totalorder %s146, %s147
      %p156 = scmp.eq.s32.totalorder %s31, 0
      %p157 = por %p155, %p156
      %p158 = scmp.ne.s32.totalorder %s146, %s147
      %p159 = scmp.eq.s32.totalorder %s32, 1
      %p160 = por %p158, %p159
      %p162 = scmp.ne.s32.totalorder %s147, %s161
      %p163 = scmp.eq.s32.totalorder %s32, 0
      %p164 = por %p162, %p163
      %s166 = sadd.s32 %s165, 1
      %p169 = scmp.eq.s32.totalorder %s26, 1
      %p170 = scmp.ne.s32.totalorder %s165, %s167
      %p171 = scmp.eq.s32.totalorder %s26, 0
      %p172 = por %p170, %p171
      %p173 = scmp.ne.s32.totalorder %s165, %s167
      %p174 = scmp.eq.s32.totalorder %s31, 1
      %p175 = por %p173, %p174
      %p176 = scmp.ne.s32.totalorder %s167, %s168
      %p177 = scmp.eq.s32.totalorder %s31, 0
      %p178 = por %p176, %p177
      %p179 = scmp.ne.s32.totalorder %s167, %s168
      %p180 = scmp.eq.s32.totalorder %s32, 1
      %p181 = por %p179, %p180
      %p183 = scmp.ne.s32.totalorder %s168, %s182
      %p184 = scmp.eq.s32.totalorder %s32, 0
      %p185 = por %p183, %p184
      %s187 = sadd.s32 %s186, 1
      %p190 = scmp.eq.s32.totalorder %s26, 1
      %p191 = scmp.ne.s32.totalorder %s186, %s188
      %p192 = scmp.eq.s32.totalorder %s26, 0
      %p193 = por %p191, %p192
      %p194 = scmp.ne.s32.totalorder %s186, %s188
      %p195 = scmp.eq.s32.totalorder %s31, 1
      %p196 = por %p194, %p195
      %p197 = scmp.ne.s32.totalorder %s188, %s189
      %p198 = scmp.eq.s32.totalorder %s31, 0
      %p199 = por %p197, %p198
      %p200 = scmp.ne.s32.totalorder %s188, %s189
      %p201 = scmp.eq.s32.totalorder %s32, 1
      %p202 = por %p200, %p201
      %p204 = scmp.ne.s32.totalorder %s189, %s203
      %p205 = scmp.eq.s32.totalorder %s32, 0
      %p206 = por %p204, %p205
      %s208 = sadd.s32 %s207, 1
      %p211 = scmp.eq.s32.totalorder %s26, 1
      %p212 = scmp.ne.s32.totalorder %s207, %s209
      %p213 = scmp.eq.s32.totalorder %s26, 0
      %p214 = por %p212, %p213
      %p215 = scmp.ne.s32.totalorder %s207, %s209
      %p216 = scmp.eq.s32.totalorder %s31, 1
      %p217 = por %p215, %p216
      %p218 = scmp.ne.s32.totalorder %s209, %s210
      %p219 = scmp.eq.s32.totalorder %s31, 0
      %p220 = por %p218, %p219
      %p221 = scmp.ne.s32.totalorder %s209, %s210
      %p222 = scmp.eq.s32.totalorder %s32, 1
      %p223 = por %p221, %p222
      %p225 = scmp.ne.s32.totalorder %s210, %s224
      %p226 = scmp.eq.s32.totalorder %s32, 0
      %p227 = por %p225, %p226
      %s229 = sadd.s32 %s228, 1
      %p232 = scmp.eq.s32.totalorder %s26, 1
      %p233 = scmp.ne.s32.totalorder %s228, %s230
      %p234 = scmp.eq.s32.totalorder %s26, 0
      %p235 = por %p233, %p234
      %p236 = scmp.ne.s32.totalorder %s228, %s230
      %p237 = scmp.eq.s32.totalorder %s31, 1
      %p238 = por %p236, %p237
      %p239 = scmp.ne.s32.totalorder %s230, %s231
      %p240 = scmp.eq.s32.totalorder %s31, 0
      %p241 = por %p239, %p240
      %p242 = scmp.ne.s32.totalorder %s230, %s231
      %p243 = scmp.eq.s32.totalorder %s32, 1
      %p244 = por %p242, %p243
      %p246 = scmp.ne.s32.totalorder %s231, %s245
      %p247 = scmp.eq.s32.totalorder %s32, 0
      %p248 = por %p246, %p247
      %s250 = sadd.s32 %s249, 1
      %p253 = scmp.eq.s32.totalorder %s26, 1
      %p254 = scmp.ne.s32.totalorder %s249, %s251
      %p255 = scmp.eq.s32.totalorder %s26, 0
      %p256 = por %p254, %p255
      %p257 = scmp.ne.s32.totalorder %s249, %s251
      %p258 = scmp.eq.s32.totalorder %s31, 1
      %p259 = por %p257, %p258
      %p260 = scmp.ne.s32.totalorder %s251, %s252
      %p261 = scmp.eq.s32.totalorder %s31, 0
      %p262 = por %p260, %p261
      %p263 = scmp.ne.s32.totalorder %s251, %s252
      %p264 = scmp.eq.s32.totalorder %s32, 1
      %p265 = por %p263, %p264
      %p267 = scmp.ne.s32.totalorder %s252, %s266
      %p268 = scmp.eq.s32.totalorder %s32, 0
      %p269 = por %p267, %p268
      %s271 = sadd.s32 %s270, 1
      %p274 = scmp.eq.s32.totalorder %s26, 1
      %p275 = scmp.ne.s32.totalorder %s270, %s272
      %p276 = scmp.eq.s32.totalorder %s26, 0
      %p277 = por %p275, %p276
      %p278 = scmp.ne.s32.totalorder %s270, %s272
      %p279 = scmp.eq.s32.totalorder %s31, 1
      %p280 = por %p278, %p279
      %p281 = scmp.ne.s32.totalorder %s272, %s273
      %p282 = scmp.eq.s32.totalorder %s31, 0
      %p283 = por %p281, %p282
      %p284 = scmp.ne.s32.totalorder %s272, %s273
      %p285 = scmp.eq.s32.totalorder %s32, 1
      %p286 = por %p284, %p285
      %p288 = scmp.ne.s32.totalorder %s273, %s287
      %p289 = scmp.eq.s32.totalorder %s32, 0
      %p290 = por %p288, %p289
      %s292 = sadd.s32 %s291, 1
      %p295 = scmp.eq.s32.totalorder %s26, 1
      %p296 = scmp.ne.s32.totalorder %s291, %s293
      %p297 = scmp.eq.s32.totalorder %s26, 0
      %p298 = por %p296, %p297
      %p299 = scmp.ne.s32.totalorder %s291, %s293
      %p300 = scmp.eq.s32.totalorder %s31, 1
      %p301 = por %p299, %p300
      %p302 = scmp.ne.s32.totalorder %s293, %s294
      %p303 = scmp.eq.s32.totalorder %s31, 0
      %p304 = por %p302, %p303
      %p305 = scmp.ne.s32.totalorder %s293, %s294
      %p306 = scmp.eq.s32.totalorder %s32, 1
      %p307 = por %p305, %p306
      %p309 = scmp.ne.s32.totalorder %s294, %s308
      %p310 = scmp.eq.s32.totalorder %s32, 0
      %p311 = por %p309, %p310
      %s313 = sadd.s32 %s312, 1
      %p316 = scmp.eq.s32.totalorder %s26, 1
      %p317 = scmp.ne.s32.totalorder %s312, %s314
      %p318 = scmp.eq.s32.totalorder %s26, 0
      %p319 = por %p317, %p318
      %p320 = scmp.ne.s32.totalorder %s312, %s314
      %p321 = scmp.eq.s32.totalorder %s31, 1
      %p322 = por %p320, %p321
      %p323 = scmp.ne.s32.totalorder %s314, %s315
      %p324 = scmp.eq.s32.totalorder %s31, 0
      %p325 = por %p323, %p324
      %p326 = scmp.ne.s32.totalorder %s314, %s315
      %p327 = scmp.eq.s32.totalorder %s32, 1
      %p328 = por %p326, %p327
      %p330 = scmp.ne.s32.totalorder %s315, %s329
      %p331 = scmp.eq.s32.totalorder %s32, 0
      %p332 = por %p330, %p331
      %s334 = sadd.s32 %s333, 1
      %p337 = scmp.eq.s32.totalorder %s26, 1
      %p338 = scmp.ne.s32.totalorder %s333, %s335
      %p339 = scmp.eq.s32.totalorder %s26, 0
      %p340 = por %p338, %p339
      %p341 = scmp.ne.s32.totalorder %s333, %s335
      %p342 = scmp.eq.s32.totalorder %s31, 1
      %p343 = por %p341, %p342
      %p344 = scmp.ne.s32.totalorder %s335, %s336
      %p345 = scmp.eq.s32.totalorder %s31, 0
      %p346 = por %p344, %p345
      %p347 = scmp.ne.s32.totalorder %s335, %s336
      %p348 = scmp.eq.s32.totalorder %s32, 1
      %p349 = por %p347, %p348
      %p351 = scmp.ne.s32.totalorder %s336, %s350
      %p352 = scmp.eq.s32.totalorder %s32, 0
      %p353 = por %p351, %p352
      %s355 = sadd.s32 %s354, 1
      %p358 = scmp.eq.s32.totalorder %s26, 1
      %p359 = scmp.ne.s32.totalorder %s354, %s356
      %p360 = scmp.eq.s32.totalorder %s26, 0
      %p361 = por %p359, %p360
      %p362 = scmp.ne.s32.totalorder %s354, %s356
      %p363 = scmp.eq.s32.totalorder %s31, 1
      %p364 = por %p362, %p363
      %p365 = scmp.ne.s32.totalorder %s356, %s357
      %p366 = scmp.eq.s32.totalorder %s31, 0
      %p367 = por %p365, %p366
      %p368 = scmp.ne.s32.totalorder %s356, %s357
      %p369 = scmp.eq.s32.totalorder %s32, 1
      %p370 = por %p368, %p369
      %p372 = scmp.ne.s32.totalorder %s357, %s371
      %p373 = scmp.eq.s32.totalorder %s32, 0
      %p374 = por %p372, %p373
      %s376 = sadd.s32 %s375, 1
      %p379 = scmp.eq.s32.totalorder %s26, 1
      %p380 = scmp.ne.s32.totalorder %s375, %s377
      %p381 = scmp.eq.s32.totalorder %s26, 0
      %p382 = por %p380, %p381
      %p383 = scmp.ne.s32.totalorder %s375, %s377
      %p384 = scmp.eq.s32.totalorder %s31, 1
      %p385 = por %p383, %p384
      %p386 = scmp.ne.s32.totalorder %s377, %s378
      %p387 = scmp.eq.s32.totalorder %s31, 0
      %p388 = por %p386, %p387
      %p389 = scmp.ne.s32.totalorder %s377, %s378
      %p390 = scmp.eq.s32.totalorder %s32, 1
      %p391 = por %p389, %p390
      %p393 = scmp.ne.s32.totalorder %s378, %s392
      %p394 = scmp.eq.s32.totalorder %s32, 0
      %p395 = por %p393, %p394
      %s396 = ssub.s32 %s26, %s33
      %p397 = scmp.eq.s32.totalorder %s396, 0
      %s399 = sadd.s32 %s398, 1
      %s400 = scalar_select %p397, %s398, %s399
      %p403 = pneg %p397
      %p404 = scmp.eq.s32.totalorder %s26, 1
      %p405 = por %p403, %p404
      %p406 = scmp.ne.s32.totalorder %s398, %s401
      %p407 = scmp.eq.s32.totalorder %s26, 0
      %p408 = por %p406, %p407
      %p409 = scmp.ne.s32.totalorder %s398, %s401
      %p410 = scmp.eq.s32.totalorder %s31, 1
      %p411 = por %p409, %p410
      %p412 = scmp.ne.s32.totalorder %s401, %s402
      %p413 = scmp.eq.s32.totalorder %s31, 0
      %p414 = por %p412, %p413
      %p415 = scmp.ne.s32.totalorder %s401, %s402
      %p416 = scmp.eq.s32.totalorder %s32, 1
      %p417 = por %p415, %p416
      %p419 = scmp.ne.s32.totalorder %s402, %s418
      %p420 = scmp.eq.s32.totalorder %s32, 0
      %p421 = por %p419, %p420
      %p422 = scmp.le.s32.totalorder 1, %s26
      %p423 = scmp.lt.s32.totalorder %s26, 3
      %p424 = pnand %p422, %p423
      %p425 = pneg %p424
      // Predicated region
      $region9: #{tpu_custom_call.1} parent=5 // pred_check
        _
      $region10: #{tpu_custom_call.1} parent=5 // pred_check_branch
        %427 = sbr.rel (%p424) target = $region12
      $region11: #{tpu_custom_call.1} parent=5 // pred_region
        %s428 = ssub.s32 %s26, 1
        // Predicated region
        $region13: #{tpu_custom_call.1} parent=11 // pred_check
          %p429 = pneg %p73
        $region14: #{tpu_custom_call.1} parent=11 // pred_check_branch
          %431 = sbr.rel (%p429) target = $region16
        $region15: #{tpu_custom_call.1} parent=11 // pred_region
          _
        $region16: #{tpu_custom_call.1} parent=11 // pred_fallthru
          _
        // Predicated region
        $region17: #{tpu_custom_call.1} parent=11 // pred_check
          %p432 = pneg %p94
        $region18: #{tpu_custom_call.1} parent=11 // pred_check_branch
          %434 = sbr.rel (%p432) target = $region20
        $region19: #{tpu_custom_call.1} parent=11 // pred_region
          _
        $region20: #{tpu_custom_call.1} parent=11 // pred_fallthru
          _
        // Predicated region
        $region21: #{tpu_custom_call.1} parent=11 // pred_check
          %p435 = pneg %p115
        $region22: #{tpu_custom_call.1} parent=11 // pred_check_branch
          %437 = sbr.rel (%p435) target = $region24
        $region23: #{tpu_custom_call.1} parent=11 // pred_region
          _
        $region24: #{tpu_custom_call.1} parent=11 // pred_fallthru
          _
        // Predicated region
        $region25: #{tpu_custom_call.1} parent=11 // pred_check
          %p438 = pneg %p136
        $region26: #{tpu_custom_call.1} parent=11 // pred_check_branch
          %440 = sbr.rel (%p438) target = $region28
        $region27: #{tpu_custom_call.1} parent=11 // pred_region
          _
        $region28: #{tpu_custom_call.1} parent=11 // pred_fallthru
          _
        // Predicated region
        $region29: #{tpu_custom_call.1} parent=11 // pred_check
          %p441 = pneg %p157
        $region30: #{tpu_custom_call.1} parent=11 // pred_check_branch
          %443 = sbr.rel (%p441) target = $region32
        $region31: #{tpu_custom_call.1} parent=11 // pred_region
          _
        $region32: #{tpu_custom_call.1} parent=11 // pred_fallthru
          _
        // Predicated region
        $region33: #{tpu_custom_call.1} parent=11 // pred_check
          %p444 = pneg %p178
        $region34: #{tpu_custom_call.1} parent=11 // pred_check_branch
          %446 = sbr.rel (%p444) target = $region36
        $region35: #{tpu_custom_call.1} parent=11 // pred_region
          _
        $region36: #{tpu_custom_call.1} parent=11 // pred_fallthru
          _
        // Predicated region
        $region37: #{tpu_custom_call.1} parent=11 // pred_check
          %p447 = pneg %p199
        $region38: #{tpu_custom_call.1} parent=11 // pred_check_branch
          %449 = sbr.rel (%p447) target = $region40
        $region39: #{tpu_custom_call.1} parent=11 // pred_region
          _
        $region40: #{tpu_custom_call.1} parent=11 // pred_fallthru
          _
        // Predicated region
        $region41: #{tpu_custom_call.1} parent=11 // pred_check
          %p450 = pneg %p220
        $region42: #{tpu_custom_call.1} parent=11 // pred_check_branch
          %452 = sbr.rel (%p450) target = $region44
        $region43: #{tpu_custom_call.1} parent=11 // pred_region
          _
        $region44: #{tpu_custom_call.1} parent=11 // pred_fallthru
          _
        // Predicated region
        $region45: #{tpu_custom_call.1} parent=11 // pred_check
          %p453 = pneg %p241
        $region46: #{tpu_custom_call.1} parent=11 // pred_check_branch
          %455 = sbr.rel (%p453) target = $region48
        $region47: #{tpu_custom_call.1} parent=11 // pred_region
          _
        $region48: #{tpu_custom_call.1} parent=11 // pred_fallthru
          _
        // Predicated region
        $region49: #{tpu_custom_call.1} parent=11 // pred_check
          %p456 = pneg %p262
        $region50: #{tpu_custom_call.1} parent=11 // pred_check_branch
          %458 = sbr.rel (%p456) target = $region52
        $region51: #{tpu_custom_call.1} parent=11 // pred_region
          _
        $region52: #{tpu_custom_call.1} parent=11 // pred_fallthru
          _
        // Predicated region
        $region53: #{tpu_custom_call.1} parent=11 // pred_check
          %p459 = pneg %p283
        $region54: #{tpu_custom_call.1} parent=11 // pred_check_branch
          %461 = sbr.rel (%p459) target = $region56
        $region55: #{tpu_custom_call.1} parent=11 // pred_region
          _
        $region56: #{tpu_custom_call.1} parent=11 // pred_fallthru
          _
        // Predicated region
        $region57: #{tpu_custom_call.1} parent=11 // pred_check
          %p462 = pneg %p304
        $region58: #{tpu_custom_call.1} parent=11 // pred_check_branch
          %464 = sbr.rel (%p462) target = $region60
        $region59: #{tpu_custom_call.1} parent=11 // pred_region
          _
        $region60: #{tpu_custom_call.1} parent=11 // pred_fallthru
          _
        // Predicated region
        $region61: #{tpu_custom_call.1} parent=11 // pred_check
          %p465 = pneg %p325
        $region62: #{tpu_custom_call.1} parent=11 // pred_check_branch
          %467 = sbr.rel (%p465) target = $region64
        $region63: #{tpu_custom_call.1} parent=11 // pred_region
          _
        $region64: #{tpu_custom_call.1} parent=11 // pred_fallthru
          _
        // Predicated region
        $region65: #{tpu_custom_call.1} parent=11 // pred_check
          %p468 = pneg %p346
        $region66: #{tpu_custom_call.1} parent=11 // pred_check_branch
          %470 = sbr.rel (%p468) target = $region68
        $region67: #{tpu_custom_call.1} parent=11 // pred_region
          _
        $region68: #{tpu_custom_call.1} parent=11 // pred_fallthru
          _
        // Predicated region
        $region69: #{tpu_custom_call.1} parent=11 // pred_check
          %p471 = pneg %p367
        $region70: #{tpu_custom_call.1} parent=11 // pred_check_branch
          %473 = sbr.rel (%p471) target = $region72
        $region71: #{tpu_custom_call.1} parent=11 // pred_region
          _
        $region72: #{tpu_custom_call.1} parent=11 // pred_fallthru
          _
        // Predicated region
        $region73: #{tpu_custom_call.1} parent=11 // pred_check
          %p474 = pneg %p388
        $region74: #{tpu_custom_call.1} parent=11 // pred_check_branch
          %476 = sbr.rel (%p474) target = $region76
        $region75: #{tpu_custom_call.1} parent=11 // pred_region
          _
        $region76: #{tpu_custom_call.1} parent=11 // pred_fallthru
          _
      $region12: #{tpu_custom_call.1} parent=5 // pred_fallthru
        _
      %p477 = scmp.lt.s32.totalorder %s26, 2
      // Predicated region
      $region77: #{tpu_custom_call.1} parent=5 // pred_check
        %p478 = pneg %p477
      $region78: #{tpu_custom_call.1} parent=5 // pred_check_branch
        %480 = sbr.rel (%p478) target = $region80
      $region79: #{tpu_custom_call.1} parent=5 // pred_region
        // Predicated region
        $region81: #{tpu_custom_call.1} parent=79 // pred_check
          %p481 = pneg %p46
        $region82: #{tpu_custom_call.1} parent=79 // pred_check_branch
          %483 = sbr.rel (%p481) target = $region84
        $region83: #{tpu_custom_call.1} parent=79 // pred_region
          %p484 = scmp.lt.s32.totalorder %s26, 1
          %s485 = scalar_select %p484, %s26, 1
          %s486 = smul.addr %s485, 16
          %s487 = smul.addr %s486, 8
          %s488 = scalar_lea.vmem %s0, %s487
        $region84: #{tpu_custom_call.1} parent=79 // pred_fallthru
          _
      $region80: #{tpu_custom_call.1} parent=5 // pred_fallthru
        _
      %p489 = scmp.le.s32.totalorder 1, %s26
      %p490 = scmp.lt.s32.totalorder %s26, 3
      %p491 = pnand %p489, %p490
      %p492 = pneg %p491
      // Predicated region
      $region85: #{tpu_custom_call.1} parent=5 // pred_check
        _
      $region86: #{tpu_custom_call.1} parent=5 // pred_check_branch
        %494 = sbr.rel (%p491) target = $region88
      $region87: #{tpu_custom_call.1} parent=5 // pred_region
        %s495 = ssub.s32 %s26, 1
        %p496 = scmp.lt.s32.totalorder %s31, 1
        %s497 = scalar_select %p496, %s31, 1
        %s498 = smul.addr %s497, 16
        %s499 = smul.addr %s498, 8
        %s500 = scalar_lea.vmem %s0, %s499
        %p501 = pneg %p52
        %p502 = pneg %p49
        %p503 = pneg %p73
        %p504 = pneg %p70
        %p505 = pneg %p94
        %p506 = pneg %p91
        %p507 = pneg %p115
        %p508 = pneg %p112
        %p509 = pneg %p136
        %p510 = pneg %p133
        %p511 = pneg %p157
        %p512 = pneg %p154
        %p513 = pneg %p178
        %p514 = pneg %p175
        %p515 = pneg %p199
        %p516 = pneg %p196
        %p517 = pneg %p220
        %p518 = pneg %p217
        %p519 = pneg %p241
        %p520 = pneg %p238
        %p521 = pneg %p262
        %p522 = pneg %p259
        %p523 = pneg %p283
        %p524 = pneg %p280
        %p525 = pneg %p304
        %p526 = pneg %p301
        %p527 = pneg %p325
        %p528 = pneg %p322
        %p529 = pneg %p346
        %p530 = pneg %p343
        %p531 = pneg %p367
        %p532 = pneg %p364
        %p533 = pneg %p388
        %p534 = pneg %p385
        %p535 = pneg %p414
        %p536 = pneg %p411
        %s537 = sand.u32 %s401, 1
        %s538 = scalar_lea.sflag [#allocation3], %s537
        %s539 = sand.u32 %s401, 1
        %s540 = smul.addr %s539, 128
        %s541 = scalar_lea.vmem [#allocation2], %s540
        %p542 = scmp.lt.s32.totalorder %s31, 1
        %s543 = scalar_select %p542, %s31, 1
        %s544 = smul.addr %s543, 16
        %s545 = smul.addr %s544, 8
        %s546 = scalar_lea.vmem %s0, %s545
        %v548 = vld [vmem:[%s546] sm:$0xff]
        %v549 = vld [vmem:[%s546 + $0x8] sm:$0xff]
        %v550 = vld [vmem:[%s546 + $0x10] sm:$0xff]
        %v551 = vld [vmem:[%s546 + $0x18] sm:$0xff]
        %v552 = vld [vmem:[%s546 + $0x20] sm:$0xff]
        %v553 = vld [vmem:[%s546 + $0x28] sm:$0xff]
        %v554 = vld [vmem:[%s546 + $0x30] sm:$0xff]
        %v555 = vld [vmem:[%s546 + $0x38] sm:$0xff]
        %v556 = vld [vmem:[%s546 + $0x40] sm:$0xff]
        %v557 = vld [vmem:[%s546 + $0x48] sm:$0xff]
        %v558 = vld [vmem:[%s546 + $0x50] sm:$0xff]
        %v559 = vld [vmem:[%s546 + $0x58] sm:$0xff]
        %v560 = vld [vmem:[%s546 + $0x60] sm:$0xff]
        %v561 = vld [vmem:[%s546 + $0x68] sm:$0xff]
        %v562 = vld [vmem:[%s546 + $0x70] sm:$0xff]
        %v563 = vld [vmem:[%s546 + $0x78] sm:$0xff]
        %v564 = vpack.c.bf16 %v549, %v548
        %v565 = vpack.c.bf16 %v551, %v550
        %v566 = vpack.c.bf16 %v553, %v552
        %v567 = vpack.c.bf16 %v555, %v554
        %v568 = vpack.c.bf16 %v557, %v556
        %v569 = vpack.c.bf16 %v559, %v558
        %v570 = vpack.c.bf16 %v561, %v560
        %v571 = vpack.c.bf16 %v563, %v562
        %v572 = vlaneseq
        %v573 = vshrl.u32 %v572, 7
        %v574 = vadd.s32 %v573, 8
        %v575 = vadd.s32 %v573, 16
        %v576 = vadd.s32 %v573, 24
        %v577 = vadd.s32 %v573, 32
        %v578 = vadd.s32 %v573, 40
        %v579 = vadd.s32 %v573, 48
        %v580 = vadd.s32 %v573, 56
        %v581 = vadd.s32 %v573, 64
        %v582 = vadd.s32 %v573, 72
        %v583 = vadd.s32 %v573, 80
        %v584 = vadd.s32 %v573, 88
        %v585 = vadd.s32 %v573, 96
        %v586 = vadd.s32 %v573, 104
        %v587 = vadd.s32 %v573, 112
        %v588 = vadd.s32 %v573, 120
        %v589 = vlaneseq
        %v590 = vand.u32 %v589, 127
        %vm591 = vcmp.gt.s32.totalorder %v590, %v573
        %vm592 = vcmp.gt.s32.totalorder %v590, %v574
        %vm593 = vcmp.gt.s32.totalorder %v590, %v575
        %vm594 = vcmp.gt.s32.totalorder %v590, %v576
        %vm595 = vcmp.gt.s32.totalorder %v590, %v577
        %vm596 = vcmp.gt.s32.totalorder %v590, %v578
        %vm597 = vcmp.gt.s32.totalorder %v590, %v579
        %vm598 = vcmp.gt.s32.totalorder %v590, %v580
        %vm599 = vcmp.gt.s32.totalorder %v590, %v581
        %vm600 = vcmp.gt.s32.totalorder %v590, %v582
        %vm601 = vcmp.gt.s32.totalorder %v590, %v583
        %vm602 = vcmp.gt.s32.totalorder %v590, %v584
        %vm603 = vcmp.gt.s32.totalorder %v590, %v585
        %vm604 = vcmp.gt.s32.totalorder %v590, %v586
        %vm605 = vcmp.gt.s32.totalorder %v590, %v587
        %vm606 = vcmp.gt.s32.totalorder %v590, %v588
        %v607 = vsel %vm591, -1e+30, 0.0
        %v608 = vsel %vm592, -1e+30, 0.0
        %v609 = vsel %vm593, -1e+30, 0.0
        %v610 = vsel %vm594, -1e+30, 0.0
        %v611 = vsel %vm595, -1e+30, 0.0
        %v612 = vsel %vm596, -1e+30, 0.0
        %v613 = vsel %vm597, -1e+30, 0.0
        %v614 = vsel %vm598, -1e+30, 0.0
        %v615 = vsel %vm599, -1e+30, 0.0
        %v616 = vsel %vm600, -1e+30, 0.0
        %v617 = vsel %vm601, -1e+30, 0.0
        %v618 = vsel %vm602, -1e+30, 0.0
        %v619 = vsel %vm603, -1e+30, 0.0
        %v620 = vsel %vm604, -1e+30, 0.0
        %v621 = vsel %vm605, -1e+30, 0.0
        %v622 = vsel %vm606, -1e+30, 0.0
        %v623 = vld [vmem:[%s1] sm:$0xf]
        %v624 = vld [vmem:[%s1 + $0x4] sm:$0xf]
        %v625 = vld [vmem:[%s1 + $0x8] sm:$0xf]
        %v626 = vld [vmem:[%s1 + $0xc] sm:$0xf]
        %v627 = vld [vmem:[%s1 + $0x10] sm:$0xf]
        %v628 = vld [vmem:[%s1 + $0x14] sm:$0xf]
        %v629 = vld [vmem:[%s1 + $0x18] sm:$0xf]
        %v630 = vld [vmem:[%s1 + $0x1c] sm:$0xf]
        %v631 = vld [vmem:[%s1 + $0x20] sm:$0xf]
        %v632 = vld [vmem:[%s1 + $0x24] sm:$0xf]
        %v633 = vld [vmem:[%s1 + $0x28] sm:$0xf]
        %v634 = vld [vmem:[%s1 + $0x2c] sm:$0xf]
        %v635 = vld [vmem:[%s1 + $0x30] sm:$0xf]
        %v636 = vld [vmem:[%s1 + $0x34] sm:$0xf]
        %v637 = vld [vmem:[%s1 + $0x38] sm:$0xf]
        %v638 = vld [vmem:[%s1 + $0x3c] sm:$0xf]
        %v639 = vld [vmem:[%s2] sm:$0x1]
        %v641 = vlaneseq
        %v642 = vshrl.u32 %v641, 7
        %v643 = vsub.s32 0, %v642
        %v644 = vrot.slane %v639, %v643
        %v662 = vunpack.c.l.b16 %v623
        %v663 = vunpack.c.l.b16 %v624
        %v664 = vunpack.c.l.b16 %v625
        %v665 = vunpack.c.l.b16 %v626
        %v666 = vunpack.c.l.b16 %v627
        %v667 = vunpack.c.l.b16 %v628
        %v668 = vunpack.c.l.b16 %v629
        %v669 = vunpack.c.l.b16 %v630
        %v670 = vunpack.c.l.b16 %v631
        %v671 = vunpack.c.l.b16 %v632
        %v672 = vunpack.c.l.b16 %v633
        %v673 = vunpack.c.l.b16 %v634
        %v674 = vunpack.c.l.b16 %v635
        %v675 = vunpack.c.l.b16 %v636
        %v676 = vunpack.c.l.b16 %v637
        %v677 = vunpack.c.l.b16 %v638
        %v678 = vpack.c.b16 %v663, %v662
        %v679 = vpack.c.b16 %v665, %v664
        %v680 = vpack.c.b16 %v667, %v666
        %v681 = vpack.c.b16 %v669, %v668
        %v682 = vpack.c.b16 %v671, %v670
        %v683 = vpack.c.b16 %v673, %v672
        %v684 = vpack.c.b16 %v675, %v674
        %v685 = vpack.c.b16 %v677, %v676
        %694 = vmatprep.subr.bf16.mxu0 0
        %695 = vmatpush1.bf16.msra.mxu0 %v678
        %696 = vmatprep.subr.bf16.mxu0 0
        %697 = vmatpush1.bf16.msra.mxu0 %v679
        %698 = vmatprep.subr.bf16.mxu0 0
        %699 = vmatpush1.bf16.msra.mxu0 %v680
        %700 = vmatprep.subr.bf16.mxu0 0
        %701 = vmatpush1.bf16.msra.mxu0 %v681
        %702 = vmatprep.subr.bf16.mxu0 0
        %703 = vmatpush1.bf16.msra.mxu0 %v682
        %704 = vmatprep.subr.bf16.mxu0 0
        %705 = vmatpush1.bf16.msra.mxu0 %v683
        %706 = vmatprep.subr.bf16.mxu0 0
        %707 = vmatpush1.bf16.msra.mxu0 %v684
        %708 = vmatprep.subr.bf16.mxu0 0
        %709 = vmatpush1.bf16.msra.mxu0 %v685
        %710 = vmatprep.subr.bf16.mxu0 0
        %711 = vmatpush1.bf16.msra.mxu0 0
        %712 = vmatprep.subr.bf16.mxu0 0
        %713 = vmatpush1.bf16.msra.mxu0 0
        %714 = vmatprep.subr.bf16.mxu0 0
        %715 = vmatpush1.bf16.msra.mxu0 0
        %716 = vmatprep.subr.bf16.mxu0 0
        %717 = vmatpush1.bf16.msra.mxu0 0
        %718 = vmatprep.subr.bf16.mxu0 0
        %719 = vmatpush1.bf16.msra.mxu0 0
        %720 = vmatprep.subr.bf16.mxu0 0
        %721 = vmatpush1.bf16.msra.mxu0 0
        %722 = vmatprep.subr.bf16.mxu0 0
        %723 = vmatpush1.bf16.msra.mxu0 0
        %724 = vmatprep.subr.bf16.mxu0 0
        %725 = vmatpush1.bf16.msra.mxu0 0
        %726 = vmatprep.mubr.bf16.mxu0 0
        %727 = vmatmul.mubr.bf16.gmra.mrb[0].mxu0 %v564
        %v728 = vpop.f32.mrb[0].mxu0
        %v729 = vadd.f32 %v644, %v728
        %v730 = vpop.f32.mrb[0].mxu0
        %v731 = vpop.f32.mrb[0].mxu0
        %v732 = vadd.f32 %v644, %v731
        %v733 = vpop.f32.mrb[0].mxu0
        %734 = vmatprep.mubr.bf16.mxu0 0
        %735 = vmatmul.mubr.bf16.gmra.mrb[0].mxu0 %v565
        %v736 = vpop.f32.mrb[0].mxu0
        %v737 = vadd.f32 %v644, %v736
        %v738 = vpop.f32.mrb[0].mxu0
        %v739 = vpop.f32.mrb[0].mxu0
        %v740 = vadd.f32 %v644, %v739
        %v741 = vpop.f32.mrb[0].mxu0
        %742 = vmatprep.mubr.bf16.mxu0 0
        %743 = vmatmul.mubr.bf16.gmra.mrb[0].mxu0 %v566
        %v744 = vpop.f32.mrb[0].mxu0
        %v745 = vadd.f32 %v644, %v744
        %v746 = vpop.f32.mrb[0].mxu0
        %v747 = vpop.f32.mrb[0].mxu0
        %v748 = vadd.f32 %v644, %v747
        %v749 = vpop.f32.mrb[0].mxu0
        %750 = vmatprep.mubr.bf16.mxu0 0
        %751 = vmatmul.mubr.bf16.gmra.mrb[0].mxu0 %v567
        %v752 = vpop.f32.mrb[0].mxu0
        %v753 = vadd.f32 %v644, %v752
        %v754 = vpop.f32.mrb[0].mxu0
        %v755 = vpop.f32.mrb[0].mxu0
        %v756 = vadd.f32 %v644, %v755
        %v757 = vpop.f32.mrb[0].mxu0
        %758 = vmatprep.mubr.bf16.mxu0 0
        %759 = vmatmul.mubr.bf16.gmra.mrb[0].mxu0 %v568
        %v760 = vpop.f32.mrb[0].mxu0
        %v761 = vadd.f32 %v644, %v760
        %v762 = vpop.f32.mrb[0].mxu0
        %v763 = vpop.f32.mrb[0].mxu0
        %v764 = vadd.f32 %v644, %v763
        %v765 = vpop.f32.mrb[0].mxu0
        %766 = vmatprep.mubr.bf16.mxu0 0
        %767 = vmatmul.mubr.bf16.gmra.mrb[0].mxu0 %v569
        %v768 = vpop.f32.mrb[0].mxu0
        %v769 = vadd.f32 %v644, %v768
        %v770 = vpop.f32.mrb[0].mxu0
        %v771 = vpop.f32.mrb[0].mxu0
        %v772 = vadd.f32 %v644, %v771
        %v773 = vpop.f32.mrb[0].mxu0
        %774 = vmatprep.mubr.bf16.mxu0 0
        %775 = vmatmul.mubr.bf16.gmra.mrb[0].mxu0 %v570
        %v776 = vpop.f32.mrb[0].mxu0
        %v777 = vadd.f32 %v644, %v776
        %v778 = vpop.f32.mrb[0].mxu0
        %v779 = vpop.f32.mrb[0].mxu0
        %v780 = vadd.f32 %v644, %v779
        %v781 = vpop.f32.mrb[0].mxu0
        %782 = vmatprep.mubr.bf16.mxu0 0
        %783 = vmatmul.mubr.bf16.gmra.mrb[0].mxu0 %v571
        %v784 = vpop.f32.mrb[0].mxu0
        %v785 = vadd.f32 %v644, %v784
        %v786 = vpop.f32.mrb[0].mxu0
        %v787 = vpop.f32.mrb[0].mxu0
        %v788 = vadd.f32 %v644, %v787
        %v789 = vpop.f32.mrb[0].mxu0
        %790 = vdwg.mxu0
        %v791 = vld [vmem:[%s3] sm:$0xf]
        %v792 = vld [vmem:[%s3 + $0x4] sm:$0xf]
        %v793 = vld [vmem:[%s3 + $0x8] sm:$0xf]
        %v794 = vld [vmem:[%s3 + $0xc] sm:$0xf]
        %v795 = vld [vmem:[%s3 + $0x10] sm:$0xf]
        %v796 = vld [vmem:[%s3 + $0x14] sm:$0xf]
        %v797 = vld [vmem:[%s3 + $0x18] sm:$0xf]
        %v798 = vld [vmem:[%s3 + $0x1c] sm:$0xf]
        %v799 = vld [vmem:[%s3 + $0x20] sm:$0xf]
        %v800 = vld [vmem:[%s3 + $0x24] sm:$0xf]
        %v801 = vld [vmem:[%s3 + $0x28] sm:$0xf]
        %v802 = vld [vmem:[%s3 + $0x2c] sm:$0xf]
        %v803 = vld [vmem:[%s3 + $0x30] sm:$0xf]
        %v804 = vld [vmem:[%s3 + $0x34] sm:$0xf]
        %v805 = vld [vmem:[%s3 + $0x38] sm:$0xf]
        %v806 = vld [vmem:[%s3 + $0x3c] sm:$0xf]
        %v807 = vld [vmem:[%s4] sm:$0x1]
        %v809 = vlaneseq
        %v810 = vshrl.u32 %v809, 7
        %v811 = vsub.s32 0, %v810
        %v812 = vrot.slane %v807, %v811
        %v830 = vunpack.c.l.b16 %v791
        %v831 = vunpack.c.l.b16 %v792
        %v832 = vunpack.c.l.b16 %v793
        %v833 = vunpack.c.l.b16 %v794
        %v834 = vunpack.c.l.b16 %v795
        %v835 = vunpack.c.l.b16 %v796
        %v836 = vunpack.c.l.b16 %v797
        %v837 = vunpack.c.l.b16 %v798
        %v838 = vunpack.c.l.b16 %v799
        %v839 = vunpack.c.l.b16 %v800
        %v840 = vunpack.c.l.b16 %v801
        %v841 = vunpack.c.l.b16 %v802
        %v842 = vunpack.c.l.b16 %v803
        %v843 = vunpack.c.l.b16 %v804
        %v844 = vunpack.c.l.b16 %v805
        %v845 = vunpack.c.l.b16 %v806
        %v846 = vpack.c.b16 %v831, %v830
        %v847 = vpack.c.b16 %v833, %v832
        %v848 = vpack.c.b16 %v835, %v834
        %v849 = vpack.c.b16 %v837, %v836
        %v850 = vpack.c.b16 %v839, %v838
        %v851 = vpack.c.b16 %v841, %v840
        %v852 = vpack.c.b16 %v843, %v842
        %v853 = vpack.c.b16 %v845, %v844
        %862 = vmatprep.subr.bf16.mxu0 0
        %863 = vmatpush1.bf16.msra.mxu0 %v846
        %864 = vmatprep.subr.bf16.mxu0 0
        %865 = vmatpush1.bf16.msra.mxu0 %v847
        %866 = vmatprep.subr.bf16.mxu0 0
        %867 = vmatpush1.bf16.msra.mxu0 %v848
        %868 = vmatprep.subr.bf16.mxu0 0
        %869 = vmatpush1.bf16.msra.mxu0 %v849
        %870 = vmatprep.subr.bf16.mxu0 0
        %871 = vmatpush1.bf16.msra.mxu0 %v850
        %872 = vmatprep.subr.bf16.mxu0 0
        %873 = vmatpush1.bf16.msra.mxu0 %v851
        %874 = vmatprep.subr.bf16.mxu0 0
        %875 = vmatpush1.bf16.msra.mxu0 %v852
        %876 = vmatprep.subr.bf16.mxu0 0
        %877 = vmatpush1.bf16.msra.mxu0 %v853
        %878 = vmatprep.subr.bf16.mxu0 0
        %879 = vmatpush1.bf16.msra.mxu0 0
        %880 = vmatprep.subr.bf16.mxu0 0
        %881 = vmatpush1.bf16.msra.mxu0 0
        %882 = vmatprep.subr.bf16.mxu0 0
        %883 = vmatpush1.bf16.msra.mxu0 0
        %884 = vmatprep.subr.bf16.mxu0 0
        %885 = vmatpush1.bf16.msra.mxu0 0
        %886 = vmatprep.subr.bf16.mxu0 0
        %887 = vmatpush1.bf16.msra.mxu0 0
        %888 = vmatprep.subr.bf16.mxu0 0
        %889 = vmatpush1.bf16.msra.mxu0 0
        %890 = vmatprep.subr.bf16.mxu0 0
        %891 = vmatpush1.bf16.msra.mxu0 0
        %892 = vmatprep.subr.bf16.mxu0 0
        %893 = vmatpush1.bf16.msra.mxu0 0
        %894 = vmatprep.mubr.bf16.mxu0 0
        %895 = vmatmul.mubr.bf16.gmra.mrb[0].mxu0 %v564
        %v896 = vpop.f32.mrb[0].mxu0
        %v897 = vadd.f32 %v812, %v896
        %v898 = vpop.f32.mrb[0].mxu0
        %v899 = vpop.f32.mrb[0].mxu0
        %v900 = vadd.f32 %v812, %v899
        %v901 = vpop.f32.mrb[0].mxu0
        %902 = vmatprep.mubr.bf16.mxu0 0
        %903 = vmatmul.mubr.bf16.gmra.mrb[0].mxu0 %v565
        %v904 = vpop.f32.mrb[0].mxu0
        %v905 = vadd.f32 %v812, %v904
        %v906 = vpop.f32.mrb[0].mxu0
        %v907 = vpop.f32.mrb[0].mxu0
        %v908 = vadd.f32 %v812, %v907
        %v909 = vpop.f32.mrb[0].mxu0
        %910 = vmatprep.mubr.bf16.mxu0 0
        %911 = vmatmul.mubr.bf16.gmra.mrb[0].mxu0 %v566
        %v912 = vpop.f32.mrb[0].mxu0
        %v913 = vadd.f32 %v812, %v912
        %v914 = vpop.f32.mrb[0].mxu0
        %v915 = vpop.f32.mrb[0].mxu0
        %v916 = vadd.f32 %v812, %v915
        %v917 = vpop.f32.mrb[0].mxu0
        %918 = vmatprep.mubr.bf16.mxu0 0
        %919 = vmatmul.mubr.bf16.gmra.mrb[0].mxu0 %v567
        %v920 = vpop.f32.mrb[0].mxu0
        %v921 = vadd.f32 %v812, %v920
        %v922 = vpop.f32.mrb[0].mxu0
        %v923 = vpop.f32.mrb[0].mxu0
        %v924 = vadd.f32 %v812, %v923
        %v925 = vpop.f32.mrb[0].mxu0
        %926 = vmatprep.mubr.bf16.mxu0 0
        %927 = vmatmul.mubr.bf16.gmra.mrb[0].mxu0 %v568
        %v928 = vpop.f32.mrb[0].mxu0
        %v929 = vadd.f32 %v812, %v928
        %v930 = vpop.f32.mrb[0].mxu0
        %v931 = vpop.f32.mrb[0].mxu0
        %v932 = vadd.f32 %v812, %v931
        %v933 = vpop.f32.mrb[0].mxu0
        %934 = vmatprep.mubr.bf16.mxu0 0
        %935 = vmatmul.mubr.bf16.gmra.mrb[0].mxu0 %v569
        %v936 = vpop.f32.mrb[0].mxu0
        %v937 = vadd.f32 %v812, %v936
        %v938 = vpop.f32.mrb[0].mxu0
        %v939 = vpop.f32.mrb[0].mxu0
        %v940 = vadd.f32 %v812, %v939
        %v941 = vpop.f32.mrb[0].mxu0
        %942 = vmatprep.mubr.bf16.mxu0 0
        %943 = vmatmul.mubr.bf16.gmra.mrb[0].mxu0 %v570
        %v944 = vpop.f32.mrb[0].mxu0
        %v945 = vadd.f32 %v812, %v944
        %v946 = vpop.f32.mrb[0].mxu0
        %v947 = vpop.f32.mrb[0].mxu0
        %v948 = vadd.f32 %v812, %v947
        %v949 = vpop.f32.mrb[0].mxu0
        %950 = vmatprep.mubr.bf16.mxu0 0
        %951 = vmatmul.mubr.bf16.gmra.mrb[0].mxu0 %v571
        %v952 = vpop.f32.mrb[0].mxu0
        %v953 = vadd.f32 %v812, %v952
        %v954 = vpop.f32.mrb[0].mxu0
        %v955 = vpop.f32.mrb[0].mxu0
        %v956 = vadd.f32 %v812, %v955
        %v957 = vpop.f32.mrb[0].mxu0
        %958 = vdwg.mxu0
        %v959 = vld [vmem:[%s5] sm:$0xf]
        %v960 = vld [vmem:[%s5 + $0x4] sm:$0xf]
        %v961 = vld [vmem:[%s5 + $0x8] sm:$0xf]
        %v962 = vld [vmem:[%s5 + $0xc] sm:$0xf]
        %v963 = vld [vmem:[%s5 + $0x10] sm:$0xf]
        %v964 = vld [vmem:[%s5 + $0x14] sm:$0xf]
        %v965 = vld [vmem:[%s5 + $0x18] sm:$0xf]
        %v966 = vld [vmem:[%s5 + $0x1c] sm:$0xf]
        %v967 = vld [vmem:[%s5 + $0x20] sm:$0xf]
        %v968 = vld [vmem:[%s5 + $0x24] sm:$0xf]
        %v969 = vld [vmem:[%s5 + $0x28] sm:$0xf]
        %v970 = vld [vmem:[%s5 + $0x2c] sm:$0xf]
        %v971 = vld [vmem:[%s5 + $0x30] sm:$0xf]
        %v972 = vld [vmem:[%s5 + $0x34] sm:$0xf]
        %v973 = vld [vmem:[%s5 + $0x38] sm:$0xf]
        %v974 = vld [vmem:[%s5 + $0x3c] sm:$0xf]
        %v975 = vld [vmem:[%s6] sm:$0x1]
        %v977 = vlaneseq
        %v978 = vshrl.u32 %v977, 7
        %v979 = vsub.s32 0, %v978
        %v980 = vrot.slane %v975, %v979
        %v998 = vunpack.c.l.b16 %v959
        %v999 = vunpack.c.l.b16 %v960
        %v1000 = vunpack.c.l.b16 %v961
        %v1001 = vunpack.c.l.b16 %v962
        %v1002 = vunpack.c.l.b16 %v963
        %v1003 = vunpack.c.l.b16 %v964
        %v1004 = vunpack.c.l.b16 %v965
        %v1005 = vunpack.c.l.b16 %v966
        %v1006 = vunpack.c.l.b16 %v967
        %v1007 = vunpack.c.l.b16 %v968
        %v1008 = vunpack.c.l.b16 %v969
        %v1009 = vunpack.c.l.b16 %v970
        %v1010 = vunpack.c.l.b16 %v971
        %v1011 = vunpack.c.l.b16 %v972
        %v1012 = vunpack.c.l.b16 %v973
        %v1013 = vunpack.c.l.b16 %v974
        %v1014 = vpack.c.b16 %v999, %v998
        %v1015 = vpack.c.b16 %v1001, %v1000
        %v1016 = vpack.c.b16 %v1003, %v1002
        %v1017 = vpack.c.b16 %v1005, %v1004
        %v1018 = vpack.c.b16 %v1007, %v1006
        %v1019 = vpack.c.b16 %v1009, %v1008
        %v1020 = vpack.c.b16 %v1011, %v1010
        %v1021 = vpack.c.b16 %v1013, %v1012
        %1030 = vmatprep.subr.bf16.mxu0 0
        %1031 = vmatpush1.bf16.msra.mxu0 %v1014
        %1032 = vmatprep.subr.bf16.mxu0 0
        %1033 = vmatpush1.bf16.msra.mxu0 %v1015
        %1034 = vmatprep.subr.bf16.mxu0 0
        %1035 = vmatpush1.bf16.msra.mxu0 %v1016
        %1036 = vmatprep.subr.bf16.mxu0 0
        %1037 = vmatpush1.bf16.msra.mxu0 %v1017
        %1038 = vmatprep.subr.bf16.mxu0 0
        %1039 = vmatpush1.bf16.msra.mxu0 %v1018
        %1040 = vmatprep.subr.bf16.mxu0 0
        %1041 = vmatpush1.bf16.msra.mxu0 %v1019
        %1042 = vmatprep.subr.bf16.mxu0 0
        %1043 = vmatpush1.bf16.msra.mxu0 %v1020
        %1044 = vmatprep.subr.bf16.mxu0 0
        %1045 = vmatpush1.bf16.msra.mxu0 %v1021
        %1046 = vmatprep.subr.bf16.mxu0 0
        %1047 = vmatpush1.bf16.msra.mxu0 0
        %1048 = vmatprep.subr.bf16.mxu0 0
        %1049 = vmatpush1.bf16.msra.mxu0 0
        %1050 = vmatprep.subr.bf16.mxu0 0
        %1051 = vmatpush1.bf16.msra.mxu0 0
        %1052 = vmatprep.subr.bf16.mxu0 0
        %1053 = vmatpush1.bf16.msra.mxu0 0
        %1054 = vmatprep.subr.bf16.mxu0 0
        %1055 = vmatpush1.bf16.msra.mxu0 0
        %1056 = vmatprep.subr.bf16.mxu0 0
        %1057 = vmatpush1.bf16.msra.mxu0 0
        %1058 = vmatprep.subr.bf16.mxu0 0
        %1059 = vmatpush1.bf16.msra.mxu0 0
        %1060 = vmatprep.subr.bf16.mxu0 0
        %1061 = vmatpush1.bf16.msra.mxu0 0
        %1062 = vmatprep.mubr.bf16.mxu0 0
        %1063 = vmatmul.mubr.bf16.gmra.mrb[0].mxu0 %v564
        %v1064 = vpop.f32.mrb[0].mxu0
        %v1065 = vadd.f32 %v980, %v1064
        %v1066 = vpop.f32.mrb[0].mxu0
        %v1067 = vpop.f32.mrb[0].mxu0
        %v1068 = vadd.f32 %v980, %v1067
        %v1069 = vpop.f32.mrb[0].mxu0
        %1070 = vmatprep.mubr.bf16.mxu0 0
        %1071 = vmatmul.mubr.bf16.gmra.mrb[0].mxu0 %v565
        %v1072 = vpop.f32.mrb[0].mxu0
        %v1073 = vadd.f32 %v980, %v1072
        %v1074 = vpop.f32.mrb[0].mxu0
        %v1075 = vpop.f32.mrb[0].mxu0
        %v1076 = vadd.f32 %v980, %v1075
        %v1077 = vpop.f32.mrb[0].mxu0
        %1078 = vmatprep.mubr.bf16.mxu0 0
        %1079 = vmatmul.mubr.bf16.gmra.mrb[0].mxu0 %v566
        %v1080 = vpop.f32.mrb[0].mxu0
        %v1081 = vadd.f32 %v980, %v1080
        %v1082 = vpop.f32.mrb[0].mxu0
        %v1083 = vpop.f32.mrb[0].mxu0
        %v1084 = vadd.f32 %v980, %v1083
        %v1085 = vpop.f32.mrb[0].mxu0
        %1086 = vmatprep.mubr.bf16.mxu0 0
        %1087 = vmatmul.mubr.bf16.gmra.mrb[0].mxu0 %v567
        %v1088 = vpop.f32.mrb[0].mxu0
        %v1089 = vadd.f32 %v980, %v1088
        %v1090 = vpop.f32.mrb[0].mxu0
        %v1091 = vpop.f32.mrb[0].mxu0
        %v1092 = vadd.f32 %v980, %v1091
        %v1093 = vpop.f32.mrb[0].mxu0
        %1094 = vmatprep.mubr.bf16.mxu0 0
        %1095 = vmatmul.mubr.bf16.gmra.mrb[0].mxu0 %v568
        %v1096 = vpop.f32.mrb[0].mxu0
        %v1097 = vadd.f32 %v980, %v1096
        %v1098 = vpop.f32.mrb[0].mxu0
        %v1099 = vpop.f32.mrb[0].mxu0
        %v1100 = vadd.f32 %v980, %v1099
        %v1101 = vpop.f32.mrb[0].mxu0
        %1102 = vmatprep.mubr.bf16.mxu0 0
        %1103 = vmatmul.mubr.bf16.gmra.mrb[0].mxu0 %v569
        %v1104 = vpop.f32.mrb[0].mxu0
        %v1105 = vadd.f32 %v980, %v1104
        %v1106 = vpop.f32.mrb[0].mxu0
        %v1107 = vpop.f32.mrb[0].mxu0
        %v1108 = vadd.f32 %v980, %v1107
        %v1109 = vpop.f32.mrb[0].mxu0
        %1110 = vmatprep.mubr.bf16.mxu0 0
        %1111 = vmatmul.mubr.bf16.gmra.mrb[0].mxu0 %v570
        %v1112 = vpop.f32.mrb[0].mxu0
        %v1113 = vadd.f32 %v980, %v1112
        %v1114 = vpop.f32.mrb[0].mxu0
        %v1115 = vpop.f32.mrb[0].mxu0
        %v1116 = vadd.f32 %v980, %v1115
        %v1117 = vpop.f32.mrb[0].mxu0
        %1118 = vmatprep.mubr.bf16.mxu0 0
        %1119 = vmatmul.mubr.bf16.gmra.mrb[0].mxu0 %v571
        %v1120 = vpop.f32.mrb[0].mxu0
        %v1121 = vadd.f32 %v980, %v1120
        %v1122 = vpop.f32.mrb[0].mxu0
        %v1123 = vpop.f32.mrb[0].mxu0
        %v1124 = vadd.f32 %v980, %v1123
        %v1125 = vpop.f32.mrb[0].mxu0
        %1126 = vdwg.mxu0
        %v1127 = vpack.c.bf16 %v732, %v729
        %v1128 = vpack.c.bf16 %v740, %v737
        %v1129 = vpack.c.bf16 %v748, %v745
        %v1130 = vpack.c.bf16 %v756, %v753
        %v1131 = vpack.c.bf16 %v764, %v761
        %v1132 = vpack.c.bf16 %v772, %v769
        %v1133 = vpack.c.bf16 %v780, %v777
        %v1134 = vpack.c.bf16 %v788, %v785
        %v1135 = vpack.c.bf16 %v900, %v897
        %v1136 = vpack.c.bf16 %v908, %v905
        %v1137 = vpack.c.bf16 %v916, %v913
        %v1138 = vpack.c.bf16 %v924, %v921
        %v1139 = vpack.c.bf16 %v932, %v929
        %v1140 = vpack.c.bf16 %v940, %v937
        %v1141 = vpack.c.bf16 %v948, %v945
        %v1142 = vpack.c.bf16 %v956, %v953
        %vm1143 = vcmask 261120
        %v1145 = vsel %vm1143, %v1127, 0
        %v1148 = vsel %vm1143, %v1128, 0
        %v1151 = vsel %vm1143, %v1129, 0
        %v1154 = vsel %vm1143, %v1130, 0
        %v1157 = vsel %vm1143, %v1131, 0
        %v1160 = vsel %vm1143, %v1132, 0
        %v1163 = vsel %vm1143, %v1133, 0
        %v1166 = vsel %vm1143, %v1134, 0
        %v1169 = vsel %vm1143, %v1135, 0
        %v1172 = vsel %vm1143, %v1136, 0
        %v1175 = vsel %vm1143, %v1137, 0
        %v1178 = vsel %vm1143, %v1138, 0
        %v1181 = vsel %vm1143, %v1139, 0
        %v1184 = vsel %vm1143, %v1140, 0
        %v1187 = vsel %vm1143, %v1141, 0
        %v1190 = vsel %vm1143, %v1142, 0
        %1192 = vmatprep.subr.bf16.mxu0 0
        %1193 = vmatpush1.bf16.xpose.msra.mxu0 %v1169
        %1194 = vmatprep.subr.bf16.mxu0 0
        %1195 = vmatpush1.bf16.xpose.msra.mxu0 %v1172
        %1196 = vmatprep.subr.bf16.mxu0 0
        %1197 = vmatpush1.bf16.xpose.msra.mxu0 %v1175
        %1198 = vmatprep.subr.bf16.mxu0 0
        %1199 = vmatpush1.bf16.xpose.msra.mxu0 %v1178
        %1200 = vmatprep.subr.bf16.mxu0 0
        %1201 = vmatpush1.bf16.xpose.msra.mxu0 %v1181
        %1202 = vmatprep.subr.bf16.mxu0 0
        %1203 = vmatpush1.bf16.xpose.msra.mxu0 %v1184
        %1204 = vmatprep.subr.bf16.mxu0 0
        %1205 = vmatpush1.bf16.xpose.msra.mxu0 %v1187
        %1206 = vmatprep.subr.bf16.mxu0 0
        %1207 = vmatpush1.bf16.xpose.msra.mxu0 %v1190
        %1208 = vmatprep.subr.bf16.mxu0 0
        %1209 = vmatpush1.bf16.xpose.msra.mxu0 0
        %1210 = vmatprep.subr.bf16.mxu0 0
        %1211 = vmatpush1.bf16.xpose.msra.mxu0 0
        %1212 = vmatprep.subr.bf16.mxu0 0
        %1213 = vmatpush1.bf16.xpose.msra.mxu0 0
        %1214 = vmatprep.subr.bf16.mxu0 0
        %1215 = vmatpush1.bf16.xpose.msra.mxu0 0
        %1216 = vmatprep.subr.bf16.mxu0 0
        %1217 = vmatpush1.bf16.xpose.msra.mxu0 0
        %1218 = vmatprep.subr.bf16.mxu0 0
        %1219 = vmatpush1.bf16.xpose.msra.mxu0 0
        %1220 = vmatprep.subr.bf16.mxu0 0
        %1221 = vmatpush1.bf16.xpose.msra.mxu0 0
        %1222 = vmatprep.subr.bf16.mxu0 0
        %1223 = vmatpush1.bf16.xpose.msra.mxu0 0
        %1224 = vmatprep.mubr.bf16.mxu0 0
        %1225 = vmatmul.mubr.bf16.gmra.mrb[0].mxu0 %v1145
        %v1226 = vpop.f32.mrb[0].mxu0
        %v1227 = vadd.f32 %v607, %v1226
        %v1228 = vpop.f32.mrb[0].mxu0
        %v1229 = vpop.f32.mrb[0].mxu0
        %v1230 = vadd.f32 %v608, %v1229
        %v1231 = vpop.f32.mrb[0].mxu0
        %1232 = vmatprep.mubr.bf16.mxu0 0
        %1233 = vmatmul.mubr.bf16.gmra.mrb[0].mxu0 %v1148
        %v1234 = vpop.f32.mrb[0].mxu0
        %v1235 = vadd.f32 %v609, %v1234
        %v1236 = vpop.f32.mrb[0].mxu0
        %v1237 = vpop.f32.mrb[0].mxu0
        %v1238 = vadd.f32 %v610, %v1237
        %v1239 = vpop.f32.mrb[0].mxu0
        %1240 = vmatprep.mubr.bf16.mxu0 0
        %1241 = vmatmul.mubr.bf16.gmra.mrb[0].mxu0 %v1151
        %v1242 = vpop.f32.mrb[0].mxu0
        %v1243 = vadd.f32 %v611, %v1242
        %v1244 = vpop.f32.mrb[0].mxu0
        %v1245 = vpop.f32.mrb[0].mxu0
        %v1246 = vadd.f32 %v612, %v1245
        %v1247 = vpop.f32.mrb[0].mxu0
        %1248 = vmatprep.mubr.bf16.mxu0 0
        %1249 = vmatmul.mubr.bf16.gmra.mrb[0].mxu0 %v1154
        %v1250 = vpop.f32.mrb[0].mxu0
        %v1251 = vadd.f32 %v613, %v1250
        %v1252 = vpop.f32.mrb[0].mxu0
        %v1253 = vpop.f32.mrb[0].mxu0
        %v1254 = vadd.f32 %v614, %v1253
        %v1255 = vpop.f32.mrb[0].mxu0
        %1256 = vmatprep.mubr.bf16.mxu0 0
        %1257 = vmatmul.mubr.bf16.gmra.mrb[0].mxu0 %v1157
        %v1258 = vpop.f32.mrb[0].mxu0
        %v1259 = vadd.f32 %v615, %v1258
        %v1260 = vpop.f32.mrb[0].mxu0
        %v1261 = vpop.f32.mrb[0].mxu0
        %v1262 = vadd.f32 %v616, %v1261
        %v1263 = vpop.f32.mrb[0].mxu0
        %1264 = vmatprep.mubr.bf16.mxu0 0
        %1265 = vmatmul.mubr.bf16.gmra.mrb[0].mxu0 %v1160
        %v1266 = vpop.f32.mrb[0].mxu0
        %v1267 = vadd.f32 %v617, %v1266
        %v1268 = vpop.f32.mrb[0].mxu0
        %v1269 = vpop.f32.mrb[0].mxu0
        %v1270 = vadd.f32 %v618, %v1269
        %v1271 = vpop.f32.mrb[0].mxu0
        %1272 = vmatprep.mubr.bf16.mxu0 0
        %1273 = vmatmul.mubr.bf16.gmra.mrb[0].mxu0 %v1163
        %v1274 = vpop.f32.mrb[0].mxu0
        %v1275 = vadd.f32 %v619, %v1274
        %v1276 = vpop.f32.mrb[0].mxu0
        %v1277 = vpop.f32.mrb[0].mxu0
        %v1278 = vadd.f32 %v620, %v1277
        %v1279 = vpop.f32.mrb[0].mxu0
        %1280 = vmatprep.mubr.bf16.mxu0 0
        %1281 = vmatmul.mubr.bf16.gmra.mrb[0].mxu0 %v1166
        %v1282 = vpop.f32.mrb[0].mxu0
        %v1283 = vadd.f32 %v621, %v1282
        %v1284 = vpop.f32.mrb[0].mxu0
        %v1285 = vpop.f32.mrb[0].mxu0
        %v1286 = vadd.f32 %v622, %v1285
        %v1287 = vpop.f32.mrb[0].mxu0
        %1288 = vdwg.mxu0
        %1289 = vmax.xlane.f32.xlu0 %v1227
        %v1290 = vpop.xlane.xlu0 %1289
        %1291 = vmax.xlane.f32.xlu0 %v1230
        %v1292 = vpop.xlane.xlu0 %1291
        %1293 = vmax.xlane.f32.xlu0 %v1235
        %v1294 = vpop.xlane.xlu0 %1293
        %1295 = vmax.xlane.f32.xlu0 %v1238
        %v1296 = vpop.xlane.xlu0 %1295
        %1297 = vmax.xlane.f32.xlu0 %v1243
        %v1298 = vpop.xlane.xlu0 %1297
        %1299 = vmax.xlane.f32.xlu0 %v1246
        %v1300 = vpop.xlane.xlu0 %1299
        %1301 = vmax.xlane.f32.xlu0 %v1251
        %v1302 = vpop.xlane.xlu0 %1301
        %1303 = vmax.xlane.f32.xlu0 %v1254
        %v1304 = vpop.xlane.xlu0 %1303
        %1305 = vmax.xlane.f32.xlu0 %v1259
        %v1306 = vpop.xlane.xlu0 %1305
        %1307 = vmax.xlane.f32.xlu0 %v1262
        %v1308 = vpop.xlane.xlu0 %1307
        %1309 = vmax.xlane.f32.xlu0 %v1267
        %v1310 = vpop.xlane.xlu0 %1309
        %1311 = vmax.xlane.f32.xlu0 %v1270
        %v1312 = vpop.xlane.xlu0 %1311
        %1313 = vmax.xlane.f32.xlu0 %v1275
        %v1314 = vpop.xlane.xlu0 %1313
        %1315 = vmax.xlane.f32.xlu0 %v1278
        %v1316 = vpop.xlane.xlu0 %1315
        %1317 = vmax.xlane.f32.xlu0 %v1283
        %v1318 = vpop.xlane.xlu0 %1317
        %1319 = vmax.xlane.f32.xlu0 %v1286
        %v1320 = vpop.xlane.xlu0 %1319
        %v1321 = vsub.f32 %v1227, %v1290
        %v1322 = vsub.f32 %v1230, %v1292
        %v1323 = vsub.f32 %v1235, %v1294
        %v1324 = vsub.f32 %v1238, %v1296
        %v1325 = vsub.f32 %v1243, %v1298
        %v1326 = vsub.f32 %v1246, %v1300
        %v1327 = vsub.f32 %v1251, %v1302
        %v1328 = vsub.f32 %v1254, %v1304
        %v1329 = vsub.f32 %v1259, %v1306
        %v1330 = vsub.f32 %v1262, %v1308
        %v1331 = vsub.f32 %v1267, %v1310
        %v1332 = vsub.f32 %v1270, %v1312
        %v1333 = vsub.f32 %v1275, %v1314
        %v1334 = vsub.f32 %v1278, %v1316
        %v1335 = vsub.f32 %v1283, %v1318
        %v1336 = vsub.f32 %v1286, %v1320
        %v1337 = vmul.f32 %v1321, 1.442695
        %v1338 = vpow.pop %v1337
        %v1339 = vmul.f32 %v1322, 1.442695
        %v1340 = vpow.pop %v1339
        %v1341 = vmul.f32 %v1323, 1.442695
        %v1342 = vpow.pop %v1341
        %v1343 = vmul.f32 %v1324, 1.442695
        %v1344 = vpow.pop %v1343
        %v1345 = vmul.f32 %v1325, 1.442695
        %v1346 = vpow.pop %v1345
        %v1347 = vmul.f32 %v1326, 1.442695
        %v1348 = vpow.pop %v1347
        %v1349 = vmul.f32 %v1327, 1.442695
        %v1350 = vpow.pop %v1349
        %v1351 = vmul.f32 %v1328, 1.442695
        %v1352 = vpow.pop %v1351
        %v1353 = vmul.f32 %v1329, 1.442695
        %v1354 = vpow.pop %v1353
        %v1355 = vmul.f32 %v1330, 1.442695
        %v1356 = vpow.pop %v1355
        %v1357 = vmul.f32 %v1331, 1.442695
        %v1358 = vpow.pop %v1357
        %v1359 = vmul.f32 %v1332, 1.442695
        %v1360 = vpow.pop %v1359
        %v1361 = vmul.f32 %v1333, 1.442695
        %v1362 = vpow.pop %v1361
        %v1363 = vmul.f32 %v1334, 1.442695
        %v1364 = vpow.pop %v1363
        %v1365 = vmul.f32 %v1335, 1.442695
        %v1366 = vpow.pop %v1365
        %v1367 = vmul.f32 %v1336, 1.442695
        %v1368 = vpow.pop %v1367
        %1369 = vadd.xlane.f32.xlu0 %v1338
        %v1370 = vpop.xlane.xlu0 %1369
        %1371 = vadd.xlane.f32.xlu0 %v1340
        %v1372 = vpop.xlane.xlu0 %1371
        %1373 = vadd.xlane.f32.xlu0 %v1342
        %v1374 = vpop.xlane.xlu0 %1373
        %1375 = vadd.xlane.f32.xlu0 %v1344
        %v1376 = vpop.xlane.xlu0 %1375
        %1377 = vadd.xlane.f32.xlu0 %v1346
        %v1378 = vpop.xlane.xlu0 %1377
        %1379 = vadd.xlane.f32.xlu0 %v1348
        %v1380 = vpop.xlane.xlu0 %1379
        %1381 = vadd.xlane.f32.xlu0 %v1350
        %v1382 = vpop.xlane.xlu0 %1381
        %1383 = vadd.xlane.f32.xlu0 %v1352
        %v1384 = vpop.xlane.xlu0 %1383
        %1385 = vadd.xlane.f32.xlu0 %v1354
        %v1386 = vpop.xlane.xlu0 %1385
        %1387 = vadd.xlane.f32.xlu0 %v1356
        %v1388 = vpop.xlane.xlu0 %1387
        %1389 = vadd.xlane.f32.xlu0 %v1358
        %v1390 = vpop.xlane.xlu0 %1389
        %1391 = vadd.xlane.f32.xlu0 %v1360
        %v1392 = vpop.xlane.xlu0 %1391
        %1393 = vadd.xlane.f32.xlu0 %v1362
        %v1394 = vpop.xlane.xlu0 %1393
        %1395 = vadd.xlane.f32.xlu0 %v1364
        %v1396 = vpop.xlane.xlu0 %1395
        %1397 = vadd.xlane.f32.xlu0 %v1366
        %v1398 = vpop.xlane.xlu0 %1397
        %1399 = vadd.xlane.f32.xlu0 %v1368
        %v1400 = vpop.xlane.xlu0 %1399
        %v1401 = vrcp.pop %v1370
        %v1402 = vrcp.pop %v1372
        %v1403 = vrcp.pop %v1374
        %v1404 = vrcp.pop %v1376
        %v1405 = vrcp.pop %v1378
        %v1406 = vrcp.pop %v1380
        %v1407 = vrcp.pop %v1382
        %v1408 = vrcp.pop %v1384
        %v1409 = vrcp.pop %v1386
        %v1410 = vrcp.pop %v1388
        %v1411 = vrcp.pop %v1390
        %v1412 = vrcp.pop %v1392
        %v1413 = vrcp.pop %v1394
        %v1414 = vrcp.pop %v1396
        %v1415 = vrcp.pop %v1398
        %v1416 = vrcp.pop %v1400
        %v1417 = vmul.f32 %v1338, %v1401
        %v1418 = vmul.f32 %v1340, %v1402
        %v1419 = vmul.f32 %v1342, %v1403
        %v1420 = vmul.f32 %v1344, %v1404
        %v1421 = vmul.f32 %v1346, %v1405
        %v1422 = vmul.f32 %v1348, %v1406
        %v1423 = vmul.f32 %v1350, %v1407
        %v1424 = vmul.f32 %v1352, %v1408
        %v1425 = vmul.f32 %v1354, %v1409
        %v1426 = vmul.f32 %v1356, %v1410
        %v1427 = vmul.f32 %v1358, %v1411
        %v1428 = vmul.f32 %v1360, %v1412
        %v1429 = vmul.f32 %v1362, %v1413
        %v1430 = vmul.f32 %v1364, %v1414
        %v1431 = vmul.f32 %v1366, %v1415
        %v1432 = vmul.f32 %v1368, %v1416
        %v1433 = vpack.c.bf16 %v1418, %v1417
        %v1434 = vpack.c.bf16 %v1420, %v1419
        %v1435 = vpack.c.bf16 %v1422, %v1421
        %v1436 = vpack.c.bf16 %v1424, %v1423
        %v1437 = vpack.c.bf16 %v1426, %v1425
        %v1438 = vpack.c.bf16 %v1428, %v1427
        %v1439 = vpack.c.bf16 %v1430, %v1429
        %v1440 = vpack.c.bf16 %v1432, %v1431
        %v1441 = vpack.c.bf16 %v1068, %v1065
        %v1442 = vpack.c.bf16 %v1076, %v1073
        %v1443 = vpack.c.bf16 %v1084, %v1081
        %v1444 = vpack.c.bf16 %v1092, %v1089
        %v1445 = vpack.c.bf16 %v1100, %v1097
        %v1446 = vpack.c.bf16 %v1108, %v1105
        %v1447 = vpack.c.bf16 %v1116, %v1113
        %v1448 = vpack.c.bf16 %v1124, %v1121
        %1449 = vmatprep.subr.bf16.mxu0 0
        %1450 = vmatpush1.bf16.msra.mxu0 %v1441
        %1451 = vmatprep.subr.bf16.mxu0 0
        %1452 = vmatpush1.bf16.msra.mxu0 %v1442
        %1453 = vmatprep.subr.bf16.mxu0 0
        %1454 = vmatpush1.bf16.msra.mxu0 %v1443
        %1455 = vmatprep.subr.bf16.mxu0 0
        %1456 = vmatpush1.bf16.msra.mxu0 %v1444
        %1457 = vmatprep.subr.bf16.mxu0 0
        %1458 = vmatpush1.bf16.msra.mxu0 %v1445
        %1459 = vmatprep.subr.bf16.mxu0 0
        %1460 = vmatpush1.bf16.msra.mxu0 %v1446
        %1461 = vmatprep.subr.bf16.mxu0 0
        %1462 = vmatpush1.bf16.msra.mxu0 %v1447
        %1463 = vmatprep.subr.bf16.mxu0 0
        %1464 = vmatpush1.bf16.msra.mxu0 %v1448
        %1465 = vmatprep.subr.bf16.mxu0 0
        %1466 = vmatpush1.bf16.msra.mxu0 0
        %1467 = vmatprep.subr.bf16.mxu0 0
        %1468 = vmatpush1.bf16.msra.mxu0 0
        %1469 = vmatprep.subr.bf16.mxu0 0
        %1470 = vmatpush1.bf16.msra.mxu0 0
        %1471 = vmatprep.subr.bf16.mxu0 0
        %1472 = vmatpush1.bf16.msra.mxu0 0
        %1473 = vmatprep.subr.bf16.mxu0 0
        %1474 = vmatpush1.bf16.msra.mxu0 0
        %1475 = vmatprep.subr.bf16.mxu0 0
        %1476 = vmatpush1.bf16.msra.mxu0 0
        %1477 = vmatprep.subr.bf16.mxu0 0
        %1478 = vmatpush1.bf16.msra.mxu0 0
        %1479 = vmatprep.subr.bf16.mxu0 0
        %1480 = vmatpush1.bf16.msra.mxu0 0
        %1481 = vmatprep.mubr.bf16.mxu0 0
        %1482 = vmatmul.mubr.bf16.gmra.mrb[0].mxu0 %v1433
        %v1483 = vpop.f32.mrb[0].mxu0
        %v1484 = vadd.f32 0.0, %v1483
        %v1485 = vpop.f32.mrb[0].mxu0
        %v1486 = vpop.f32.mrb[0].mxu0
        %v1487 = vadd.f32 0.0, %v1486
        %v1488 = vpop.f32.mrb[0].mxu0
        %1489 = vmatprep.mubr.bf16.mxu0 0
        %1490 = vmatmul.mubr.bf16.gmra.mrb[0].mxu0 %v1434
        %v1491 = vpop.f32.mrb[0].mxu0
        %v1492 = vadd.f32 0.0, %v1491
        %v1493 = vpop.f32.mrb[0].mxu0
        %v1494 = vpop.f32.mrb[0].mxu0
        %v1495 = vadd.f32 0.0, %v1494
        %v1496 = vpop.f32.mrb[0].mxu0
        %1497 = vmatprep.mubr.bf16.mxu0 0
        %1498 = vmatmul.mubr.bf16.gmra.mrb[0].mxu0 %v1435
        %v1499 = vpop.f32.mrb[0].mxu0
        %v1500 = vadd.f32 0.0, %v1499
        %v1501 = vpop.f32.mrb[0].mxu0
        %v1502 = vpop.f32.mrb[0].mxu0
        %v1503 = vadd.f32 0.0, %v1502
        %v1504 = vpop.f32.mrb[0].mxu0
        %1505 = vmatprep.mubr.bf16.mxu0 0
        %1506 = vmatmul.mubr.bf16.gmra.mrb[0].mxu0 %v1436
        %v1507 = vpop.f32.mrb[0].mxu0
        %v1508 = vadd.f32 0.0, %v1507
        %v1509 = vpop.f32.mrb[0].mxu0
        %v1510 = vpop.f32.mrb[0].mxu0
        %v1511 = vadd.f32 0.0, %v1510
        %v1512 = vpop.f32.mrb[0].mxu0
        %1513 = vmatprep.mubr.bf16.mxu0 0
        %1514 = vmatmul.mubr.bf16.gmra.mrb[0].mxu0 %v1437
        %v1515 = vpop.f32.mrb[0].mxu0
        %v1516 = vadd.f32 0.0, %v1515
        %v1517 = vpop.f32.mrb[0].mxu0
        %v1518 = vpop.f32.mrb[0].mxu0
        %v1519 = vadd.f32 0.0, %v1518
        %v1520 = vpop.f32.mrb[0].mxu0
        %1521 = vmatprep.mubr.bf16.mxu0 0
        %1522 = vmatmul.mubr.bf16.gmra.mrb[0].mxu0 %v1438
        %v1523 = vpop.f32.mrb[0].mxu0
        %v1524 = vadd.f32 0.0, %v1523
        %v1525 = vpop.f32.mrb[0].mxu0
        %v1526 = vpop.f32.mrb[0].mxu0
        %v1527 = vadd.f32 0.0, %v1526
        %v1528 = vpop.f32.mrb[0].mxu0
        %1529 = vmatprep.mubr.bf16.mxu0 0
        %1530 = vmatmul.mubr.bf16.gmra.mrb[0].mxu0 %v1439
        %v1531 = vpop.f32.mrb[0].mxu0
        %v1532 = vadd.f32 0.0, %v1531
        %v1533 = vpop.f32.mrb[0].mxu0
        %v1534 = vpop.f32.mrb[0].mxu0
        %v1535 = vadd.f32 0.0, %v1534
        %v1536 = vpop.f32.mrb[0].mxu0
        %1537 = vmatprep.mubr.bf16.mxu0 0
        %1538 = vmatmul.mubr.bf16.gmra.mrb[0].mxu0 %v1440
        %v1539 = vpop.f32.mrb[0].mxu0
        %v1540 = vadd.f32 0.0, %v1539
        %v1541 = vpop.f32.mrb[0].mxu0
        %v1542 = vpop.f32.mrb[0].mxu0
        %v1543 = vadd.f32 0.0, %v1542
        %v1544 = vpop.f32.mrb[0].mxu0
        %1545 = vdwg.mxu0
        %v1546 = vpack.c.bf16 %v1487, %v1484
        %v1547 = vpack.c.bf16 %v1495, %v1492
        %v1548 = vpack.c.bf16 %v1503, %v1500
        %v1549 = vpack.c.bf16 %v1511, %v1508
        %v1550 = vpack.c.bf16 %v1519, %v1516
        %v1551 = vpack.c.bf16 %v1527, %v1524
        %v1552 = vpack.c.bf16 %v1535, %v1532
        %v1553 = vpack.c.bf16 %v1543, %v1540
        %v1554 = vld [vmem:[%s7] sm:$0xf]
        %v1555 = vld [vmem:[%s7 + $0x4] sm:$0xf]
        %v1556 = vld [vmem:[%s7 + $0x8] sm:$0xf]
        %v1557 = vld [vmem:[%s7 + $0xc] sm:$0xf]
        %s1558 = scalar_lea.vmem %s1, 64
        %v1559 = vld [vmem:[%s1558] sm:$0xf]
        %v1560 = vld [vmem:[%s1558 + $0x4] sm:$0xf]
        %v1561 = vld [vmem:[%s1558 + $0x8] sm:$0xf]
        %v1562 = vld [vmem:[%s1558 + $0xc] sm:$0xf]
        %v1563 = vld [vmem:[%s1558 + $0x10] sm:$0xf]
        %v1564 = vld [vmem:[%s1558 + $0x14] sm:$0xf]
        %v1565 = vld [vmem:[%s1558 + $0x18] sm:$0xf]
        %v1566 = vld [vmem:[%s1558 + $0x1c] sm:$0xf]
        %v1567 = vld [vmem:[%s1558 + $0x20] sm:$0xf]
        %v1568 = vld [vmem:[%s1558 + $0x24] sm:$0xf]
        %v1569 = vld [vmem:[%s1558 + $0x28] sm:$0xf]
        %v1570 = vld [vmem:[%s1558 + $0x2c] sm:$0xf]
        %v1571 = vld [vmem:[%s1558 + $0x30] sm:$0xf]
        %v1572 = vld [vmem:[%s1558 + $0x34] sm:$0xf]
        %v1573 = vld [vmem:[%s1558 + $0x38] sm:$0xf]
        %v1574 = vld [vmem:[%s1558 + $0x3c] sm:$0xf]
        %s1575 = scalar_lea.vmem %s2, 1
        %v1576 = vld [vmem:[%s1575] sm:$0x1]
        %v1578 = vlaneseq
        %v1579 = vshrl.u32 %v1578, 7
        %v1580 = vsub.s32 0, %v1579
        %v1581 = vrot.slane %v1576, %v1580
        %v1599 = vunpack.c.l.b16 %v1559
        %v1600 = vunpack.c.l.b16 %v1560
        %v1601 = vunpack.c.l.b16 %v1561
        %v1602 = vunpack.c.l.b16 %v1562
        %v1603 = vunpack.c.l.b16 %v1563
        %v1604 = vunpack.c.l.b16 %v1564
        %v1605 = vunpack.c.l.b16 %v1565
        %v1606 = vunpack.c.l.b16 %v1566
        %v1607 = vunpack.c.l.b16 %v1567
        %v1608 = vunpack.c.l.b16 %v1568
        %v1609 = vunpack.c.l.b16 %v1569
        %v1610 = vunpack.c.l.b16 %v1570
        %v1611 = vunpack.c.l.b16 %v1571
        %v1612 = vunpack.c.l.b16 %v1572
        %v1613 = vunpack.c.l.b16 %v1573
        %v1614 = vunpack.c.l.b16 %v1574
        %v1615 = vpack.c.b16 %v1600, %v1599
        %v1616 = vpack.c.b16 %v1602, %v1601
        %v1617 = vpack.c.b16 %v1604, %v1603
        %v1618 = vpack.c.b16 %v1606, %v1605
        %v1619 = vpack.c.b16 %v1608, %v1607
        %v1620 = vpack.c.b16 %v1610, %v1609
        %v1621 = vpack.c.b16 %v1612, %v1611
        %v1622 = vpack.c.b16 %v1614, %v1613
        %1631 = vmatprep.subr.bf16.mxu0 0
        %1632 = vmatpush1.bf16.msra.mxu0 %v1615
        %1633 = vmatprep.subr.bf16.mxu0 0
        %1634 = vmatpush1.bf16.msra.mxu0 %v1616
        %1635 = vmatprep.subr.bf16.mxu0 0
        %1636 = vmatpush1.bf16.msra.mxu0 %v1617
        %1637 = vmatprep.subr.bf16.mxu0 0
        %1638 = vmatpush1.bf16.msra.mxu0 %v1618
        %1639 = vmatprep.subr.bf16.mxu0 0
        %1640 = vmatpush1.bf16.msra.mxu0 %v1619
        %1641 = vmatprep.subr.bf16.mxu0 0
        %1642 = vmatpush1.bf16.msra.mxu0 %v1620
        %1643 = vmatprep.subr.bf16.mxu0 0
        %1644 = vmatpush1.bf16.msra.mxu0 %v1621
        %1645 = vmatprep.subr.bf16.mxu0 0
        %1646 = vmatpush1.bf16.msra.mxu0 %v1622
        %1647 = vmatprep.subr.bf16.mxu0 0
        %1648 = vmatpush1.bf16.msra.mxu0 0
        %1649 = vmatprep.subr.bf16.mxu0 0
        %1650 = vmatpush1.bf16.msra.mxu0 0
        %1651 = vmatprep.subr.bf16.mxu0 0
        %1652 = vmatpush1.bf16.msra.mxu0 0
        %1653 = vmatprep.subr.bf16.mxu0 0
        %1654 = vmatpush1.bf16.msra.mxu0 0
        %1655 = vmatprep.subr.bf16.mxu0 0
        %1656 = vmatpush1.bf16.msra.mxu0 0
        %1657 = vmatprep.subr.bf16.mxu0 0
        %1658 = vmatpush1.bf16.msra.mxu0 0
        %1659 = vmatprep.subr.bf16.mxu0 0
        %1660 = vmatpush1.bf16.msra.mxu0 0
        %1661 = vmatprep.subr.bf16.mxu0 0
        %1662 = vmatpush1.bf16.msra.mxu0 0
        %1663 = vmatprep.mubr.bf16.mxu0 0
        %1664 = vmatmul.mubr.bf16.gmra.mrb[0].mxu0 %v564
        %v1665 = vpop.f32.mrb[0].mxu0
        %v1666 = vadd.f32 %v1581, %v1665
        %v1667 = vpop.f32.mrb[0].mxu0
        %v1668 = vpop.f32.mrb[0].mxu0
        %v1669 = vadd.f32 %v1581, %v1668
        %v1670 = vpop.f32.mrb[0].mxu0
        %1671 = vmatprep.mubr.bf16.mxu0 0
        %1672 = vmatmul.mubr.bf16.gmra.mrb[0].mxu0 %v565
        %v1673 = vpop.f32.mrb[0].mxu0
        %v1674 = vadd.f32 %v1581, %v1673
        %v1675 = vpop.f32.mrb[0].mxu0
        %v1676 = vpop.f32.mrb[0].mxu0
        %v1677 = vadd.f32 %v1581, %v1676
        %v1678 = vpop.f32.mrb[0].mxu0
        %1679 = vmatprep.mubr.bf16.mxu0 0
        %1680 = vmatmul.mubr.bf16.gmra.mrb[0].mxu0 %v566
        %v1681 = vpop.f32.mrb[0].mxu0
        %v1682 = vadd.f32 %v1581, %v1681
        %v1683 = vpop.f32.mrb[0].mxu0
        %v1684 = vpop.f32.mrb[0].mxu0
        %v1685 = vadd.f32 %v1581, %v1684
        %v1686 = vpop.f32.mrb[0].mxu0
        %1687 = vmatprep.mubr.bf16.mxu0 0
        %1688 = vmatmul.mubr.bf16.gmra.mrb[0].mxu0 %v567
        %v1689 = vpop.f32.mrb[0].mxu0
        %v1690 = vadd.f32 %v1581, %v1689
        %v1691 = vpop.f32.mrb[0].mxu0
        %v1692 = vpop.f32.mrb[0].mxu0
        %v1693 = vadd.f32 %v1581, %v1692
        %v1694 = vpop.f32.mrb[0].mxu0
        %1695 = vmatprep.mubr.bf16.mxu0 0
        %1696 = vmatmul.mubr.bf16.gmra.mrb[0].mxu0 %v568
        %v1697 = vpop.f32.mrb[0].mxu0
        %v1698 = vadd.f32 %v1581, %v1697
        %v1699 = vpop.f32.mrb[0].mxu0
        %v1700 = vpop.f32.mrb[0].mxu0
        %v1701 = vadd.f32 %v1581, %v1700
        %v1702 = vpop.f32.mrb[0].mxu0
        %1703 = vmatprep.mubr.bf16.mxu0 0
        %1704 = vmatmul.mubr.bf16.gmra.mrb[0].mxu0 %v569
        %v1705 = vpop.f32.mrb[0].mxu0
        %v1706 = vadd.f32 %v1581, %v1705
        %v1707 = vpop.f32.mrb[0].mxu0
        %v1708 = vpop.f32.mrb[0].mxu0
        %v1709 = vadd.f32 %v1581, %v1708
        %v1710 = vpop.f32.mrb[0].mxu0
        %1711 = vmatprep.mubr.bf16.mxu0 0
        %1712 = vmatmul.mubr.bf16.gmra.mrb[0].mxu0 %v570
        %v1713 = vpop.f32.mrb[0].mxu0
        %v1714 = vadd.f32 %v1581, %v1713
        %v1715 = vpop.f32.mrb[0].mxu0
        %v1716 = vpop.f32.mrb[0].mxu0
        %v1717 = vadd.f32 %v1581, %v1716
        %v1718 = vpop.f32.mrb[0].mxu0
        %1719 = vmatprep.mubr.bf16.mxu0 0
        %1720 = vmatmul.mubr.bf16.gmra.mrb[0].mxu0 %v571
        %v1721 = vpop.f32.mrb[0].mxu0
        %v1722 = vadd.f32 %v1581, %v1721
        %v1723 = vpop.f32.mrb[0].mxu0
        %v1724 = vpop.f32.mrb[0].mxu0
        %v1725 = vadd.f32 %v1581, %v1724
        %v1726 = vpop.f32.mrb[0].mxu0
        %1727 = vdwg.mxu0
        %s1728 = scalar_lea.vmem %s3, 64
        %v1729 = vld [vmem:[%s1728] sm:$0xf]
        %v1730 = vld [vmem:[%s1728 + $0x4] sm:$0xf]
        %v1731 = vld [vmem:[%s1728 + $0x8] sm:$0xf]
        %v1732 = vld [vmem:[%s1728 + $0xc] sm:$0xf]
        %v1733 = vld [vmem:[%s1728 + $0x10] sm:$0xf]
        %v1734 = vld [vmem:[%s1728 + $0x14] sm:$0xf]
        %v1735 = vld [vmem:[%s1728 + $0x18] sm:$0xf]
        %v1736 = vld [vmem:[%s1728 + $0x1c] sm:$0xf]
        %v1737 = vld [vmem:[%s1728 + $0x20] sm:$0xf]
        %v1738 = vld [vmem:[%s1728 + $0x24] sm:$0xf]
        %v1739 = vld [vmem:[%s1728 + $0x28] sm:$0xf]
        %v1740 = vld [vmem:[%s1728 + $0x2c] sm:$0xf]
        %v1741 = vld [vmem:[%s1728 + $0x30] sm:$0xf]
        %v1742 = vld [vmem:[%s1728 + $0x34] sm:$0xf]
        %v1743 = vld [vmem:[%s1728 + $0x38] sm:$0xf]
        %v1744 = vld [vmem:[%s1728 + $0x3c] sm:$0xf]
        %s1745 = scalar_lea.vmem %s4, 1
        %v1746 = vld [vmem:[%s1745] sm:$0x1]
        %v1748 = vlaneseq
        %v1749 = vshrl.u32 %v1748, 7
        %v1750 = vsub.s32 0, %v1749
        %v1751 = vrot.slane %v1746, %v1750
        %v1769 = vunpack.c.l.b16 %v1729
        %v1770 = vunpack.c.l.b16 %v1730
        %v1771 = vunpack.c.l.b16 %v1731
        %v1772 = vunpack.c.l.b16 %v1732
        %v1773 = vunpack.c.l.b16 %v1733
        %v1774 = vunpack.c.l.b16 %v1734
        %v1775 = vunpack.c.l.b16 %v1735
        %v1776 = vunpack.c.l.b16 %v1736
        %v1777 = vunpack.c.l.b16 %v1737
        %v1778 = vunpack.c.l.b16 %v1738
        %v1779 = vunpack.c.l.b16 %v1739
        %v1780 = vunpack.c.l.b16 %v1740
        %v1781 = vunpack.c.l.b16 %v1741
        %v1782 = vunpack.c.l.b16 %v1742
        %v1783 = vunpack.c.l.b16 %v1743
        %v1784 = vunpack.c.l.b16 %v1744
        %v1785 = vpack.c.b16 %v1770, %v1769
        %v1786 = vpack.c.b16 %v1772, %v1771
        %v1787 = vpack.c.b16 %v1774, %v1773
        %v1788 = vpack.c.b16 %v1776, %v1775
        %v1789 = vpack.c.b16 %v1778, %v1777
        %v1790 = vpack.c.b16 %v1780, %v1779
        %v1791 = vpack.c.b16 %v1782, %v1781
        %v1792 = vpack.c.b16 %v1784, %v1783
        %1801 = vmatprep.subr.bf16.mxu0 0
        %1802 = vmatpush1.bf16.msra.mxu0 %v1785
        %1803 = vmatprep.subr.bf16.mxu0 0
        %1804 = vmatpush1.bf16.msra.mxu0 %v1786
        %1805 = vmatprep.subr.bf16.mxu0 0
        %1806 = vmatpush1.bf16.msra.mxu0 %v1787
        %1807 = vmatprep.subr.bf16.mxu0 0
        %1808 = vmatpush1.bf16.msra.mxu0 %v1788
        %1809 = vmatprep.subr.bf16.mxu0 0
        %1810 = vmatpush1.bf16.msra.mxu0 %v1789
        %1811 = vmatprep.subr.bf16.mxu0 0
        %1812 = vmatpush1.bf16.msra.mxu0 %v1790
        %1813 = vmatprep.subr.bf16.mxu0 0
        %1814 = vmatpush1.bf16.msra.mxu0 %v1791
        %1815 = vmatprep.subr.bf16.mxu0 0
        %1816 = vmatpush1.bf16.msra.mxu0 %v1792
        %1817 = vmatprep.subr.bf16.mxu0 0
        %1818 = vmatpush1.bf16.msra.mxu0 0
        %1819 = vmatprep.subr.bf16.mxu0 0
        %1820 = vmatpush1.bf16.msra.mxu0 0
        %1821 = vmatprep.subr.bf16.mxu0 0
        %1822 = vmatpush1.bf16.msra.mxu0 0
        %1823 = vmatprep.subr.bf16.mxu0 0
        %1824 = vmatpush1.bf16.msra.mxu0 0
        %1825 = vmatprep.subr.bf16.mxu0 0
        %1826 = vmatpush1.bf16.msra.mxu0 0
        %1827 = vmatprep.subr.bf16.mxu0 0
        %1828 = vmatpush1.bf16.msra.mxu0 0
        %1829 = vmatprep.subr.bf16.mxu0 0
        %1830 = vmatpush1.bf16.msra.mxu0 0
        %1831 = vmatprep.subr.bf16.mxu0 0
        %1832 = vmatpush1.bf16.msra.mxu0 0
        %1833 = vmatprep.mubr.bf16.mxu0 0
        %1834 = vmatmul.mubr.bf16.gmra.mrb[0].mxu0 %v564
        %v1835 = vpop.f32.mrb[0].mxu0
        %v1836 = vadd.f32 %v1751, %v1835
        %v1837 = vpop.f32.mrb[0].mxu0
        %v1838 = vpop.f32.mrb[0].mxu0
        %v1839 = vadd.f32 %v1751, %v1838
        %v1840 = vpop.f32.mrb[0].mxu0
        %1841 = vmatprep.mubr.bf16.mxu0 0
        %1842 = vmatmul.mubr.bf16.gmra.mrb[0].mxu0 %v565
        %v1843 = vpop.f32.mrb[0].mxu0
        %v1844 = vadd.f32 %v1751, %v1843
        %v1845 = vpop.f32.mrb[0].mxu0
        %v1846 = vpop.f32.mrb[0].mxu0
        %v1847 = vadd.f32 %v1751, %v1846
        %v1848 = vpop.f32.mrb[0].mxu0
        %1849 = vmatprep.mubr.bf16.mxu0 0
        %1850 = vmatmul.mubr.bf16.gmra.mrb[0].mxu0 %v566
        %v1851 = vpop.f32.mrb[0].mxu0
        %v1852 = vadd.f32 %v1751, %v1851
        %v1853 = vpop.f32.mrb[0].mxu0
        %v1854 = vpop.f32.mrb[0].mxu0
        %v1855 = vadd.f32 %v1751, %v1854
        %v1856 = vpop.f32.mrb[0].mxu0
        %1857 = vmatprep.mubr.bf16.mxu0 0
        %1858 = vmatmul.mubr.bf16.gmra.mrb[0].mxu0 %v567
        %v1859 = vpop.f32.mrb[0].mxu0
        %v1860 = vadd.f32 %v1751, %v1859
        %v1861 = vpop.f32.mrb[0].mxu0
        %v1862 = vpop.f32.mrb[0].mxu0
        %v1863 = vadd.f32 %v1751, %v1862
        %v1864 = vpop.f32.mrb[0].mxu0
        %1865 = vmatprep.mubr.bf16.mxu0 0
        %1866 = vmatmul.mubr.bf16.gmra.mrb[0].mxu0 %v568
        %v1867 = vpop.f32.mrb[0].mxu0
        %v1868 = vadd.f32 %v1751, %v1867
        %v1869 = vpop.f32.mrb[0].mxu0
        %v1870 = vpop.f32.mrb[0].mxu0
        %v1871 = vadd.f32 %v1751, %v1870
        %v1872 = vpop.f32.mrb[0].mxu0
        %1873 = vmatprep.mubr.bf16.mxu0 0
        %1874 = vmatmul.mubr.bf16.gmra.mrb[0].mxu0 %v569
        %v1875 = vpop.f32.mrb[0].mxu0
        %v1876 = vadd.f32 %v1751, %v1875
        %v1877 = vpop.f32.mrb[0].mxu0
        %v1878 = vpop.f32.mrb[0].mxu0
        %v1879 = vadd.f32 %v1751, %v1878
        %v1880 = vpop.f32.mrb[0].mxu0
        %1881 = vmatprep.mubr.bf16.mxu0 0
        %1882 = vmatmul.mubr.bf16.gmra.mrb[0].mxu0 %v570
        %v1883 = vpop.f32.mrb[0].mxu0
        %v1884 = vadd.f32 %v1751, %v1883
        %v1885 = vpop.f32.mrb[0].mxu0
        %v1886 = vpop.f32.mrb[0].mxu0
        %v1887 = vadd.f32 %v1751, %v1886
        %v1888 = vpop.f32.mrb[0].mxu0
        %1889 = vmatprep.mubr.bf16.mxu0 0
        %1890 = vmatmul.mubr.bf16.gmra.mrb[0].mxu0 %v571
        %v1891 = vpop.f32.mrb[0].mxu0
        %v1892 = vadd.f32 %v1751, %v1891
        %v1893 = vpop.f32.mrb[0].mxu0
        %v1894 = vpop.f32.mrb[0].mxu0
        %v1895 = vadd.f32 %v1751, %v1894
        %v1896 = vpop.f32.mrb[0].mxu0
        %1897 = vdwg.mxu0
        %s1898 = scalar_lea.vmem %s5, 64
        %v1899 = vld [vmem:[%s1898] sm:$0xf]
        %v1900 = vld [vmem:[%s1898 + $0x4] sm:$0xf]
        %v1901 = vld [vmem:[%s1898 + $0x8] sm:$0xf]
        %v1902 = vld [vmem:[%s1898 + $0xc] sm:$0xf]
        %v1903 = vld [vmem:[%s1898 + $0x10] sm:$0xf]
        %v1904 = vld [vmem:[%s1898 + $0x14] sm:$0xf]
        %v1905 = vld [vmem:[%s1898 + $0x18] sm:$0xf]
        %v1906 = vld [vmem:[%s1898 + $0x1c] sm:$0xf]
        %v1907 = vld [vmem:[%s1898 + $0x20] sm:$0xf]
        %v1908 = vld [vmem:[%s1898 + $0x24] sm:$0xf]
        %v1909 = vld [vmem:[%s1898 + $0x28] sm:$0xf]
        %v1910 = vld [vmem:[%s1898 + $0x2c] sm:$0xf]
        %v1911 = vld [vmem:[%s1898 + $0x30] sm:$0xf]
        %v1912 = vld [vmem:[%s1898 + $0x34] sm:$0xf]
        %v1913 = vld [vmem:[%s1898 + $0x38] sm:$0xf]
        %v1914 = vld [vmem:[%s1898 + $0x3c] sm:$0xf]
        %s1915 = scalar_lea.vmem %s6, 1
        %v1916 = vld [vmem:[%s1915] sm:$0x1]
        %v1918 = vlaneseq
        %v1919 = vshrl.u32 %v1918, 7
        %v1920 = vsub.s32 0, %v1919
        %v1921 = vrot.slane %v1916, %v1920
        %v1939 = vunpack.c.l.b16 %v1899
        %v1940 = vunpack.c.l.b16 %v1900
        %v1941 = vunpack.c.l.b16 %v1901
        %v1942 = vunpack.c.l.b16 %v1902
        %v1943 = vunpack.c.l.b16 %v1903
        %v1944 = vunpack.c.l.b16 %v1904
        %v1945 = vunpack.c.l.b16 %v1905
        %v1946 = vunpack.c.l.b16 %v1906
        %v1947 = vunpack.c.l.b16 %v1907
        %v1948 = vunpack.c.l.b16 %v1908
        %v1949 = vunpack.c.l.b16 %v1909
        %v1950 = vunpack.c.l.b16 %v1910
        %v1951 = vunpack.c.l.b16 %v1911
        %v1952 = vunpack.c.l.b16 %v1912
        %v1953 = vunpack.c.l.b16 %v1913
        %v1954 = vunpack.c.l.b16 %v1914
        %v1955 = vpack.c.b16 %v1940, %v1939
        %v1956 = vpack.c.b16 %v1942, %v1941
        %v1957 = vpack.c.b16 %v1944, %v1943
        %v1958 = vpack.c.b16 %v1946, %v1945
        %v1959 = vpack.c.b16 %v1948, %v1947
        %v1960 = vpack.c.b16 %v1950, %v1949
        %v1961 = vpack.c.b16 %v1952, %v1951
        %v1962 = vpack.c.b16 %v1954, %v1953
        %1971 = vmatprep.subr.bf16.mxu0 0
        %1972 = vmatpush1.bf16.msra.mxu0 %v1955
        %1973 = vmatprep.subr.bf16.mxu0 0
        %1974 = vmatpush1.bf16.msra.mxu0 %v1956
        %1975 = vmatprep.subr.bf16.mxu0 0
        %1976 = vmatpush1.bf16.msra.mxu0 %v1957
        %1977 = vmatprep.subr.bf16.mxu0 0
        %1978 = vmatpush1.bf16.msra.mxu0 %v1958
        %1979 = vmatprep.subr.bf16.mxu0 0
        %1980 = vmatpush1.bf16.msra.mxu0 %v1959
        %1981 = vmatprep.subr.bf16.mxu0 0
        %1982 = vmatpush1.bf16.msra.mxu0 %v1960
        %1983 = vmatprep.subr.bf16.mxu0 0
        %1984 = vmatpush1.bf16.msra.mxu0 %v1961
        %1985 = vmatprep.subr.bf16.mxu0 0
        %1986 = vmatpush1.bf16.msra.mxu0 %v1962
        %1987 = vmatprep.subr.bf16.mxu0 0
        %1988 = vmatpush1.bf16.msra.mxu0 0
        %1989 = vmatprep.subr.bf16.mxu0 0
        %1990 = vmatpush1.bf16.msra.mxu0 0
        %1991 = vmatprep.subr.bf16.mxu0 0
        %1992 = vmatpush1.bf16.msra.mxu0 0
        %1993 = vmatprep.subr.bf16.mxu0 0
        %1994 = vmatpush1.bf16.msra.mxu0 0
        %1995 = vmatprep.subr.bf16.mxu0 0
        %1996 = vmatpush1.bf16.msra.mxu0 0
        %1997 = vmatprep.subr.bf16.mxu0 0
        %1998 = vmatpush1.bf16.msra.mxu0 0
        %1999 = vmatprep.subr.bf16.mxu0 0
        %2000 = vmatpush1.bf16.msra.mxu0 0
        %2001 = vmatprep.subr.bf16.mxu0 0
        %2002 = vmatpush1.bf16.msra.mxu0 0
        %2003 = vmatprep.mubr.bf16.mxu0 0
        %2004 = vmatmul.mubr.bf16.gmra.mrb[0].mxu0 %v564
        %v2005 = vpop.f32.mrb[0].mxu0
        %v2006 = vadd.f32 %v1921, %v2005
        %v2007 = vpop.f32.mrb[0].mxu0
        %v2008 = vpop.f32.mrb[0].mxu0
        %v2009 = vadd.f32 %v1921, %v2008
        %v2010 = vpop.f32.mrb[0].mxu0
        %2011 = vmatprep.mubr.bf16.mxu0 0
        %2012 = vmatmul.mubr.bf16.gmra.mrb[0].mxu0 %v565
        %v2013 = vpop.f32.mrb[0].mxu0
        %v2014 = vadd.f32 %v1921, %v2013
        %v2015 = vpop.f32.mrb[0].mxu0
        %v2016 = vpop.f32.mrb[0].mxu0
        %v2017 = vadd.f32 %v1921, %v2016
        %v2018 = vpop.f32.mrb[0].mxu0
        %2019 = vmatprep.mubr.bf16.mxu0 0
        %2020 = vmatmul.mubr.bf16.gmra.mrb[0].mxu0 %v566
        %v2021 = vpop.f32.mrb[0].mxu0
        %v2022 = vadd.f32 %v1921, %v2021
        %v2023 = vpop.f32.mrb[0].mxu0
        %v2024 = vpop.f32.mrb[0].mxu0
        %v2025 = vadd.f32 %v1921, %v2024
        %v2026 = vpop.f32.mrb[0].mxu0
        %2027 = vmatprep.mubr.bf16.mxu0 0
        %2028 = vmatmul.mubr.bf16.gmra.mrb[0].mxu0 %v567
        %v2029 = vpop.f32.mrb[0].mxu0
        %v2030 = vadd.f32 %v1921, %v2029
        %v2031 = vpop.f32.mrb[0].mxu0
        %v2032 = vpop.f32.mrb[0].mxu0
        %v2033 = vadd.f32 %v1921, %v2032
        %v2034 = vpop.f32.mrb[0].mxu0
        %2035 = vmatprep.mubr.bf16.mxu0 0
        %2036 = vmatmul.mubr.bf16.gmra.mrb[0].mxu0 %v568
        %v2037 = vpop.f32.mrb[0].mxu0
        %v2038 = vadd.f32 %v1921, %v2037
        %v2039 = vpop.f32.mrb[0].mxu0
        %v2040 = vpop.f32.mrb[0].mxu0
        %v2041 = vadd.f32 %v1921, %v2040
        %v2042 = vpop.f32.mrb[0].mxu0
        %2043 = vmatprep.mubr.bf16.mxu0 0
        %2044 = vmatmul.mubr.bf16.gmra.mrb[0].mxu0 %v569
        %v2045 = vpop.f32.mrb[0].mxu0
        %v2046 = vadd.f32 %v1921, %v2045
        %v2047 = vpop.f32.mrb[0].mxu0
        %v2048 = vpop.f32.mrb[0].mxu0
        %v2049 = vadd.f32 %v1921, %v2048
        %v2050 = vpop.f32.mrb[0].mxu0
        %2051 = vmatprep.mubr.bf16.mxu0 0
        %2052 = vmatmul.mubr.bf16.gmra.mrb[0].mxu0 %v570
        %v2053 = vpop.f32.mrb[0].mxu0
        %v2054 = vadd.f32 %v1921, %v2053
        %v2055 = vpop.f32.mrb[0].mxu0
        %v2056 = vpop.f32.mrb[0].mxu0
        %v2057 = vadd.f32 %v1921, %v2056
        %v2058 = vpop.f32.mrb[0].mxu0
        %2059 = vmatprep.mubr.bf16.mxu0 0
        %2060 = vmatmul.mubr.bf16.gmra.mrb[0].mxu0 %v571
        %v2061 = vpop.f32.mrb[0].mxu0
        %v2062 = vadd.f32 %v1921, %v2061
        %v2063 = vpop.f32.mrb[0].mxu0
        %v2064 = vpop.f32.mrb[0].mxu0
        %v2065 = vadd.f32 %v1921, %v2064
        %v2066 = vpop.f32.mrb[0].mxu0
        %2067 = vdwg.mxu0
        %v2068 = vpack.c.bf16 %v1669, %v1666
        %v2069 = vpack.c.bf16 %v1677, %v1674
        %v2070 = vpack.c.bf16 %v1685, %v1682
        %v2071 = vpack.c.bf16 %v1693, %v1690
        %v2072 = vpack.c.bf16 %v1701, %v1698
        %v2073 = vpack.c.bf16 %v1709, %v1706
        %v2074 = vpack.c.bf16 %v1717, %v1714
        %v2075 = vpack.c.bf16 %v1725, %v1722
        %v2076 = vpack.c.bf16 %v1839, %v1836
        %v2077 = vpack.c.bf16 %v1847, %v1844
        %v2078 = vpack.c.bf16 %v1855, %v1852
        %v2079 = vpack.c.bf16 %v1863, %v1860
        %v2080 = vpack.c.bf16 %v1871, %v1868
        %v2081 = vpack.c.bf16 %v1879, %v1876
        %v2082 = vpack.c.bf16 %v1887, %v1884
        %v2083 = vpack.c.bf16 %v1895, %v1892
        %v2085 = vsel %vm1143, %v2068, 0
        %v2088 = vsel %vm1143, %v2069, 0
        %v2091 = vsel %vm1143, %v2070, 0
        %v2094 = vsel %vm1143, %v2071, 0
        %v2097 = vsel %vm1143, %v2072, 0
        %v2100 = vsel %vm1143, %v2073, 0
        %v2103 = vsel %vm1143, %v2074, 0
        %v2106 = vsel %vm1143, %v2075, 0
        %v2109 = vsel %vm1143, %v2076, 0
        %v2112 = vsel %vm1143, %v2077, 0
        %v2115 = vsel %vm1143, %v2078, 0
        %v2118 = vsel %vm1143, %v2079, 0
        %v2121 = vsel %vm1143, %v2080, 0
        %v2124 = vsel %vm1143, %v2081, 0
        %v2127 = vsel %vm1143, %v2082, 0
        %v2130 = vsel %vm1143, %v2083, 0
        %2132 = vmatprep.subr.bf16.mxu0 0
        %2133 = vmatpush1.bf16.xpose.msra.mxu0 %v2109
        %2134 = vmatprep.subr.bf16.mxu0 0
        %2135 = vmatpush1.bf16.xpose.msra.mxu0 %v2112
        %2136 = vmatprep.subr.bf16.mxu0 0
        %2137 = vmatpush1.bf16.xpose.msra.mxu0 %v2115
        %2138 = vmatprep.subr.bf16.mxu0 0
        %2139 = vmatpush1.bf16.xpose.msra.mxu0 %v2118
        %2140 = vmatprep.subr.bf16.mxu0 0
        %2141 = vmatpush1.bf16.xpose.msra.mxu0 %v2121
        %2142 = vmatprep.subr.bf16.mxu0 0
        %2143 = vmatpush1.bf16.xpose.msra.mxu0 %v2124
        %2144 = vmatprep.subr.bf16.mxu0 0
        %2145 = vmatpush1.bf16.xpose.msra.mxu0 %v2127
        %2146 = vmatprep.subr.bf16.mxu0 0
        %2147 = vmatpush1.bf16.xpose.msra.mxu0 %v2130
        %2148 = vmatprep.subr.bf16.mxu0 0
        %2149 = vmatpush1.bf16.xpose.msra.mxu0 0
        %2150 = vmatprep.subr.bf16.mxu0 0
        %2151 = vmatpush1.bf16.xpose.msra.mxu0 0
        %2152 = vmatprep.subr.bf16.mxu0 0
        %2153 = vmatpush1.bf16.xpose.msra.mxu0 0
        %2154 = vmatprep.subr.bf16.mxu0 0
        %2155 = vmatpush1.bf16.xpose.msra.mxu0 0
        %2156 = vmatprep.subr.bf16.mxu0 0
        %2157 = vmatpush1.bf16.xpose.msra.mxu0 0
        %2158 = vmatprep.subr.bf16.mxu0 0
        %2159 = vmatpush1.bf16.xpose.msra.mxu0 0
        %2160 = vmatprep.subr.bf16.mxu0 0
        %2161 = vmatpush1.bf16.xpose.msra.mxu0 0
        %2162 = vmatprep.subr.bf16.mxu0 0
        %2163 = vmatpush1.bf16.xpose.msra.mxu0 0
        %2164 = vmatprep.mubr.bf16.mxu0 0
        %2165 = vmatmul.mubr.bf16.gmra.mrb[0].mxu0 %v2085
        %v2166 = vpop.f32.mrb[0].mxu0
        %v2167 = vadd.f32 %v607, %v2166
        %v2168 = vpop.f32.mrb[0].mxu0
        %v2169 = vpop.f32.mrb[0].mxu0
        %v2170 = vadd.f32 %v608, %v2169
        %v2171 = vpop.f32.mrb[0].mxu0
        %2172 = vmatprep.mubr.bf16.mxu0 0
        %2173 = vmatmul.mubr.bf16.gmra.mrb[0].mxu0 %v2088
        %v2174 = vpop.f32.mrb[0].mxu0
        %v2175 = vadd.f32 %v609, %v2174
        %v2176 = vpop.f32.mrb[0].mxu0
        %v2177 = vpop.f32.mrb[0].mxu0
        %v2178 = vadd.f32 %v610, %v2177
        %v2179 = vpop.f32.mrb[0].mxu0
        %2180 = vmatprep.mubr.bf16.mxu0 0
        %2181 = vmatmul.mubr.bf16.gmra.mrb[0].mxu0 %v2091
        %v2182 = vpop.f32.mrb[0].mxu0
        %v2183 = vadd.f32 %v611, %v2182
        %v2184 = vpop.f32.mrb[0].mxu0
        %v2185 = vpop.f32.mrb[0].mxu0
        %v2186 = vadd.f32 %v612, %v2185
        %v2187 = vpop.f32.mrb[0].mxu0
        %2188 = vmatprep.mubr.bf16.mxu0 0
        %2189 = vmatmul.mubr.bf16.gmra.mrb[0].mxu0 %v2094
        %v2190 = vpop.f32.mrb[0].mxu0
        %v2191 = vadd.f32 %v613, %v2190
        %v2192 = vpop.f32.mrb[0].mxu0
        %v2193 = vpop.f32.mrb[0].mxu0
        %v2194 = vadd.f32 %v614, %v2193
        %v2195 = vpop.f32.mrb[0].mxu0
        %2196 = vmatprep.mubr.bf16.mxu0 0
        %2197 = vmatmul.mubr.bf16.gmra.mrb[0].mxu0 %v2097
        %v2198 = vpop.f32.mrb[0].mxu0
        %v2199 = vadd.f32 %v615, %v2198
        %v2200 = vpop.f32.mrb[0].mxu0
        %v2201 = vpop.f32.mrb[0].mxu0
        %v2202 = vadd.f32 %v616, %v2201
        %v2203 = vpop.f32.mrb[0].mxu0
        %2204 = vmatprep.mubr.bf16.mxu0 0
        %2205 = vmatmul.mubr.bf16.gmra.mrb[0].mxu0 %v2100
        %v2206 = vpop.f32.mrb[0].mxu0
        %v2207 = vadd.f32 %v617, %v2206
        %v2208 = vpop.f32.mrb[0].mxu0
        %v2209 = vpop.f32.mrb[0].mxu0
        %v2210 = vadd.f32 %v618, %v2209
        %v2211 = vpop.f32.mrb[0].mxu0
        %2212 = vmatprep.mubr.bf16.mxu0 0
        %2213 = vmatmul.mubr.bf16.gmra.mrb[0].mxu0 %v2103
        %v2214 = vpop.f32.mrb[0].mxu0
        %v2215 = vadd.f32 %v619, %v2214
        %v2216 = vpop.f32.mrb[0].mxu0
        %v2217 = vpop.f32.mrb[0].mxu0
        %v2218 = vadd.f32 %v620, %v2217
        %v2219 = vpop.f32.mrb[0].mxu0
        %2220 = vmatprep.mubr.bf16.mxu0 0
        %2221 = vmatmul.mubr.bf16.gmra.mrb[0].mxu0 %v2106
        %v2222 = vpop.f32.mrb[0].mxu0
        %v2223 = vadd.f32 %v621, %v2222
        %v2224 = vpop.f32.mrb[0].mxu0
        %v2225 = vpop.f32.mrb[0].mxu0
        %v2226 = vadd.f32 %v622, %v2225
        %v2227 = vpop.f32.mrb[0].mxu0
        %2228 = vdwg.mxu0
        %2229 = vmax.xlane.f32.xlu0 %v2167
        %v2230 = vpop.xlane.xlu0 %2229
        %2231 = vmax.xlane.f32.xlu0 %v2170
        %v2232 = vpop.xlane.xlu0 %2231
        %2233 = vmax.xlane.f32.xlu0 %v2175
        %v2234 = vpop.xlane.xlu0 %2233
        %2235 = vmax.xlane.f32.xlu0 %v2178
        %v2236 = vpop.xlane.xlu0 %2235
        %2237 = vmax.xlane.f32.xlu0 %v2183
        %v2238 = vpop.xlane.xlu0 %2237
        %2239 = vmax.xlane.f32.xlu0 %v2186
        %v2240 = vpop.xlane.xlu0 %2239
        %2241 = vmax.xlane.f32.xlu0 %v2191
        %v2242 = vpop.xlane.xlu0 %2241
        %2243 = vmax.xlane.f32.xlu0 %v2194
        %v2244 = vpop.xlane.xlu0 %2243
        %2245 = vmax.xlane.f32.xlu0 %v2199
        %v2246 = vpop.xlane.xlu0 %2245
        %2247 = vmax.xlane.f32.xlu0 %v2202
        %v2248 = vpop.xlane.xlu0 %2247
        %2249 = vmax.xlane.f32.xlu0 %v2207
        %v2250 = vpop.xlane.xlu0 %2249
        %2251 = vmax.xlane.f32.xlu0 %v2210
        %v2252 = vpop.xlane.xlu0 %2251
        %2253 = vmax.xlane.f32.xlu0 %v2215
        %v2254 = vpop.xlane.xlu0 %2253
        %2255 = vmax.xlane.f32.xlu0 %v2218
        %v2256 = vpop.xlane.xlu0 %2255
        %2257 = vmax.xlane.f32.xlu0 %v2223
        %v2258 = vpop.xlane.xlu0 %2257
        %2259 = vmax.xlane.f32.xlu0 %v2226
        %v2260 = vpop.xlane.xlu0 %2259
        %v2261 = vsub.f32 %v2167, %v2230
        %v2262 = vsub.f32 %v2170, %v2232
        %v2263 = vsub.f32 %v2175, %v2234
        %v2264 = vsub.f32 %v2178, %v2236
        %v2265 = vsub.f32 %v2183, %v2238
        %v2266 = vsub.f32 %v2186, %v2240
        %v2267 = vsub.f32 %v2191, %v2242
        %v2268 = vsub.f32 %v2194, %v2244
        %v2269 = vsub.f32 %v2199, %v2246
        %v2270 = vsub.f32 %v2202, %v2248
        %v2271 = vsub.f32 %v2207, %v2250
        %v2272 = vsub.f32 %v2210, %v2252
        %v2273 = vsub.f32 %v2215, %v2254
        %v2274 = vsub.f32 %v2218, %v2256
        %v2275 = vsub.f32 %v2223, %v2258
        %v2276 = vsub.f32 %v2226, %v2260
        %v2277 = vmul.f32 %v2261, 1.442695
        %v2278 = vpow.pop %v2277
        %v2279 = vmul.f32 %v2262, 1.442695
        %v2280 = vpow.pop %v2279
        %v2281 = vmul.f32 %v2263, 1.442695
        %v2282 = vpow.pop %v2281
        %v2283 = vmul.f32 %v2264, 1.442695
        %v2284 = vpow.pop %v2283
        %v2285 = vmul.f32 %v2265, 1.442695
        %v2286 = vpow.pop %v2285
        %v2287 = vmul.f32 %v2266, 1.442695
        %v2288 = vpow.pop %v2287
        %v2289 = vmul.f32 %v2267, 1.442695
        %v2290 = vpow.pop %v2289
        %v2291 = vmul.f32 %v2268, 1.442695
        %v2292 = vpow.pop %v2291
        %v2293 = vmul.f32 %v2269, 1.442695
        %v2294 = vpow.pop %v2293
        %v2295 = vmul.f32 %v2270, 1.442695
        %v2296 = vpow.pop %v2295
        %v2297 = vmul.f32 %v2271, 1.442695
        %v2298 = vpow.pop %v2297
        %v2299 = vmul.f32 %v2272, 1.442695
        %v2300 = vpow.pop %v2299
        %v2301 = vmul.f32 %v2273, 1.442695
        %v2302 = vpow.pop %v2301
        %v2303 = vmul.f32 %v2274, 1.442695
        %v2304 = vpow.pop %v2303
        %v2305 = vmul.f32 %v2275, 1.442695
        %v2306 = vpow.pop %v2305
        %v2307 = vmul.f32 %v2276, 1.442695
        %v2308 = vpow.pop %v2307
        %2309 = vadd.xlane.f32.xlu0 %v2278
        %v2310 = vpop.xlane.xlu0 %2309
        %2311 = vadd.xlane.f32.xlu0 %v2280
        %v2312 = vpop.xlane.xlu0 %2311
        %2313 = vadd.xlane.f32.xlu0 %v2282
        %v2314 = vpop.xlane.xlu0 %2313
        %2315 = vadd.xlane.f32.xlu0 %v2284
        %v2316 = vpop.xlane.xlu0 %2315
        %2317 = vadd.xlane.f32.xlu0 %v2286
        %v2318 = vpop.xlane.xlu0 %2317
        %2319 = vadd.xlane.f32.xlu0 %v2288
        %v2320 = vpop.xlane.xlu0 %2319
        %2321 = vadd.xlane.f32.xlu0 %v2290
        %v2322 = vpop.xlane.xlu0 %2321
        %2323 = vadd.xlane.f32.xlu0 %v2292
        %v2324 = vpop.xlane.xlu0 %2323
        %2325 = vadd.xlane.f32.xlu0 %v2294
        %v2326 = vpop.xlane.xlu0 %2325
        %2327 = vadd.xlane.f32.xlu0 %v2296
        %v2328 = vpop.xlane.xlu0 %2327
        %2329 = vadd.xlane.f32.xlu0 %v2298
        %v2330 = vpop.xlane.xlu0 %2329
        %2331 = vadd.xlane.f32.xlu0 %v2300
        %v2332 = vpop.xlane.xlu0 %2331
        %2333 = vadd.xlane.f32.xlu0 %v2302
        %v2334 = vpop.xlane.xlu0 %2333
        %2335 = vadd.xlane.f32.xlu0 %v2304
        %v2336 = vpop.xlane.xlu0 %2335
        %2337 = vadd.xlane.f32.xlu0 %v2306
        %v2338 = vpop.xlane.xlu0 %2337
        %2339 = vadd.xlane.f32.xlu0 %v2308
        %v2340 = vpop.xlane.xlu0 %2339
        %v2341 = vrcp.pop %v2310
        %v2342 = vrcp.pop %v2312
        %v2343 = vrcp.pop %v2314
        %v2344 = vrcp.pop %v2316
        %v2345 = vrcp.pop %v2318
        %v2346 = vrcp.pop %v2320
        %v2347 = vrcp.pop %v2322
        %v2348 = vrcp.pop %v2324
        %v2349 = vrcp.pop %v2326
        %v2350 = vrcp.pop %v2328
        %v2351 = vrcp.pop %v2330
        %v2352 = vrcp.pop %v2332
        %v2353 = vrcp.pop %v2334
        %v2354 = vrcp.pop %v2336
        %v2355 = vrcp.pop %v2338
        %v2356 = vrcp.pop %v2340
        %v2357 = vmul.f32 %v2278, %v2341
        %v2358 = vmul.f32 %v2280, %v2342
        %v2359 = vmul.f32 %v2282, %v2343
        %v2360 = vmul.f32 %v2284, %v2344
        %v2361 = vmul.f32 %v2286, %v2345
        %v2362 = vmul.f32 %v2288, %v2346
        %v2363 = vmul.f32 %v2290, %v2347
        %v2364 = vmul.f32 %v2292, %v2348
        %v2365 = vmul.f32 %v2294, %v2349
        %v2366 = vmul.f32 %v2296, %v2350
        %v2367 = vmul.f32 %v2298, %v2351
        %v2368 = vmul.f32 %v2300, %v2352
        %v2369 = vmul.f32 %v2302, %v2353
        %v2370 = vmul.f32 %v2304, %v2354
        %v2371 = vmul.f32 %v2306, %v2355
        %v2372 = vmul.f32 %v2308, %v2356
        %v2373 = vpack.c.bf16 %v2358, %v2357
        %v2374 = vpack.c.bf16 %v2360, %v2359
        %v2375 = vpack.c.bf16 %v2362, %v2361
        %v2376 = vpack.c.bf16 %v2364, %v2363
        %v2377 = vpack.c.bf16 %v2366, %v2365
        %v2378 = vpack.c.bf16 %v2368, %v2367
        %v2379 = vpack.c.bf16 %v2370, %v2369
        %v2380 = vpack.c.bf16 %v2372, %v2371
        %v2381 = vpack.c.bf16 %v2009, %v2006
        %v2382 = vpack.c.bf16 %v2017, %v2014
        %v2383 = vpack.c.bf16 %v2025, %v2022
        %v2384 = vpack.c.bf16 %v2033, %v2030
        %v2385 = vpack.c.bf16 %v2041, %v2038
        %v2386 = vpack.c.bf16 %v2049, %v2046
        %v2387 = vpack.c.bf16 %v2057, %v2054
        %v2388 = vpack.c.bf16 %v2065, %v2062
        %2389 = vmatprep.subr.bf16.mxu0 0
        %2390 = vmatpush1.bf16.msra.mxu0 %v2381
        %2391 = vmatprep.subr.bf16.mxu0 0
        %2392 = vmatpush1.bf16.msra.mxu0 %v2382
        %2393 = vmatprep.subr.bf16.mxu0 0
        %2394 = vmatpush1.bf16.msra.mxu0 %v2383
        %2395 = vmatprep.subr.bf16.mxu0 0
        %2396 = vmatpush1.bf16.msra.mxu0 %v2384
        %2397 = vmatprep.subr.bf16.mxu0 0
        %2398 = vmatpush1.bf16.msra.mxu0 %v2385
        %2399 = vmatprep.subr.bf16.mxu0 0
        %2400 = vmatpush1.bf16.msra.mxu0 %v2386
        %2401 = vmatprep.subr.bf16.mxu0 0
        %2402 = vmatpush1.bf16.msra.mxu0 %v2387
        %2403 = vmatprep.subr.bf16.mxu0 0
        %2404 = vmatpush1.bf16.msra.mxu0 %v2388
        %2405 = vmatprep.subr.bf16.mxu0 0
        %2406 = vmatpush1.bf16.msra.mxu0 0
        %2407 = vmatprep.subr.bf16.mxu0 0
        %2408 = vmatpush1.bf16.msra.mxu0 0
        %2409 = vmatprep.subr.bf16.mxu0 0
        %2410 = vmatpush1.bf16.msra.mxu0 0
        %2411 = vmatprep.subr.bf16.mxu0 0
        %2412 = vmatpush1.bf16.msra.mxu0 0
        %2413 = vmatprep.subr.bf16.mxu0 0
        %2414 = vmatpush1.bf16.msra.mxu0 0
        %2415 = vmatprep.subr.bf16.mxu0 0
        %2416 = vmatpush1.bf16.msra.mxu0 0
        %2417 = vmatprep.subr.bf16.mxu0 0
        %2418 = vmatpush1.bf16.msra.mxu0 0
        %2419 = vmatprep.subr.bf16.mxu0 0
        %2420 = vmatpush1.bf16.msra.mxu0 0
        %2421 = vmatprep.mubr.bf16.mxu0 0
        %2422 = vmatmul.mubr.bf16.gmra.mrb[0].mxu0 %v2373
        %v2423 = vpop.f32.mrb[0].mxu0
        %v2424 = vadd.f32 0.0, %v2423
        %v2425 = vpop.f32.mrb[0].mxu0
        %v2426 = vpop.f32.mrb[0].mxu0
        %v2427 = vadd.f32 0.0, %v2426
        %v2428 = vpop.f32.mrb[0].mxu0
        %2429 = vmatprep.mubr.bf16.mxu0 0
        %2430 = vmatmul.mubr.bf16.gmra.mrb[0].mxu0 %v2374
        %v2431 = vpop.f32.mrb[0].mxu0
        %v2432 = vadd.f32 0.0, %v2431
        %v2433 = vpop.f32.mrb[0].mxu0
        %v2434 = vpop.f32.mrb[0].mxu0
        %v2435 = vadd.f32 0.0, %v2434
        %v2436 = vpop.f32.mrb[0].mxu0
        %2437 = vmatprep.mubr.bf16.mxu0 0
        %2438 = vmatmul.mubr.bf16.gmra.mrb[0].mxu0 %v2375
        %v2439 = vpop.f32.mrb[0].mxu0
        %v2440 = vadd.f32 0.0, %v2439
        %v2441 = vpop.f32.mrb[0].mxu0
        %v2442 = vpop.f32.mrb[0].mxu0
        %v2443 = vadd.f32 0.0, %v2442
        %v2444 = vpop.f32.mrb[0].mxu0
        %2445 = vmatprep.mubr.bf16.mxu0 0
        %2446 = vmatmul.mubr.bf16.gmra.mrb[0].mxu0 %v2376
        %v2447 = vpop.f32.mrb[0].mxu0
        %v2448 = vadd.f32 0.0, %v2447
        %v2449 = vpop.f32.mrb[0].mxu0
        %v2450 = vpop.f32.mrb[0].mxu0
        %v2451 = vadd.f32 0.0, %v2450
        %v2452 = vpop.f32.mrb[0].mxu0
        %2453 = vmatprep.mubr.bf16.mxu0 0
        %2454 = vmatmul.mubr.bf16.gmra.mrb[0].mxu0 %v2377
        %v2455 = vpop.f32.mrb[0].mxu0
        %v2456 = vadd.f32 0.0, %v2455
        %v2457 = vpop.f32.mrb[0].mxu0
        %v2458 = vpop.f32.mrb[0].mxu0
        %v2459 = vadd.f32 0.0, %v2458
        %v2460 = vpop.f32.mrb[0].mxu0
        %2461 = vmatprep.mubr.bf16.mxu0 0
        %2462 = vmatmul.mubr.bf16.gmra.mrb[0].mxu0 %v2378
        %v2463 = vpop.f32.mrb[0].mxu0
        %v2464 = vadd.f32 0.0, %v2463
        %v2465 = vpop.f32.mrb[0].mxu0
        %v2466 = vpop.f32.mrb[0].mxu0
        %v2467 = vadd.f32 0.0, %v2466
        %v2468 = vpop.f32.mrb[0].mxu0
        %2469 = vmatprep.mubr.bf16.mxu0 0
        %2470 = vmatmul.mubr.bf16.gmra.mrb[0].mxu0 %v2379
        %v2471 = vpop.f32.mrb[0].mxu0
        %v2472 = vadd.f32 0.0, %v2471
        %v2473 = vpop.f32.mrb[0].mxu0
        %v2474 = vpop.f32.mrb[0].mxu0
        %v2475 = vadd.f32 0.0, %v2474
        %v2476 = vpop.f32.mrb[0].mxu0
        %2477 = vmatprep.mubr.bf16.mxu0 0
        %2478 = vmatmul.mubr.bf16.gmra.mrb[0].mxu0 %v2380
        %v2479 = vpop.f32.mrb[0].mxu0
        %v2480 = vadd.f32 0.0, %v2479
        %v2481 = vpop.f32.mrb[0].mxu0
        %v2482 = vpop.f32.mrb[0].mxu0
        %v2483 = vadd.f32 0.0, %v2482
        %v2484 = vpop.f32.mrb[0].mxu0
        %2485 = vdwg.mxu0
        %v2486 = vpack.c.bf16 %v2427, %v2424
        %v2487 = vpack.c.bf16 %v2435, %v2432
        %v2488 = vpack.c.bf16 %v2443, %v2440
        %v2489 = vpack.c.bf16 %v2451, %v2448
        %v2490 = vpack.c.bf16 %v2459, %v2456
        %v2491 = vpack.c.bf16 %v2467, %v2464
        %v2492 = vpack.c.bf16 %v2475, %v2472
        %v2493 = vpack.c.bf16 %v2483, %v2480
        %s2494 = scalar_lea.vmem %s7, 16
        %v2495 = vld [vmem:[%s2494] sm:$0xf]
        %v2496 = vld [vmem:[%s2494 + $0x4] sm:$0xf]
        %v2497 = vld [vmem:[%s2494 + $0x8] sm:$0xf]
        %v2498 = vld [vmem:[%s2494 + $0xc] sm:$0xf]
        %v2503 = vunpack.c.l.b16 %v2495
        %v2504 = vunpack.c.l.b16 %v2496
        %v2505 = vunpack.c.l.b16 %v2497
        %v2506 = vunpack.c.l.b16 %v2498
        %v2507 = vpack.c.b16 %v2504, %v2503
        %v2508 = vpack.c.b16 %v2506, %v2505
        %v2512 = vsel %vm1143, %v2486, 0
        %v2515 = vsel %vm1143, %v2487, 0
        %v2518 = vsel %vm1143, %v2488, 0
        %v2521 = vsel %vm1143, %v2489, 0
        %v2524 = vsel %vm1143, %v2490, 0
        %v2527 = vsel %vm1143, %v2491, 0
        %v2530 = vsel %vm1143, %v2492, 0
        %v2533 = vsel %vm1143, %v2493, 0
        %2535 = vmatprep.subr.bf16.mxu0 0
        %2536 = vmatpush1.bf16.msra.mxu0 %v2507
        %2537 = vmatprep.subr.bf16.mxu0 0
        %2538 = vmatpush1.bf16.msra.mxu0 %v2508
        %2539 = vmatprep.subr.bf16.mxu0 0
        %2540 = vmatpush1.bf16.msra.mxu0 0
        %2541 = vmatprep.subr.bf16.mxu0 0
        %2542 = vmatpush1.bf16.msra.mxu0 0
        %2543 = vmatprep.subr.bf16.mxu0 0
        %2544 = vmatpush1.bf16.msra.mxu0 0
        %2545 = vmatprep.subr.bf16.mxu0 0
        %2546 = vmatpush1.bf16.msra.mxu0 0
        %2547 = vmatprep.subr.bf16.mxu0 0
        %2548 = vmatpush1.bf16.msra.mxu0 0
        %2549 = vmatprep.subr.bf16.mxu0 0
        %2550 = vmatpush1.bf16.msra.mxu0 0
        %2551 = vmatprep.subr.bf16.mxu0 0
        %2552 = vmatpush1.bf16.msra.mxu0 0
        %2553 = vmatprep.subr.bf16.mxu0 0
        %2554 = vmatpush1.bf16.msra.mxu0 0
        %2555 = vmatprep.subr.bf16.mxu0 0
        %2556 = vmatpush1.bf16.msra.mxu0 0
        %2557 = vmatprep.subr.bf16.mxu0 0
        %2558 = vmatpush1.bf16.msra.mxu0 0
        %2559 = vmatprep.subr.bf16.mxu0 0
        %2560 = vmatpush1.bf16.msra.mxu0 0
        %2561 = vmatprep.subr.bf16.mxu0 0
        %2562 = vmatpush1.bf16.msra.mxu0 0
        %2563 = vmatprep.subr.bf16.mxu0 0
        %2564 = vmatpush1.bf16.msra.mxu0 0
        %2565 = vmatprep.subr.bf16.mxu0 0
        %2566 = vmatpush1.bf16.msra.mxu0 0
        %2567 = vmatprep.mubr.bf16.mxu0 0
        %2568 = vmatmul.mubr.bf16.gmra.mrb[0].mxu0 %v2512
        %v2569 = vpop.f32.mrb[0].mxu0
        %v2570 = vadd.f32 0.0, %v2569
        %v2571 = vpop.f32.mrb[0].mxu0
        %v2572 = vpop.f32.mrb[0].mxu0
        %v2573 = vadd.f32 0.0, %v2572
        %v2574 = vpop.f32.mrb[0].mxu0
        %2575 = vmatprep.mubr.bf16.mxu0 0
        %2576 = vmatmul.mubr.bf16.gmra.mrb[0].mxu0 %v2515
        %v2577 = vpop.f32.mrb[0].mxu0
        %v2578 = vadd.f32 0.0, %v2577
        %v2579 = vpop.f32.mrb[0].mxu0
        %v2580 = vpop.f32.mrb[0].mxu0
        %v2581 = vadd.f32 0.0, %v2580
        %v2582 = vpop.f32.mrb[0].mxu0
        %2583 = vmatprep.mubr.bf16.mxu0 0
        %2584 = vmatmul.mubr.bf16.gmra.mrb[0].mxu0 %v2518
        %v2585 = vpop.f32.mrb[0].mxu0
        %v2586 = vadd.f32 0.0, %v2585
        %v2587 = vpop.f32.mrb[0].mxu0
        %v2588 = vpop.f32.mrb[0].mxu0
        %v2589 = vadd.f32 0.0, %v2588
        %v2590 = vpop.f32.mrb[0].mxu0
        %2591 = vmatprep.mubr.bf16.mxu0 0
        %2592 = vmatmul.mubr.bf16.gmra.mrb[0].mxu0 %v2521
        %v2593 = vpop.f32.mrb[0].mxu0
        %v2594 = vadd.f32 0.0, %v2593
        %v2595 = vpop.f32.mrb[0].mxu0
        %v2596 = vpop.f32.mrb[0].mxu0
        %v2597 = vadd.f32 0.0, %v2596
        %v2598 = vpop.f32.mrb[0].mxu0
        %2599 = vmatprep.mubr.bf16.mxu0 0
        %2600 = vmatmul.mubr.bf16.gmra.mrb[0].mxu0 %v2524
        %v2601 = vpop.f32.mrb[0].mxu0
        %v2602 = vadd.f32 0.0, %v2601
        %v2603 = vpop.f32.mrb[0].mxu0
        %v2604 = vpop.f32.mrb[0].mxu0
        %v2605 = vadd.f32 0.0, %v2604
        %v2606 = vpop.f32.mrb[0].mxu0
        %2607 = vmatprep.mubr.bf16.mxu0 0
        %2608 = vmatmul.mubr.bf16.gmra.mrb[0].mxu0 %v2527
        %v2609 = vpop.f32.mrb[0].mxu0
        %v2610 = vadd.f32 0.0, %v2609
        %v2611 = vpop.f32.mrb[0].mxu0
        %v2612 = vpop.f32.mrb[0].mxu0
        %v2613 = vadd.f32 0.0, %v2612
        %v2614 = vpop.f32.mrb[0].mxu0
        %2615 = vmatprep.mubr.bf16.mxu0 0
        %2616 = vmatmul.mubr.bf16.gmra.mrb[0].mxu0 %v2530
        %v2617 = vpop.f32.mrb[0].mxu0
        %v2618 = vadd.f32 0.0, %v2617
        %v2619 = vpop.f32.mrb[0].mxu0
        %v2620 = vpop.f32.mrb[0].mxu0
        %v2621 = vadd.f32 0.0, %v2620
        %v2622 = vpop.f32.mrb[0].mxu0
        %2623 = vmatprep.mubr.bf16.mxu0 0
        %2624 = vmatmul.mubr.bf16.gmra.mrb[0].mxu0 %v2533
        %v2625 = vpop.f32.mrb[0].mxu0
        %v2626 = vadd.f32 0.0, %v2625
        %v2627 = vpop.f32.mrb[0].mxu0
        %v2628 = vpop.f32.mrb[0].mxu0
        %v2629 = vadd.f32 0.0, %v2628
        %v2630 = vpop.f32.mrb[0].mxu0
        %2631 = vdwg.mxu0
        %v2636 = vunpack.c.l.b16 %v1554
        %v2637 = vunpack.c.l.b16 %v1555
        %v2638 = vunpack.c.l.b16 %v1556
        %v2639 = vunpack.c.l.b16 %v1557
        %v2640 = vpack.c.b16 %v2637, %v2636
        %v2641 = vpack.c.b16 %v2639, %v2638
        %v2645 = vsel %vm1143, %v1546, 0
        %v2648 = vsel %vm1143, %v1547, 0
        %v2651 = vsel %vm1143, %v1548, 0
        %v2654 = vsel %vm1143, %v1549, 0
        %v2657 = vsel %vm1143, %v1550, 0
        %v2660 = vsel %vm1143, %v1551, 0
        %v2663 = vsel %vm1143, %v1552, 0
        %v2666 = vsel %vm1143, %v1553, 0
        %2668 = vmatprep.subr.bf16.mxu0 0
        %2669 = vmatpush1.bf16.msra.mxu0 %v2640
        %2670 = vmatprep.subr.bf16.mxu0 0
        %2671 = vmatpush1.bf16.msra.mxu0 %v2641
        %2672 = vmatprep.subr.bf16.mxu0 0
        %2673 = vmatpush1.bf16.msra.mxu0 0
        %2674 = vmatprep.subr.bf16.mxu0 0
        %2675 = vmatpush1.bf16.msra.mxu0 0
        %2676 = vmatprep.subr.bf16.mxu0 0
        %2677 = vmatpush1.bf16.msra.mxu0 0
        %2678 = vmatprep.subr.bf16.mxu0 0
        %2679 = vmatpush1.bf16.msra.mxu0 0
        %2680 = vmatprep.subr.bf16.mxu0 0
        %2681 = vmatpush1.bf16.msra.mxu0 0
        %2682 = vmatprep.subr.bf16.mxu0 0
        %2683 = vmatpush1.bf16.msra.mxu0 0
        %2684 = vmatprep.subr.bf16.mxu0 0
        %2685 = vmatpush1.bf16.msra.mxu0 0
        %2686 = vmatprep.subr.bf16.mxu0 0
        %2687 = vmatpush1.bf16.msra.mxu0 0
        %2688 = vmatprep.subr.bf16.mxu0 0
        %2689 = vmatpush1.bf16.msra.mxu0 0
        %2690 = vmatprep.subr.bf16.mxu0 0
        %2691 = vmatpush1.bf16.msra.mxu0 0
        %2692 = vmatprep.subr.bf16.mxu0 0
        %2693 = vmatpush1.bf16.msra.mxu0 0
        %2694 = vmatprep.subr.bf16.mxu0 0
        %2695 = vmatpush1.bf16.msra.mxu0 0
        %2696 = vmatprep.subr.bf16.mxu0 0
        %2697 = vmatpush1.bf16.msra.mxu0 0
        %2698 = vmatprep.subr.bf16.mxu0 0
        %2699 = vmatpush1.bf16.msra.mxu0 0
        %2700 = vmatprep.mubr.bf16.mxu0 0
        %2701 = vmatmul.mubr.bf16.gmra.mrb[0].mxu0 %v2645
        %v2702 = vpop.f32.mrb[0].mxu0
        %v2703 = vadd.f32 %v2570, %v2702
        %v2704 = vpop.f32.mrb[0].mxu0
        %v2705 = vpop.f32.mrb[0].mxu0
        %v2706 = vadd.f32 %v2573, %v2705
        %v2707 = vpop.f32.mrb[0].mxu0
        %2708 = vmatprep.mubr.bf16.mxu0 0
        %2709 = vmatmul.mubr.bf16.gmra.mrb[0].mxu0 %v2648
        %v2710 = vpop.f32.mrb[0].mxu0
        %v2711 = vadd.f32 %v2578, %v2710
        %v2712 = vpop.f32.mrb[0].mxu0
        %v2713 = vpop.f32.mrb[0].mxu0
        %v2714 = vadd.f32 %v2581, %v2713
        %v2715 = vpop.f32.mrb[0].mxu0
        %2716 = vmatprep.mubr.bf16.mxu0 0
        %2717 = vmatmul.mubr.bf16.gmra.mrb[0].mxu0 %v2651
        %v2718 = vpop.f32.mrb[0].mxu0
        %v2719 = vadd.f32 %v2586, %v2718
        %v2720 = vpop.f32.mrb[0].mxu0
        %v2721 = vpop.f32.mrb[0].mxu0
        %v2722 = vadd.f32 %v2589, %v2721
        %v2723 = vpop.f32.mrb[0].mxu0
        %2724 = vmatprep.mubr.bf16.mxu0 0
        %2725 = vmatmul.mubr.bf16.gmra.mrb[0].mxu0 %v2654
        %v2726 = vpop.f32.mrb[0].mxu0
        %v2727 = vadd.f32 %v2594, %v2726
        %v2728 = vpop.f32.mrb[0].mxu0
        %v2729 = vpop.f32.mrb[0].mxu0
        %v2730 = vadd.f32 %v2597, %v2729
        %v2731 = vpop.f32.mrb[0].mxu0
        %2732 = vmatprep.mubr.bf16.mxu0 0
        %2733 = vmatmul.mubr.bf16.gmra.mrb[0].mxu0 %v2657
        %v2734 = vpop.f32.mrb[0].mxu0
        %v2735 = vadd.f32 %v2602, %v2734
        %v2736 = vpop.f32.mrb[0].mxu0
        %v2737 = vpop.f32.mrb[0].mxu0
        %v2738 = vadd.f32 %v2605, %v2737
        %v2739 = vpop.f32.mrb[0].mxu0
        %2740 = vmatprep.mubr.bf16.mxu0 0
        %2741 = vmatmul.mubr.bf16.gmra.mrb[0].mxu0 %v2660
        %v2742 = vpop.f32.mrb[0].mxu0
        %v2743 = vadd.f32 %v2610, %v2742
        %v2744 = vpop.f32.mrb[0].mxu0
        %v2745 = vpop.f32.mrb[0].mxu0
        %v2746 = vadd.f32 %v2613, %v2745
        %v2747 = vpop.f32.mrb[0].mxu0
        %2748 = vmatprep.mubr.bf16.mxu0 0
        %2749 = vmatmul.mubr.bf16.gmra.mrb[0].mxu0 %v2663
        %v2750 = vpop.f32.mrb[0].mxu0
        %v2751 = vadd.f32 %v2618, %v2750
        %v2752 = vpop.f32.mrb[0].mxu0
        %v2753 = vpop.f32.mrb[0].mxu0
        %v2754 = vadd.f32 %v2621, %v2753
        %v2755 = vpop.f32.mrb[0].mxu0
        %2756 = vmatprep.mubr.bf16.mxu0 0
        %2757 = vmatmul.mubr.bf16.gmra.mrb[0].mxu0 %v2666
        %v2758 = vpop.f32.mrb[0].mxu0
        %v2759 = vadd.f32 %v2626, %v2758
        %v2760 = vpop.f32.mrb[0].mxu0
        %v2761 = vpop.f32.mrb[0].mxu0
        %v2762 = vadd.f32 %v2629, %v2761
        %v2763 = vpop.f32.mrb[0].mxu0
        %2764 = vdwg.mxu0
        %s2765 = scalar_lea.vmem %s1, 128
        %v2766 = vld [vmem:[%s2765] sm:$0xf]
        %v2767 = vld [vmem:[%s2765 + $0x4] sm:$0xf]
        %v2768 = vld [vmem:[%s2765 + $0x8] sm:$0xf]
        %v2769 = vld [vmem:[%s2765 + $0xc] sm:$0xf]
        %v2770 = vld [vmem:[%s2765 + $0x10] sm:$0xf]
        %v2771 = vld [vmem:[%s2765 + $0x14] sm:$0xf]
        %v2772 = vld [vmem:[%s2765 + $0x18] sm:$0xf]
        %v2773 = vld [vmem:[%s2765 + $0x1c] sm:$0xf]
        %v2774 = vld [vmem:[%s2765 + $0x20] sm:$0xf]
        %v2775 = vld [vmem:[%s2765 + $0x24] sm:$0xf]
        %v2776 = vld [vmem:[%s2765 + $0x28] sm:$0xf]
        %v2777 = vld [vmem:[%s2765 + $0x2c] sm:$0xf]
        %v2778 = vld [vmem:[%s2765 + $0x30] sm:$0xf]
        %v2779 = vld [vmem:[%s2765 + $0x34] sm:$0xf]
        %v2780 = vld [vmem:[%s2765 + $0x38] sm:$0xf]
        %v2781 = vld [vmem:[%s2765 + $0x3c] sm:$0xf]
        %s2782 = scalar_lea.vmem %s2, 2
        %v2783 = vld [vmem:[%s2782] sm:$0x1]
        %v2785 = vlaneseq
        %v2786 = vshrl.u32 %v2785, 7
        %v2787 = vsub.s32 0, %v2786
        %v2788 = vrot.slane %v2783, %v2787
        %v2806 = vunpack.c.l.b16 %v2766
        %v2807 = vunpack.c.l.b16 %v2767
        %v2808 = vunpack.c.l.b16 %v2768
        %v2809 = vunpack.c.l.b16 %v2769
        %v2810 = vunpack.c.l.b16 %v2770
        %v2811 = vunpack.c.l.b16 %v2771
        %v2812 = vunpack.c.l.b16 %v2772
        %v2813 = vunpack.c.l.b16 %v2773
        %v2814 = vunpack.c.l.b16 %v2774
        %v2815 = vunpack.c.l.b16 %v2775
        %v2816 = vunpack.c.l.b16 %v2776
        %v2817 = vunpack.c.l.b16 %v2777
        %v2818 = vunpack.c.l.b16 %v2778
        %v2819 = vunpack.c.l.b16 %v2779
        %v2820 = vunpack.c.l.b16 %v2780
        %v2821 = vunpack.c.l.b16 %v2781
        %v2822 = vpack.c.b16 %v2807, %v2806
        %v2823 = vpack.c.b16 %v2809, %v2808
        %v2824 = vpack.c.b16 %v2811, %v2810
        %v2825 = vpack.c.b16 %v2813, %v2812
        %v2826 = vpack.c.b16 %v2815, %v2814
        %v2827 = vpack.c.b16 %v2817, %v2816
        %v2828 = vpack.c.b16 %v2819, %v2818
        %v2829 = vpack.c.b16 %v2821, %v2820
        %2838 = vmatprep.subr.bf16.mxu0 0
        %2839 = vmatpush1.bf16.msra.mxu0 %v2822
        %2840 = vmatprep.subr.bf16.mxu0 0
        %2841 = vmatpush1.bf16.msra.mxu0 %v2823
        %2842 = vmatprep.subr.bf16.mxu0 0
        %2843 = vmatpush1.bf16.msra.mxu0 %v2824
        %2844 = vmatprep.subr.bf16.mxu0 0
        %2845 = vmatpush1.bf16.msra.mxu0 %v2825
        %2846 = vmatprep.subr.bf16.mxu0 0
        %2847 = vmatpush1.bf16.msra.mxu0 %v2826
        %2848 = vmatprep.subr.bf16.mxu0 0
        %2849 = vmatpush1.bf16.msra.mxu0 %v2827
        %2850 = vmatprep.subr.bf16.mxu0 0
        %2851 = vmatpush1.bf16.msra.mxu0 %v2828
        %2852 = vmatprep.subr.bf16.mxu0 0
        %2853 = vmatpush1.bf16.msra.mxu0 %v2829
        %2854 = vmatprep.subr.bf16.mxu0 0
        %2855 = vmatpush1.bf16.msra.mxu0 0
        %2856 = vmatprep.subr.bf16.mxu0 0
        %2857 = vmatpush1.bf16.msra.mxu0 0
        %2858 = vmatprep.subr.bf16.mxu0 0
        %2859 = vmatpush1.bf16.msra.mxu0 0
        %2860 = vmatprep.subr.bf16.mxu0 0
        %2861 = vmatpush1.bf16.msra.mxu0 0
        %2862 = vmatprep.subr.bf16.mxu0 0
        %2863 = vmatpush1.bf16.msra.mxu0 0
        %2864 = vmatprep.subr.bf16.mxu0 0
        %2865 = vmatpush1.bf16.msra.mxu0 0
        %2866 = vmatprep.subr.bf16.mxu0 0
        %2867 = vmatpush1.bf16.msra.mxu0 0
        %2868 = vmatprep.subr.bf16.mxu0 0
        %2869 = vmatpush1.bf16.msra.mxu0 0
        %2870 = vmatprep.mubr.bf16.mxu0 0
        %2871 = vmatmul.mubr.bf16.gmra.mrb[0].mxu0 %v564
        %v2872 = vpop.f32.mrb[0].mxu0
        %v2873 = vadd.f32 %v2788, %v2872
        %v2874 = vpop.f32.mrb[0].mxu0
        %v2875 = vpop.f32.mrb[0].mxu0
        %v2876 = vadd.f32 %v2788, %v2875
        %v2877 = vpop.f32.mrb[0].mxu0
        %2878 = vmatprep.mubr.bf16.mxu0 0
        %2879 = vmatmul.mubr.bf16.gmra.mrb[0].mxu0 %v565
        %v2880 = vpop.f32.mrb[0].mxu0
        %v2881 = vadd.f32 %v2788, %v2880
        %v2882 = vpop.f32.mrb[0].mxu0
        %v2883 = vpop.f32.mrb[0].mxu0
        %v2884 = vadd.f32 %v2788, %v2883
        %v2885 = vpop.f32.mrb[0].mxu0
        %2886 = vmatprep.mubr.bf16.mxu0 0
        %2887 = vmatmul.mubr.bf16.gmra.mrb[0].mxu0 %v566
        %v2888 = vpop.f32.mrb[0].mxu0
        %v2889 = vadd.f32 %v2788, %v2888
        %v2890 = vpop.f32.mrb[0].mxu0
        %v2891 = vpop.f32.mrb[0].mxu0
        %v2892 = vadd.f32 %v2788, %v2891
        %v2893 = vpop.f32.mrb[0].mxu0
        %2894 = vmatprep.mubr.bf16.mxu0 0
        %2895 = vmatmul.mubr.bf16.gmra.mrb[0].mxu0 %v567
        %v2896 = vpop.f32.mrb[0].mxu0
        %v2897 = vadd.f32 %v2788, %v2896
        %v2898 = vpop.f32.mrb[0].mxu0
        %v2899 = vpop.f32.mrb[0].mxu0
        %v2900 = vadd.f32 %v2788, %v2899
        %v2901 = vpop.f32.mrb[0].mxu0
        %2902 = vmatprep.mubr.bf16.mxu0 0
        %2903 = vmatmul.mubr.bf16.gmra.mrb[0].mxu0 %v568
        %v2904 = vpop.f32.mrb[0].mxu0
        %v2905 = vadd.f32 %v2788, %v2904
        %v2906 = vpop.f32.mrb[0].mxu0
        %v2907 = vpop.f32.mrb[0].mxu0
        %v2908 = vadd.f32 %v2788, %v2907
        %v2909 = vpop.f32.mrb[0].mxu0
        %2910 = vmatprep.mubr.bf16.mxu0 0
        %2911 = vmatmul.mubr.bf16.gmra.mrb[0].mxu0 %v569
        %v2912 = vpop.f32.mrb[0].mxu0
        %v2913 = vadd.f32 %v2788, %v2912
        %v2914 = vpop.f32.mrb[0].mxu0
        %v2915 = vpop.f32.mrb[0].mxu0
        %v2916 = vadd.f32 %v2788, %v2915
        %v2917 = vpop.f32.mrb[0].mxu0
        %2918 = vmatprep.mubr.bf16.mxu0 0
        %2919 = vmatmul.mubr.bf16.gmra.mrb[0].mxu0 %v570
        %v2920 = vpop.f32.mrb[0].mxu0
        %v2921 = vadd.f32 %v2788, %v2920
        %v2922 = vpop.f32.mrb[0].mxu0
        %v2923 = vpop.f32.mrb[0].mxu0
        %v2924 = vadd.f32 %v2788, %v2923
        %v2925 = vpop.f32.mrb[0].mxu0
        %2926 = vmatprep.mubr.bf16.mxu0 0
        %2927 = vmatmul.mubr.bf16.gmra.mrb[0].mxu0 %v571
        %v2928 = vpop.f32.mrb[0].mxu0
        %v2929 = vadd.f32 %v2788, %v2928
        %v2930 = vpop.f32.mrb[0].mxu0
        %v2931 = vpop.f32.mrb[0].mxu0
        %v2932 = vadd.f32 %v2788, %v2931
        %v2933 = vpop.f32.mrb[0].mxu0
        %2934 = vdwg.mxu0
        %s2935 = scalar_lea.vmem %s3, 128
        %v2936 = vld [vmem:[%s2935] sm:$0xf]
        %v2937 = vld [vmem:[%s2935 + $0x4] sm:$0xf]
        %v2938 = vld [vmem:[%s2935 + $0x8] sm:$0xf]
        %v2939 = vld [vmem:[%s2935 + $0xc] sm:$0xf]
        %v2940 = vld [vmem:[%s2935 + $0x10] sm:$0xf]
        %v2941 = vld [vmem:[%s2935 + $0x14] sm:$0xf]
        %v2942 = vld [vmem:[%s2935 + $0x18] sm:$0xf]
        %v2943 = vld [vmem:[%s2935 + $0x1c] sm:$0xf]
        %v2944 = vld [vmem:[%s2935 + $0x20] sm:$0xf]
        %v2945 = vld [vmem:[%s2935 + $0x24] sm:$0xf]
        %v2946 = vld [vmem:[%s2935 + $0x28] sm:$0xf]
        %v2947 = vld [vmem:[%s2935 + $0x2c] sm:$0xf]
        %v2948 = vld [vmem:[%s2935 + $0x30] sm:$0xf]
        %v2949 = vld [vmem:[%s2935 + $0x34] sm:$0xf]
        %v2950 = vld [vmem:[%s2935 + $0x38] sm:$0xf]
        %v2951 = vld [vmem:[%s2935 + $0x3c] sm:$0xf]
        %s2952 = scalar_lea.vmem %s4, 2
        %v2953 = vld [vmem:[%s2952] sm:$0x1]
        %v2955 = vlaneseq
        %v2956 = vshrl.u32 %v2955, 7
        %v2957 = vsub.s32 0, %v2956
        %v2958 = vrot.slane %v2953, %v2957
        %v2976 = vunpack.c.l.b16 %v2936
        %v2977 = vunpack.c.l.b16 %v2937
        %v2978 = vunpack.c.l.b16 %v2938
        %v2979 = vunpack.c.l.b16 %v2939
        %v2980 = vunpack.c.l.b16 %v2940
        %v2981 = vunpack.c.l.b16 %v2941
        %v2982 = vunpack.c.l.b16 %v2942
        %v2983 = vunpack.c.l.b16 %v2943
        %v2984 = vunpack.c.l.b16 %v2944
        %v2985 = vunpack.c.l.b16 %v2945
        %v2986 = vunpack.c.l.b16 %v2946
        %v2987 = vunpack.c.l.b16 %v2947
        %v2988 = vunpack.c.l.b16 %v2948
        %v2989 = vunpack.c.l.b16 %v2949
        %v2990 = vunpack.c.l.b16 %v2950
        %v2991 = vunpack.c.l.b16 %v2951
        %v2992 = vpack.c.b16 %v2977, %v2976
        %v2993 = vpack.c.b16 %v2979, %v2978
        %v2994 = vpack.c.b16 %v2981, %v2980
        %v2995 = vpack.c.b16 %v2983, %v2982
        %v2996 = vpack.c.b16 %v2985, %v2984
        %v2997 = vpack.c.b16 %v2987, %v2986
        %v2998 = vpack.c.b16 %v2989, %v2988
        %v2999 = vpack.c.b16 %v2991, %v2990
        %3008 = vmatprep.subr.bf16.mxu0 0
        %3009 = vmatpush1.bf16.msra.mxu0 %v2992
        %3010 = vmatprep.subr.bf16.mxu0 0
        %3011 = vmatpush1.bf16.msra.mxu0 %v2993
        %3012 = vmatprep.subr.bf16.mxu0 0
        %3013 = vmatpush1.bf16.msra.mxu0 %v2994
        %3014 = vmatprep.subr.bf16.mxu0 0
        %3015 = vmatpush1.bf16.msra.mxu0 %v2995
        %3016 = vmatprep.subr.bf16.mxu0 0
        %3017 = vmatpush1.bf16.msra.mxu0 %v2996
        %3018 = vmatprep.subr.bf16.mxu0 0
        %3019 = vmatpush1.bf16.msra.mxu0 %v2997
        %3020 = vmatprep.subr.bf16.mxu0 0
        %3021 = vmatpush1.bf16.msra.mxu0 %v2998
        %3022 = vmatprep.subr.bf16.mxu0 0
        %3023 = vmatpush1.bf16.msra.mxu0 %v2999
        %3024 = vmatprep.subr.bf16.mxu0 0
        %3025 = vmatpush1.bf16.msra.mxu0 0
        %3026 = vmatprep.subr.bf16.mxu0 0
        %3027 = vmatpush1.bf16.msra.mxu0 0
        %3028 = vmatprep.subr.bf16.mxu0 0
        %3029 = vmatpush1.bf16.msra.mxu0 0
        %3030 = vmatprep.subr.bf16.mxu0 0
        %3031 = vmatpush1.bf16.msra.mxu0 0
        %3032 = vmatprep.subr.bf16.mxu0 0
        %3033 = vmatpush1.bf16.msra.mxu0 0
        %3034 = vmatprep.subr.bf16.mxu0 0
        %3035 = vmatpush1.bf16.msra.mxu0 0
        %3036 = vmatprep.subr.bf16.mxu0 0
        %3037 = vmatpush1.bf16.msra.mxu0 0
        %3038 = vmatprep.subr.bf16.mxu0 0
        %3039 = vmatpush1.bf16.msra.mxu0 0
        %3040 = vmatprep.mubr.bf16.mxu0 0
        %3041 = vmatmul.mubr.bf16.gmra.mrb[0].mxu0 %v564
        %v3042 = vpop.f32.mrb[0].mxu0
        %v3043 = vadd.f32 %v2958, %v3042
        %v3044 = vpop.f32.mrb[0].mxu0
        %v3045 = vpop.f32.mrb[0].mxu0
        %v3046 = vadd.f32 %v2958, %v3045
        %v3047 = vpop.f32.mrb[0].mxu0
        %3048 = vmatprep.mubr.bf16.mxu0 0
        %3049 = vmatmul.mubr.bf16.gmra.mrb[0].mxu0 %v565
        %v3050 = vpop.f32.mrb[0].mxu0
        %v3051 = vadd.f32 %v2958, %v3050
        %v3052 = vpop.f32.mrb[0].mxu0
        %v3053 = vpop.f32.mrb[0].mxu0
        %v3054 = vadd.f32 %v2958, %v3053
        %v3055 = vpop.f32.mrb[0].mxu0
        %3056 = vmatprep.mubr.bf16.mxu0 0
        %3057 = vmatmul.mubr.bf16.gmra.mrb[0].mxu0 %v566
        %v3058 = vpop.f32.mrb[0].mxu0
        %v3059 = vadd.f32 %v2958, %v3058
        %v3060 = vpop.f32.mrb[0].mxu0
        %v3061 = vpop.f32.mrb[0].mxu0
        %v3062 = vadd.f32 %v2958, %v3061
        %v3063 = vpop.f32.mrb[0].mxu0
        %3064 = vmatprep.mubr.bf16.mxu0 0
        %3065 = vmatmul.mubr.bf16.gmra.mrb[0].mxu0 %v567
        %v3066 = vpop.f32.mrb[0].mxu0
        %v3067 = vadd.f32 %v2958, %v3066
        %v3068 = vpop.f32.mrb[0].mxu0
        %v3069 = vpop.f32.mrb[0].mxu0
        %v3070 = vadd.f32 %v2958, %v3069
        %v3071 = vpop.f32.mrb[0].mxu0
        %3072 = vmatprep.mubr.bf16.mxu0 0
        %3073 = vmatmul.mubr.bf16.gmra.mrb[0].mxu0 %v568
        %v3074 = vpop.f32.mrb[0].mxu0
        %v3075 = vadd.f32 %v2958, %v3074
        %v3076 = vpop.f32.mrb[0].mxu0
        %v3077 = vpop.f32.mrb[0].mxu0
        %v3078 = vadd.f32 %v2958, %v3077
        %v3079 = vpop.f32.mrb[0].mxu0
        %3080 = vmatprep.mubr.bf16.mxu0 0
        %3081 = vmatmul.mubr.bf16.gmra.mrb[0].mxu0 %v569
        %v3082 = vpop.f32.mrb[0].mxu0
        %v3083 = vadd.f32 %v2958, %v3082
        %v3084 = vpop.f32.mrb[0].mxu0
        %v3085 = vpop.f32.mrb[0].mxu0
        %v3086 = vadd.f32 %v2958, %v3085
        %v3087 = vpop.f32.mrb[0].mxu0
        %3088 = vmatprep.mubr.bf16.mxu0 0
        %3089 = vmatmul.mubr.bf16.gmra.mrb[0].mxu0 %v570
        %v3090 = vpop.f32.mrb[0].mxu0
        %v3091 = vadd.f32 %v2958, %v3090
        %v3092 = vpop.f32.mrb[0].mxu0
        %v3093 = vpop.f32.mrb[0].mxu0
        %v3094 = vadd.f32 %v2958, %v3093
        %v3095 = vpop.f32.mrb[0].mxu0
        %3096 = vmatprep.mubr.bf16.mxu0 0
        %3097 = vmatmul.mubr.bf16.gmra.mrb[0].mxu0 %v571
        %v3098 = vpop.f32.mrb[0].mxu0
        %v3099 = vadd.f32 %v2958, %v3098
        %v3100 = vpop.f32.mrb[0].mxu0
        %v3101 = vpop.f32.mrb[0].mxu0
        %v3102 = vadd.f32 %v2958, %v3101
        %v3103 = vpop.f32.mrb[0].mxu0
        %3104 = vdwg.mxu0
        %s3105 = scalar_lea.vmem %s5, 128
        %v3106 = vld [vmem:[%s3105] sm:$0xf]
        %v3107 = vld [vmem:[%s3105 + $0x4] sm:$0xf]
        %v3108 = vld [vmem:[%s3105 + $0x8] sm:$0xf]
        %v3109 = vld [vmem:[%s3105 + $0xc] sm:$0xf]
        %v3110 = vld [vmem:[%s3105 + $0x10] sm:$0xf]
        %v3111 = vld [vmem:[%s3105 + $0x14] sm:$0xf]
        %v3112 = vld [vmem:[%s3105 + $0x18] sm:$0xf]
        %v3113 = vld [vmem:[%s3105 + $0x1c] sm:$0xf]
        %v3114 = vld [vmem:[%s3105 + $0x20] sm:$0xf]
        %v3115 = vld [vmem:[%s3105 + $0x24] sm:$0xf]
        %v3116 = vld [vmem:[%s3105 + $0x28] sm:$0xf]
        %v3117 = vld [vmem:[%s3105 + $0x2c] sm:$0xf]
        %v3118 = vld [vmem:[%s3105 + $0x30] sm:$0xf]
        %v3119 = vld [vmem:[%s3105 + $0x34] sm:$0xf]
        %v3120 = vld [vmem:[%s3105 + $0x38] sm:$0xf]
        %v3121 = vld [vmem:[%s3105 + $0x3c] sm:$0xf]
        %s3122 = scalar_lea.vmem %s6, 2
        %v3123 = vld [vmem:[%s3122] sm:$0x1]
        %v3125 = vlaneseq
        %v3126 = vshrl.u32 %v3125, 7
        %v3127 = vsub.s32 0, %v3126
        %v3128 = vrot.slane %v3123, %v3127
        %v3146 = vunpack.c.l.b16 %v3106
        %v3147 = vunpack.c.l.b16 %v3107
        %v3148 = vunpack.c.l.b16 %v3108
        %v3149 = vunpack.c.l.b16 %v3109
        %v3150 = vunpack.c.l.b16 %v3110
        %v3151 = vunpack.c.l.b16 %v3111
        %v3152 = vunpack.c.l.b16 %v3112
        %v3153 = vunpack.c.l.b16 %v3113
        %v3154 = vunpack.c.l.b16 %v3114
        %v3155 = vunpack.c.l.b16 %v3115
        %v3156 = vunpack.c.l.b16 %v3116
        %v3157 = vunpack.c.l.b16 %v3117
        %v3158 = vunpack.c.l.b16 %v3118
        %v3159 = vunpack.c.l.b16 %v3119
        %v3160 = vunpack.c.l.b16 %v3120
        %v3161 = vunpack.c.l.b16 %v3121
        %v3162 = vpack.c.b16 %v3147, %v3146
        %v3163 = vpack.c.b16 %v3149, %v3148
        %v3164 = vpack.c.b16 %v3151, %v3150
        %v3165 = vpack.c.b16 %v3153, %v3152
        %v3166 = vpack.c.b16 %v3155, %v3154
        %v3167 = vpack.c.b16 %v3157, %v3156
        %v3168 = vpack.c.b16 %v3159, %v3158
        %v3169 = vpack.c.b16 %v3161, %v3160
        %3178 = vmatprep.subr.bf16.mxu0 0
        %3179 = vmatpush1.bf16.msra.mxu0 %v3162
        %3180 = vmatprep.subr.bf16.mxu0 0
        %3181 = vmatpush1.bf16.msra.mxu0 %v3163
        %3182 = vmatprep.subr.bf16.mxu0 0
        %3183 = vmatpush1.bf16.msra.mxu0 %v3164
        %3184 = vmatprep.subr.bf16.mxu0 0
        %3185 = vmatpush1.bf16.msra.mxu0 %v3165
        %3186 = vmatprep.subr.bf16.mxu0 0
        %3187 = vmatpush1.bf16.msra.mxu0 %v3166
        %3188 = vmatprep.subr.bf16.mxu0 0
        %3189 = vmatpush1.bf16.msra.mxu0 %v3167
        %3190 = vmatprep.subr.bf16.mxu0 0
        %3191 = vmatpush1.bf16.msra.mxu0 %v3168
        %3192 = vmatprep.subr.bf16.mxu0 0
        %3193 = vmatpush1.bf16.msra.mxu0 %v3169
        %3194 = vmatprep.subr.bf16.mxu0 0
        %3195 = vmatpush1.bf16.msra.mxu0 0
        %3196 = vmatprep.subr.bf16.mxu0 0
        %3197 = vmatpush1.bf16.msra.mxu0 0
        %3198 = vmatprep.subr.bf16.mxu0 0
        %3199 = vmatpush1.bf16.msra.mxu0 0
        %3200 = vmatprep.subr.bf16.mxu0 0
        %3201 = vmatpush1.bf16.msra.mxu0 0
        %3202 = vmatprep.subr.bf16.mxu0 0
        %3203 = vmatpush1.bf16.msra.mxu0 0
        %3204 = vmatprep.subr.bf16.mxu0 0
        %3205 = vmatpush1.bf16.msra.mxu0 0
        %3206 = vmatprep.subr.bf16.mxu0 0
        %3207 = vmatpush1.bf16.msra.mxu0 0
        %3208 = vmatprep.subr.bf16.mxu0 0
        %3209 = vmatpush1.bf16.msra.mxu0 0
        %3210 = vmatprep.mubr.bf16.mxu0 0
        %3211 = vmatmul.mubr.bf16.gmra.mrb[0].mxu0 %v564
        %v3212 = vpop.f32.mrb[0].mxu0
        %v3213 = vadd.f32 %v3128, %v3212
        %v3214 = vpop.f32.mrb[0].mxu0
        %v3215 = vpop.f32.mrb[0].mxu0
        %v3216 = vadd.f32 %v3128, %v3215
        %v3217 = vpop.f32.mrb[0].mxu0
        %3218 = vmatprep.mubr.bf16.mxu0 0
        %3219 = vmatmul.mubr.bf16.gmra.mrb[0].mxu0 %v565
        %v3220 = vpop.f32.mrb[0].mxu0
        %v3221 = vadd.f32 %v3128, %v3220
        %v3222 = vpop.f32.mrb[0].mxu0
        %v3223 = vpop.f32.mrb[0].mxu0
        %v3224 = vadd.f32 %v3128, %v3223
        %v3225 = vpop.f32.mrb[0].mxu0
        %3226 = vmatprep.mubr.bf16.mxu0 0
        %3227 = vmatmul.mubr.bf16.gmra.mrb[0].mxu0 %v566
        %v3228 = vpop.f32.mrb[0].mxu0
        %v3229 = vadd.f32 %v3128, %v3228
        %v3230 = vpop.f32.mrb[0].mxu0
        %v3231 = vpop.f32.mrb[0].mxu0
        %v3232 = vadd.f32 %v3128, %v3231
        %v3233 = vpop.f32.mrb[0].mxu0
        %3234 = vmatprep.mubr.bf16.mxu0 0
        %3235 = vmatmul.mubr.bf16.gmra.mrb[0].mxu0 %v567
        %v3236 = vpop.f32.mrb[0].mxu0
        %v3237 = vadd.f32 %v3128, %v3236
        %v3238 = vpop.f32.mrb[0].mxu0
        %v3239 = vpop.f32.mrb[0].mxu0
        %v3240 = vadd.f32 %v3128, %v3239
        %v3241 = vpop.f32.mrb[0].mxu0
        %3242 = vmatprep.mubr.bf16.mxu0 0
        %3243 = vmatmul.mubr.bf16.gmra.mrb[0].mxu0 %v568
        %v3244 = vpop.f32.mrb[0].mxu0
        %v3245 = vadd.f32 %v3128, %v3244
        %v3246 = vpop.f32.mrb[0].mxu0
        %v3247 = vpop.f32.mrb[0].mxu0
        %v3248 = vadd.f32 %v3128, %v3247
        %v3249 = vpop.f32.mrb[0].mxu0
        %3250 = vmatprep.mubr.bf16.mxu0 0
        %3251 = vmatmul.mubr.bf16.gmra.mrb[0].mxu0 %v569
        %v3252 = vpop.f32.mrb[0].mxu0
        %v3253 = vadd.f32 %v3128, %v3252
        %v3254 = vpop.f32.mrb[0].mxu0
        %v3255 = vpop.f32.mrb[0].mxu0
        %v3256 = vadd.f32 %v3128, %v3255
        %v3257 = vpop.f32.mrb[0].mxu0
        %3258 = vmatprep.mubr.bf16.mxu0 0
        %3259 = vmatmul.mubr.bf16.gmra.mrb[0].mxu0 %v570
        %v3260 = vpop.f32.mrb[0].mxu0
        %v3261 = vadd.f32 %v3128, %v3260
        %v3262 = vpop.f32.mrb[0].mxu0
        %v3263 = vpop.f32.mrb[0].mxu0
        %v3264 = vadd.f32 %v3128, %v3263
        %v3265 = vpop.f32.mrb[0].mxu0
        %3266 = vmatprep.mubr.bf16.mxu0 0
        %3267 = vmatmul.mubr.bf16.gmra.mrb[0].mxu0 %v571
        %v3268 = vpop.f32.mrb[0].mxu0
        %v3269 = vadd.f32 %v3128, %v3268
        %v3270 = vpop.f32.mrb[0].mxu0
        %v3271 = vpop.f32.mrb[0].mxu0
        %v3272 = vadd.f32 %v3128, %v3271
        %v3273 = vpop.f32.mrb[0].mxu0
        %3274 = vdwg.mxu0
        %v3275 = vpack.c.bf16 %v2876, %v2873
        %v3276 = vpack.c.bf16 %v2884, %v2881
        %v3277 = vpack.c.bf16 %v2892, %v2889
        %v3278 = vpack.c.bf16 %v2900, %v2897
        %v3279 = vpack.c.bf16 %v2908, %v2905
        %v3280 = vpack.c.bf16 %v2916, %v2913
        %v3281 = vpack.c.bf16 %v2924, %v2921
        %v3282 = vpack.c.bf16 %v2932, %v2929
        %v3283 = vpack.c.bf16 %v3046, %v3043
        %v3284 = vpack.c.bf16 %v3054, %v3051
        %v3285 = vpack.c.bf16 %v3062, %v3059
        %v3286 = vpack.c.bf16 %v3070, %v3067
        %v3287 = vpack.c.bf16 %v3078, %v3075
        %v3288 = vpack.c.bf16 %v3086, %v3083
        %v3289 = vpack.c.bf16 %v3094, %v3091
        %v3290 = vpack.c.bf16 %v3102, %v3099
        %v3292 = vsel %vm1143, %v3275, 0
        %v3295 = vsel %vm1143, %v3276, 0
        %v3298 = vsel %vm1143, %v3277, 0
        %v3301 = vsel %vm1143, %v3278, 0
        %v3304 = vsel %vm1143, %v3279, 0
        %v3307 = vsel %vm1143, %v3280, 0
        %v3310 = vsel %vm1143, %v3281, 0
        %v3313 = vsel %vm1143, %v3282, 0
        %v3316 = vsel %vm1143, %v3283, 0
        %v3319 = vsel %vm1143, %v3284, 0
        %v3322 = vsel %vm1143, %v3285, 0
        %v3325 = vsel %vm1143, %v3286, 0
        %v3328 = vsel %vm1143, %v3287, 0
        %v3331 = vsel %vm1143, %v3288, 0
        %v3334 = vsel %vm1143, %v3289, 0
        %v3337 = vsel %vm1143, %v3290, 0
        %3339 = vmatprep.subr.bf16.mxu0 0
        %3340 = vmatpush1.bf16.xpose.msra.mxu0 %v3316
        %3341 = vmatprep.subr.bf16.mxu0 0
        %3342 = vmatpush1.bf16.xpose.msra.mxu0 %v3319
        %3343 = vmatprep.subr.bf16.mxu0 0
        %3344 = vmatpush1.bf16.xpose.msra.mxu0 %v3322
        %3345 = vmatprep.subr.bf16.mxu0 0
        %3346 = vmatpush1.bf16.xpose.msra.mxu0 %v3325
        %3347 = vmatprep.subr.bf16.mxu0 0
        %3348 = vmatpush1.bf16.xpose.msra.mxu0 %v3328
        %3349 = vmatprep.subr.bf16.mxu0 0
        %3350 = vmatpush1.bf16.xpose.msra.mxu0 %v3331
        %3351 = vmatprep.subr.bf16.mxu0 0
        %3352 = vmatpush1.bf16.xpose.msra.mxu0 %v3334
        %3353 = vmatprep.subr.bf16.mxu0 0
        %3354 = vmatpush1.bf16.xpose.msra.mxu0 %v3337
        %3355 = vmatprep.subr.bf16.mxu0 0
        %3356 = vmatpush1.bf16.xpose.msra.mxu0 0
        %3357 = vmatprep.subr.bf16.mxu0 0
        %3358 = vmatpush1.bf16.xpose.msra.mxu0 0
        %3359 = vmatprep.subr.bf16.mxu0 0
        %3360 = vmatpush1.bf16.xpose.msra.mxu0 0
        %3361 = vmatprep.subr.bf16.mxu0 0
        %3362 = vmatpush1.bf16.xpose.msra.mxu0 0
        %3363 = vmatprep.subr.bf16.mxu0 0
        %3364 = vmatpush1.bf16.xpose.msra.mxu0 0
        %3365 = vmatprep.subr.bf16.mxu0 0
        %3366 = vmatpush1.bf16.xpose.msra.mxu0 0
        %3367 = vmatprep.subr.bf16.mxu0 0
        %3368 = vmatpush1.bf16.xpose.msra.mxu0 0
        %3369 = vmatprep.subr.bf16.mxu0 0
        %3370 = vmatpush1.bf16.xpose.msra.mxu0 0
        %3371 = vmatprep.mubr.bf16.mxu0 0
        %3372 = vmatmul.mubr.bf16.gmra.mrb[0].mxu0 %v3292
        %v3373 = vpop.f32.mrb[0].mxu0
        %v3374 = vadd.f32 %v607, %v3373
        %v3375 = vpop.f32.mrb[0].mxu0
        %v3376 = vpop.f32.mrb[0].mxu0
        %v3377 = vadd.f32 %v608, %v3376
        %v3378 = vpop.f32.mrb[0].mxu0
        %3379 = vmatprep.mubr.bf16.mxu0 0
        %3380 = vmatmul.mubr.bf16.gmra.mrb[0].mxu0 %v3295
        %v3381 = vpop.f32.mrb[0].mxu0
        %v3382 = vadd.f32 %v609, %v3381
        %v3383 = vpop.f32.mrb[0].mxu0
        %v3384 = vpop.f32.mrb[0].mxu0
        %v3385 = vadd.f32 %v610, %v3384
        %v3386 = vpop.f32.mrb[0].mxu0
        %3387 = vmatprep.mubr.bf16.mxu0 0
        %3388 = vmatmul.mubr.bf16.gmra.mrb[0].mxu0 %v3298
        %v3389 = vpop.f32.mrb[0].mxu0
        %v3390 = vadd.f32 %v611, %v3389
        %v3391 = vpop.f32.mrb[0].mxu0
        %v3392 = vpop.f32.mrb[0].mxu0
        %v3393 = vadd.f32 %v612, %v3392
        %v3394 = vpop.f32.mrb[0].mxu0
        %3395 = vmatprep.mubr.bf16.mxu0 0
        %3396 = vmatmul.mubr.bf16.gmra.mrb[0].mxu0 %v3301
        %v3397 = vpop.f32.mrb[0].mxu0
        %v3398 = vadd.f32 %v613, %v3397
        %v3399 = vpop.f32.mrb[0].mxu0
        %v3400 = vpop.f32.mrb[0].mxu0
        %v3401 = vadd.f32 %v614, %v3400
        %v3402 = vpop.f32.mrb[0].mxu0
        %3403 = vmatprep.mubr.bf16.mxu0 0
        %3404 = vmatmul.mubr.bf16.gmra.mrb[0].mxu0 %v3304
        %v3405 = vpop.f32.mrb[0].mxu0
        %v3406 = vadd.f32 %v615, %v3405
        %v3407 = vpop.f32.mrb[0].mxu0
        %v3408 = vpop.f32.mrb[0].mxu0
        %v3409 = vadd.f32 %v616, %v3408
        %v3410 = vpop.f32.mrb[0].mxu0
        %3411 = vmatprep.mubr.bf16.mxu0 0
        %3412 = vmatmul.mubr.bf16.gmra.mrb[0].mxu0 %v3307
        %v3413 = vpop.f32.mrb[0].mxu0
        %v3414 = vadd.f32 %v617, %v3413
        %v3415 = vpop.f32.mrb[0].mxu0
        %v3416 = vpop.f32.mrb[0].mxu0
        %v3417 = vadd.f32 %v618, %v3416
        %v3418 = vpop.f32.mrb[0].mxu0
        %3419 = vmatprep.mubr.bf16.mxu0 0
        %3420 = vmatmul.mubr.bf16.gmra.mrb[0].mxu0 %v3310
        %v3421 = vpop.f32.mrb[0].mxu0
        %v3422 = vadd.f32 %v619, %v3421
        %v3423 = vpop.f32.mrb[0].mxu0
        %v3424 = vpop.f32.mrb[0].mxu0
        %v3425 = vadd.f32 %v620, %v3424
        %v3426 = vpop.f32.mrb[0].mxu0
        %3427 = vmatprep.mubr.bf16.mxu0 0
        %3428 = vmatmul.mubr.bf16.gmra.mrb[0].mxu0 %v3313
        %v3429 = vpop.f32.mrb[0].mxu0
        %v3430 = vadd.f32 %v621, %v3429
        %v3431 = vpop.f32.mrb[0].mxu0
        %v3432 = vpop.f32.mrb[0].mxu0
        %v3433 = vadd.f32 %v622, %v3432
        %v3434 = vpop.f32.mrb[0].mxu0
        %3435 = vdwg.mxu0
        %3436 = vmax.xlane.f32.xlu0 %v3374
        %v3437 = vpop.xlane.xlu0 %3436
        %3438 = vmax.xlane.f32.xlu0 %v3377
        %v3439 = vpop.xlane.xlu0 %3438
        %3440 = vmax.xlane.f32.xlu0 %v3382
        %v3441 = vpop.xlane.xlu0 %3440
        %3442 = vmax.xlane.f32.xlu0 %v3385
        %v3443 = vpop.xlane.xlu0 %3442
        %3444 = vmax.xlane.f32.xlu0 %v3390
        %v3445 = vpop.xlane.xlu0 %3444
        %3446 = vmax.xlane.f32.xlu0 %v3393
        %v3447 = vpop.xlane.xlu0 %3446
        %3448 = vmax.xlane.f32.xlu0 %v3398
        %v3449 = vpop.xlane.xlu0 %3448
        %3450 = vmax.xlane.f32.xlu0 %v3401
        %v3451 = vpop.xlane.xlu0 %3450
        %3452 = vmax.xlane.f32.xlu0 %v3406
        %v3453 = vpop.xlane.xlu0 %3452
        %3454 = vmax.xlane.f32.xlu0 %v3409
        %v3455 = vpop.xlane.xlu0 %3454
        %3456 = vmax.xlane.f32.xlu0 %v3414
        %v3457 = vpop.xlane.xlu0 %3456
        %3458 = vmax.xlane.f32.xlu0 %v3417
        %v3459 = vpop.xlane.xlu0 %3458
        %3460 = vmax.xlane.f32.xlu0 %v3422
        %v3461 = vpop.xlane.xlu0 %3460
        %3462 = vmax.xlane.f32.xlu0 %v3425
        %v3463 = vpop.xlane.xlu0 %3462
        %3464 = vmax.xlane.f32.xlu0 %v3430
        %v3465 = vpop.xlane.xlu0 %3464
        %3466 = vmax.xlane.f32.xlu0 %v3433
        %v3467 = vpop.xlane.xlu0 %3466
        %v3468 = vsub.f32 %v3374, %v3437
        %v3469 = vsub.f32 %v3377, %v3439
        %v3470 = vsub.f32 %v3382, %v3441
        %v3471 = vsub.f32 %v3385, %v3443
        %v3472 = vsub.f32 %v3390, %v3445
        %v3473 = vsub.f32 %v3393, %v3447
        %v3474 = vsub.f32 %v3398, %v3449
        %v3475 = vsub.f32 %v3401, %v3451
        %v3476 = vsub.f32 %v3406, %v3453
        %v3477 = vsub.f32 %v3409, %v3455
        %v3478 = vsub.f32 %v3414, %v3457
        %v3479 = vsub.f32 %v3417, %v3459
        %v3480 = vsub.f32 %v3422, %v3461
        %v3481 = vsub.f32 %v3425, %v3463
        %v3482 = vsub.f32 %v3430, %v3465
        %v3483 = vsub.f32 %v3433, %v3467
        %v3484 = vmul.f32 %v3468, 1.442695
        %v3485 = vpow.pop %v3484
        %v3486 = vmul.f32 %v3469, 1.442695
        %v3487 = vpow.pop %v3486
        %v3488 = vmul.f32 %v3470, 1.442695
        %v3489 = vpow.pop %v3488
        %v3490 = vmul.f32 %v3471, 1.442695
        %v3491 = vpow.pop %v3490
        %v3492 = vmul.f32 %v3472, 1.442695
        %v3493 = vpow.pop %v3492
        %v3494 = vmul.f32 %v3473, 1.442695
        %v3495 = vpow.pop %v3494
        %v3496 = vmul.f32 %v3474, 1.442695
        %v3497 = vpow.pop %v3496
        %v3498 = vmul.f32 %v3475, 1.442695
        %v3499 = vpow.pop %v3498
        %v3500 = vmul.f32 %v3476, 1.442695
        %v3501 = vpow.pop %v3500
        %v3502 = vmul.f32 %v3477, 1.442695
        %v3503 = vpow.pop %v3502
        %v3504 = vmul.f32 %v3478, 1.442695
        %v3505 = vpow.pop %v3504
        %v3506 = vmul.f32 %v3479, 1.442695
        %v3507 = vpow.pop %v3506
        %v3508 = vmul.f32 %v3480, 1.442695
        %v3509 = vpow.pop %v3508
        %v3510 = vmul.f32 %v3481, 1.442695
        %v3511 = vpow.pop %v3510
        %v3512 = vmul.f32 %v3482, 1.442695
        %v3513 = vpow.pop %v3512
        %v3514 = vmul.f32 %v3483, 1.442695
        %v3515 = vpow.pop %v3514
        %3516 = vadd.xlane.f32.xlu0 %v3485
        %v3517 = vpop.xlane.xlu0 %3516
        %3518 = vadd.xlane.f32.xlu0 %v3487
        %v3519 = vpop.xlane.xlu0 %3518
        %3520 = vadd.xlane.f32.xlu0 %v3489
        %v3521 = vpop.xlane.xlu0 %3520
        %3522 = vadd.xlane.f32.xlu0 %v3491
        %v3523 = vpop.xlane.xlu0 %3522
        %3524 = vadd.xlane.f32.xlu0 %v3493
        %v3525 = vpop.xlane.xlu0 %3524
        %3526 = vadd.xlane.f32.xlu0 %v3495
        %v3527 = vpop.xlane.xlu0 %3526
        %3528 = vadd.xlane.f32.xlu0 %v3497
        %v3529 = vpop.xlane.xlu0 %3528
        %3530 = vadd.xlane.f32.xlu0 %v3499
        %v3531 = vpop.xlane.xlu0 %3530
        %3532 = vadd.xlane.f32.xlu0 %v3501
        %v3533 = vpop.xlane.xlu0 %3532
        %3534 = vadd.xlane.f32.xlu0 %v3503
        %v3535 = vpop.xlane.xlu0 %3534
        %3536 = vadd.xlane.f32.xlu0 %v3505
        %v3537 = vpop.xlane.xlu0 %3536
        %3538 = vadd.xlane.f32.xlu0 %v3507
        %v3539 = vpop.xlane.xlu0 %3538
        %3540 = vadd.xlane.f32.xlu0 %v3509
        %v3541 = vpop.xlane.xlu0 %3540
        %3542 = vadd.xlane.f32.xlu0 %v3511
        %v3543 = vpop.xlane.xlu0 %3542
        %3544 = vadd.xlane.f32.xlu0 %v3513
        %v3545 = vpop.xlane.xlu0 %3544
        %3546 = vadd.xlane.f32.xlu0 %v3515
        %v3547 = vpop.xlane.xlu0 %3546
        %v3548 = vrcp.pop %v3517
        %v3549 = vrcp.pop %v3519
        %v3550 = vrcp.pop %v3521
        %v3551 = vrcp.pop %v3523
        %v3552 = vrcp.pop %v3525
        %v3553 = vrcp.pop %v3527
        %v3554 = vrcp.pop %v3529
        %v3555 = vrcp.pop %v3531
        %v3556 = vrcp.pop %v3533
        %v3557 = vrcp.pop %v3535
        %v3558 = vrcp.pop %v3537
        %v3559 = vrcp.pop %v3539
        %v3560 = vrcp.pop %v3541
        %v3561 = vrcp.pop %v3543
        %v3562 = vrcp.pop %v3545
        %v3563 = vrcp.pop %v3547
        %v3564 = vmul.f32 %v3485, %v3548
        %v3565 = vmul.f32 %v3487, %v3549
        %v3566 = vmul.f32 %v3489, %v3550
        %v3567 = vmul.f32 %v3491, %v3551
        %v3568 = vmul.f32 %v3493, %v3552
        %v3569 = vmul.f32 %v3495, %v3553
        %v3570 = vmul.f32 %v3497, %v3554
        %v3571 = vmul.f32 %v3499, %v3555
        %v3572 = vmul.f32 %v3501, %v3556
        %v3573 = vmul.f32 %v3503, %v3557
        %v3574 = vmul.f32 %v3505, %v3558
        %v3575 = vmul.f32 %v3507, %v3559
        %v3576 = vmul.f32 %v3509, %v3560
        %v3577 = vmul.f32 %v3511, %v3561
        %v3578 = vmul.f32 %v3513, %v3562
        %v3579 = vmul.f32 %v3515, %v3563
        %v3580 = vpack.c.bf16 %v3565, %v3564
        %v3581 = vpack.c.bf16 %v3567, %v3566
        %v3582 = vpack.c.bf16 %v3569, %v3568
        %v3583 = vpack.c.bf16 %v3571, %v3570
        %v3584 = vpack.c.bf16 %v3573, %v3572
        %v3585 = vpack.c.bf16 %v3575, %v3574
        %v3586 = vpack.c.bf16 %v3577, %v3576
        %v3587 = vpack.c.bf16 %v3579, %v3578
        %v3588 = vpack.c.bf16 %v3216, %v3213
        %v3589 = vpack.c.bf16 %v3224, %v3221
        %v3590 = vpack.c.bf16 %v3232, %v3229
        %v3591 = vpack.c.bf16 %v3240, %v3237
        %v3592 = vpack.c.bf16 %v3248, %v3245
        %v3593 = vpack.c.bf16 %v3256, %v3253
        %v3594 = vpack.c.bf16 %v3264, %v3261
        %v3595 = vpack.c.bf16 %v3272, %v3269
        %3596 = vmatprep.subr.bf16.mxu0 0
        %3597 = vmatpush1.bf16.msra.mxu0 %v3588
        %3598 = vmatprep.subr.bf16.mxu0 0
        %3599 = vmatpush1.bf16.msra.mxu0 %v3589
        %3600 = vmatprep.subr.bf16.mxu0 0
        %3601 = vmatpush1.bf16.msra.mxu0 %v3590
        %3602 = vmatprep.subr.bf16.mxu0 0
        %3603 = vmatpush1.bf16.msra.mxu0 %v3591
        %3604 = vmatprep.subr.bf16.mxu0 0
        %3605 = vmatpush1.bf16.msra.mxu0 %v3592
        %3606 = vmatprep.subr.bf16.mxu0 0
        %3607 = vmatpush1.bf16.msra.mxu0 %v3593
        %3608 = vmatprep.subr.bf16.mxu0 0
        %3609 = vmatpush1.bf16.msra.mxu0 %v3594
        %3610 = vmatprep.subr.bf16.mxu0 0
        %3611 = vmatpush1.bf16.msra.mxu0 %v3595
        %3612 = vmatprep.subr.bf16.mxu0 0
        %3613 = vmatpush1.bf16.msra.mxu0 0
        %3614 = vmatprep.subr.bf16.mxu0 0
        %3615 = vmatpush1.bf16.msra.mxu0 0
        %3616 = vmatprep.subr.bf16.mxu0 0
        %3617 = vmatpush1.bf16.msra.mxu0 0
        %3618 = vmatprep.subr.bf16.mxu0 0
        %3619 = vmatpush1.bf16.msra.mxu0 0
        %3620 = vmatprep.subr.bf16.mxu0 0
        %3621 = vmatpush1.bf16.msra.mxu0 0
        %3622 = vmatprep.subr.bf16.mxu0 0
        %3623 = vmatpush1.bf16.msra.mxu0 0
        %3624 = vmatprep.subr.bf16.mxu0 0
        %3625 = vmatpush1.bf16.msra.mxu0 0
        %3626 = vmatprep.subr.bf16.mxu0 0
        %3627 = vmatpush1.bf16.msra.mxu0 0
        %3628 = vmatprep.mubr.bf16.mxu0 0
        %3629 = vmatmul.mubr.bf16.gmra.mrb[0].mxu0 %v3580
        %v3630 = vpop.f32.mrb[0].mxu0
        %v3631 = vadd.f32 0.0, %v3630
        %v3632 = vpop.f32.mrb[0].mxu0
        %v3633 = vpop.f32.mrb[0].mxu0
        %v3634 = vadd.f32 0.0, %v3633
        %v3635 = vpop.f32.mrb[0].mxu0
        %3636 = vmatprep.mubr.bf16.mxu0 0
        %3637 = vmatmul.mubr.bf16.gmra.mrb[0].mxu0 %v3581
        %v3638 = vpop.f32.mrb[0].mxu0
        %v3639 = vadd.f32 0.0, %v3638
        %v3640 = vpop.f32.mrb[0].mxu0
        %v3641 = vpop.f32.mrb[0].mxu0
        %v3642 = vadd.f32 0.0, %v3641
        %v3643 = vpop.f32.mrb[0].mxu0
        %3644 = vmatprep.mubr.bf16.mxu0 0
        %3645 = vmatmul.mubr.bf16.gmra.mrb[0].mxu0 %v3582
        %v3646 = vpop.f32.mrb[0].mxu0
        %v3647 = vadd.f32 0.0, %v3646
        %v3648 = vpop.f32.mrb[0].mxu0
        %v3649 = vpop.f32.mrb[0].mxu0
        %v3650 = vadd.f32 0.0, %v3649
        %v3651 = vpop.f32.mrb[0].mxu0
        %3652 = vmatprep.mubr.bf16.mxu0 0
        %3653 = vmatmul.mubr.bf16.gmra.mrb[0].mxu0 %v3583
        %v3654 = vpop.f32.mrb[0].mxu0
        %v3655 = vadd.f32 0.0, %v3654
        %v3656 = vpop.f32.mrb[0].mxu0
        %v3657 = vpop.f32.mrb[0].mxu0
        %v3658 = vadd.f32 0.0, %v3657
        %v3659 = vpop.f32.mrb[0].mxu0
        %3660 = vmatprep.mubr.bf16.mxu0 0
        %3661 = vmatmul.mubr.bf16.gmra.mrb[0].mxu0 %v3584
        %v3662 = vpop.f32.mrb[0].mxu0
        %v3663 = vadd.f32 0.0, %v3662
        %v3664 = vpop.f32.mrb[0].mxu0
        %v3665 = vpop.f32.mrb[0].mxu0
        %v3666 = vadd.f32 0.0, %v3665
        %v3667 = vpop.f32.mrb[0].mxu0
        %3668 = vmatprep.mubr.bf16.mxu0 0
        %3669 = vmatmul.mubr.bf16.gmra.mrb[0].mxu0 %v3585
        %v3670 = vpop.f32.mrb[0].mxu0
        %v3671 = vadd.f32 0.0, %v3670
        %v3672 = vpop.f32.mrb[0].mxu0
        %v3673 = vpop.f32.mrb[0].mxu0
        %v3674 = vadd.f32 0.0, %v3673
        %v3675 = vpop.f32.mrb[0].mxu0
        %3676 = vmatprep.mubr.bf16.mxu0 0
        %3677 = vmatmul.mubr.bf16.gmra.mrb[0].mxu0 %v3586
        %v3678 = vpop.f32.mrb[0].mxu0
        %v3679 = vadd.f32 0.0, %v3678
        %v3680 = vpop.f32.mrb[0].mxu0
        %v3681 = vpop.f32.mrb[0].mxu0
        %v3682 = vadd.f32 0.0, %v3681
        %v3683 = vpop.f32.mrb[0].mxu0
        %3684 = vmatprep.mubr.bf16.mxu0 0
        %3685 = vmatmul.mubr.bf16.gmra.mrb[0].mxu0 %v3587
        %v3686 = vpop.f32.mrb[0].mxu0
        %v3687 = vadd.f32 0.0, %v3686
        %v3688 = vpop.f32.mrb[0].mxu0
        %v3689 = vpop.f32.mrb[0].mxu0
        %v3690 = vadd.f32 0.0, %v3689
        %v3691 = vpop.f32.mrb[0].mxu0
        %3692 = vdwg.mxu0
        %v3693 = vpack.c.bf16 %v3634, %v3631
        %v3694 = vpack.c.bf16 %v3642, %v3639
        %v3695 = vpack.c.bf16 %v3650, %v3647
        %v3696 = vpack.c.bf16 %v3658, %v3655
        %v3697 = vpack.c.bf16 %v3666, %v3663
        %v3698 = vpack.c.bf16 %v3674, %v3671
        %v3699 = vpack.c.bf16 %v3682, %v3679
        %v3700 = vpack.c.bf16 %v3690, %v3687
        %s3701 = scalar_lea.vmem %s7, 32
        %v3702 = vld [vmem:[%s3701] sm:$0xf]
        %v3703 = vld [vmem:[%s3701 + $0x4] sm:$0xf]
        %v3704 = vld [vmem:[%s3701 + $0x8] sm:$0xf]
        %v3705 = vld [vmem:[%s3701 + $0xc] sm:$0xf]
        %v3710 = vunpack.c.l.b16 %v3702
        %v3711 = vunpack.c.l.b16 %v3703
        %v3712 = vunpack.c.l.b16 %v3704
        %v3713 = vunpack.c.l.b16 %v3705
        %v3714 = vpack.c.b16 %v3711, %v3710
        %v3715 = vpack.c.b16 %v3713, %v3712
        %v3719 = vsel %vm1143, %v3693, 0
        %v3722 = vsel %vm1143, %v3694, 0
        %v3725 = vsel %vm1143, %v3695, 0
        %v3728 = vsel %vm1143, %v3696, 0
        %v3731 = vsel %vm1143, %v3697, 0
        %v3734 = vsel %vm1143, %v3698, 0
        %v3737 = vsel %vm1143, %v3699, 0
        %v3740 = vsel %vm1143, %v3700, 0
        %3742 = vmatprep.subr.bf16.mxu0 0
        %3743 = vmatpush1.bf16.msra.mxu0 %v3714
        %3744 = vmatprep.subr.bf16.mxu0 0
        %3745 = vmatpush1.bf16.msra.mxu0 %v3715
        %3746 = vmatprep.subr.bf16.mxu0 0
        %3747 = vmatpush1.bf16.msra.mxu0 0
        %3748 = vmatprep.subr.bf16.mxu0 0
        %3749 = vmatpush1.bf16.msra.mxu0 0
        %3750 = vmatprep.subr.bf16.mxu0 0
        %3751 = vmatpush1.bf16.msra.mxu0 0
        %3752 = vmatprep.subr.bf16.mxu0 0
        %3753 = vmatpush1.bf16.msra.mxu0 0
        %3754 = vmatprep.subr.bf16.mxu0 0
        %3755 = vmatpush1.bf16.msra.mxu0 0
        %3756 = vmatprep.subr.bf16.mxu0 0
        %3757 = vmatpush1.bf16.msra.mxu0 0
        %3758 = vmatprep.subr.bf16.mxu0 0
        %3759 = vmatpush1.bf16.msra.mxu0 0
        %3760 = vmatprep.subr.bf16.mxu0 0
        %3761 = vmatpush1.bf16.msra.mxu0 0
        %3762 = vmatprep.subr.bf16.mxu0 0
        %3763 = vmatpush1.bf16.msra.mxu0 0
        %3764 = vmatprep.subr.bf16.mxu0 0
        %3765 = vmatpush1.bf16.msra.mxu0 0
        %3766 = vmatprep.subr.bf16.mxu0 0
        %3767 = vmatpush1.bf16.msra.mxu0 0
        %3768 = vmatprep.subr.bf16.mxu0 0
        %3769 = vmatpush1.bf16.msra.mxu0 0
        %3770 = vmatprep.subr.bf16.mxu0 0
        %3771 = vmatpush1.bf16.msra.mxu0 0
        %3772 = vmatprep.subr.bf16.mxu0 0
        %3773 = vmatpush1.bf16.msra.mxu0 0
        %3774 = vmatprep.mubr.bf16.mxu0 0
        %3775 = vmatmul.mubr.bf16.gmra.mrb[0].mxu0 %v3719
        %v3776 = vpop.f32.mrb[0].mxu0
        %v3777 = vadd.f32 0.0, %v3776
        %v3778 = vpop.f32.mrb[0].mxu0
        %v3779 = vpop.f32.mrb[0].mxu0
        %v3780 = vadd.f32 0.0, %v3779
        %v3781 = vpop.f32.mrb[0].mxu0
        %3782 = vmatprep.mubr.bf16.mxu0 0
        %3783 = vmatmul.mubr.bf16.gmra.mrb[0].mxu0 %v3722
        %v3784 = vpop.f32.mrb[0].mxu0
        %v3785 = vadd.f32 0.0, %v3784
        %v3786 = vpop.f32.mrb[0].mxu0
        %v3787 = vpop.f32.mrb[0].mxu0
        %v3788 = vadd.f32 0.0, %v3787
        %v3789 = vpop.f32.mrb[0].mxu0
        %3790 = vmatprep.mubr.bf16.mxu0 0
        %3791 = vmatmul.mubr.bf16.gmra.mrb[0].mxu0 %v3725
        %v3792 = vpop.f32.mrb[0].mxu0
        %v3793 = vadd.f32 0.0, %v3792
        %v3794 = vpop.f32.mrb[0].mxu0
        %v3795 = vpop.f32.mrb[0].mxu0
        %v3796 = vadd.f32 0.0, %v3795
        %v3797 = vpop.f32.mrb[0].mxu0
        %3798 = vmatprep.mubr.bf16.mxu0 0
        %3799 = vmatmul.mubr.bf16.gmra.mrb[0].mxu0 %v3728
        %v3800 = vpop.f32.mrb[0].mxu0
        %v3801 = vadd.f32 0.0, %v3800
        %v3802 = vpop.f32.mrb[0].mxu0
        %v3803 = vpop.f32.mrb[0].mxu0
        %v3804 = vadd.f32 0.0, %v3803
        %v3805 = vpop.f32.mrb[0].mxu0
        %3806 = vmatprep.mubr.bf16.mxu0 0
        %3807 = vmatmul.mubr.bf16.gmra.mrb[0].mxu0 %v3731
        %v3808 = vpop.f32.mrb[0].mxu0
        %v3809 = vadd.f32 0.0, %v3808
        %v3810 = vpop.f32.mrb[0].mxu0
        %v3811 = vpop.f32.mrb[0].mxu0
        %v3812 = vadd.f32 0.0, %v3811
        %v3813 = vpop.f32.mrb[0].mxu0
        %3814 = vmatprep.mubr.bf16.mxu0 0
        %3815 = vmatmul.mubr.bf16.gmra.mrb[0].mxu0 %v3734
        %v3816 = vpop.f32.mrb[0].mxu0
        %v3817 = vadd.f32 0.0, %v3816
        %v3818 = vpop.f32.mrb[0].mxu0
        %v3819 = vpop.f32.mrb[0].mxu0
        %v3820 = vadd.f32 0.0, %v3819
        %v3821 = vpop.f32.mrb[0].mxu0
        %3822 = vmatprep.mubr.bf16.mxu0 0
        %3823 = vmatmul.mubr.bf16.gmra.mrb[0].mxu0 %v3737
        %v3824 = vpop.f32.mrb[0].mxu0
        %v3825 = vadd.f32 0.0, %v3824
        %v3826 = vpop.f32.mrb[0].mxu0
        %v3827 = vpop.f32.mrb[0].mxu0
        %v3828 = vadd.f32 0.0, %v3827
        %v3829 = vpop.f32.mrb[0].mxu0
        %3830 = vmatprep.mubr.bf16.mxu0 0
        %3831 = vmatmul.mubr.bf16.gmra.mrb[0].mxu0 %v3740
        %v3832 = vpop.f32.mrb[0].mxu0
        %v3833 = vadd.f32 0.0, %v3832
        %v3834 = vpop.f32.mrb[0].mxu0
        %v3835 = vpop.f32.mrb[0].mxu0
        %v3836 = vadd.f32 0.0, %v3835
        %v3837 = vpop.f32.mrb[0].mxu0
        %3838 = vdwg.mxu0
        %v3839 = vadd.f32 %v2703, %v3777
        %v3840 = vadd.f32 %v2706, %v3780
        %v3841 = vadd.f32 %v2711, %v3785
        %v3842 = vadd.f32 %v2714, %v3788
        %v3843 = vadd.f32 %v2719, %v3793
        %v3844 = vadd.f32 %v2722, %v3796
        %v3845 = vadd.f32 %v2727, %v3801
        %v3846 = vadd.f32 %v2730, %v3804
        %v3847 = vadd.f32 %v2735, %v3809
        %v3848 = vadd.f32 %v2738, %v3812
        %v3849 = vadd.f32 %v2743, %v3817
        %v3850 = vadd.f32 %v2746, %v3820
        %v3851 = vadd.f32 %v2751, %v3825
        %v3852 = vadd.f32 %v2754, %v3828
        %v3853 = vadd.f32 %v2759, %v3833
        %v3854 = vadd.f32 %v2762, %v3836
        %s3855 = scalar_lea.vmem %s1, 192
        %v3856 = vld [vmem:[%s3855] sm:$0xf]
        %v3857 = vld [vmem:[%s3855 + $0x4] sm:$0xf]
        %v3858 = vld [vmem:[%s3855 + $0x8] sm:$0xf]
        %v3859 = vld [vmem:[%s3855 + $0xc] sm:$0xf]
        %v3860 = vld [vmem:[%s3855 + $0x10] sm:$0xf]
        %v3861 = vld [vmem:[%s3855 + $0x14] sm:$0xf]
        %v3862 = vld [vmem:[%s3855 + $0x18] sm:$0xf]
        %v3863 = vld [vmem:[%s3855 + $0x1c] sm:$0xf]
        %v3864 = vld [vmem:[%s3855 + $0x20] sm:$0xf]
        %v3865 = vld [vmem:[%s3855 + $0x24] sm:$0xf]
        %v3866 = vld [vmem:[%s3855 + $0x28] sm:$0xf]
        %v3867 = vld [vmem:[%s3855 + $0x2c] sm:$0xf]
        %v3868 = vld [vmem:[%s3855 + $0x30] sm:$0xf]
        %v3869 = vld [vmem:[%s3855 + $0x34] sm:$0xf]
        %v3870 = vld [vmem:[%s3855 + $0x38] sm:$0xf]
        %v3871 = vld [vmem:[%s3855 + $0x3c] sm:$0xf]
        %s3872 = scalar_lea.vmem %s2, 3
        %v3873 = vld [vmem:[%s3872] sm:$0x1]
        %v3875 = vlaneseq
        %v3876 = vshrl.u32 %v3875, 7
        %v3877 = vsub.s32 0, %v3876
        %v3878 = vrot.slane %v3873, %v3877
        %v3896 = vunpack.c.l.b16 %v3856
        %v3897 = vunpack.c.l.b16 %v3857
        %v3898 = vunpack.c.l.b16 %v3858
        %v3899 = vunpack.c.l.b16 %v3859
        %v3900 = vunpack.c.l.b16 %v3860
        %v3901 = vunpack.c.l.b16 %v3861
        %v3902 = vunpack.c.l.b16 %v3862
        %v3903 = vunpack.c.l.b16 %v3863
        %v3904 = vunpack.c.l.b16 %v3864
        %v3905 = vunpack.c.l.b16 %v3865
        %v3906 = vunpack.c.l.b16 %v3866
        %v3907 = vunpack.c.l.b16 %v3867
        %v3908 = vunpack.c.l.b16 %v3868
        %v3909 = vunpack.c.l.b16 %v3869
        %v3910 = vunpack.c.l.b16 %v3870
        %v3911 = vunpack.c.l.b16 %v3871
        %v3912 = vpack.c.b16 %v3897, %v3896
        %v3913 = vpack.c.b16 %v3899, %v3898
        %v3914 = vpack.c.b16 %v3901, %v3900
        %v3915 = vpack.c.b16 %v3903, %v3902
        %v3916 = vpack.c.b16 %v3905, %v3904
        %v3917 = vpack.c.b16 %v3907, %v3906
        %v3918 = vpack.c.b16 %v3909, %v3908
        %v3919 = vpack.c.b16 %v3911, %v3910
        %3928 = vmatprep.subr.bf16.mxu0 0
        %3929 = vmatpush1.bf16.msra.mxu0 %v3912
        %3930 = vmatprep.subr.bf16.mxu0 0
        %3931 = vmatpush1.bf16.msra.mxu0 %v3913
        %3932 = vmatprep.subr.bf16.mxu0 0
        %3933 = vmatpush1.bf16.msra.mxu0 %v3914
        %3934 = vmatprep.subr.bf16.mxu0 0
        %3935 = vmatpush1.bf16.msra.mxu0 %v3915
        %3936 = vmatprep.subr.bf16.mxu0 0
        %3937 = vmatpush1.bf16.msra.mxu0 %v3916
        %3938 = vmatprep.subr.bf16.mxu0 0
        %3939 = vmatpush1.bf16.msra.mxu0 %v3917
        %3940 = vmatprep.subr.bf16.mxu0 0
        %3941 = vmatpush1.bf16.msra.mxu0 %v3918
        %3942 = vmatprep.subr.bf16.mxu0 0
        %3943 = vmatpush1.bf16.msra.mxu0 %v3919
        %3944 = vmatprep.subr.bf16.mxu0 0
        %3945 = vmatpush1.bf16.msra.mxu0 0
        %3946 = vmatprep.subr.bf16.mxu0 0
        %3947 = vmatpush1.bf16.msra.mxu0 0
        %3948 = vmatprep.subr.bf16.mxu0 0
        %3949 = vmatpush1.bf16.msra.mxu0 0
        %3950 = vmatprep.subr.bf16.mxu0 0
        %3951 = vmatpush1.bf16.msra.mxu0 0
        %3952 = vmatprep.subr.bf16.mxu0 0
        %3953 = vmatpush1.bf16.msra.mxu0 0
        %3954 = vmatprep.subr.bf16.mxu0 0
        %3955 = vmatpush1.bf16.msra.mxu0 0
        %3956 = vmatprep.subr.bf16.mxu0 0
        %3957 = vmatpush1.bf16.msra.mxu0 0
        %3958 = vmatprep.subr.bf16.mxu0 0
        %3959 = vmatpush1.bf16.msra.mxu0 0
        %3960 = vmatprep.mubr.bf16.mxu0 0
        %3961 = vmatmul.mubr.bf16.gmra.mrb[0].mxu0 %v564
        %v3962 = vpop.f32.mrb[0].mxu0
        %v3963 = vadd.f32 %v3878, %v3962
        %v3964 = vpop.f32.mrb[0].mxu0
        %v3965 = vpop.f32.mrb[0].mxu0
        %v3966 = vadd.f32 %v3878, %v3965
        %v3967 = vpop.f32.mrb[0].mxu0
        %3968 = vmatprep.mubr.bf16.mxu0 0
        %3969 = vmatmul.mubr.bf16.gmra.mrb[0].mxu0 %v565
        %v3970 = vpop.f32.mrb[0].mxu0
        %v3971 = vadd.f32 %v3878, %v3970
        %v3972 = vpop.f32.mrb[0].mxu0
        %v3973 = vpop.f32.mrb[0].mxu0
        %v3974 = vadd.f32 %v3878, %v3973
        %v3975 = vpop.f32.mrb[0].mxu0
        %3976 = vmatprep.mubr.bf16.mxu0 0
        %3977 = vmatmul.mubr.bf16.gmra.mrb[0].mxu0 %v566
        %v3978 = vpop.f32.mrb[0].mxu0
        %v3979 = vadd.f32 %v3878, %v3978
        %v3980 = vpop.f32.mrb[0].mxu0
        %v3981 = vpop.f32.mrb[0].mxu0
        %v3982 = vadd.f32 %v3878, %v3981
        %v3983 = vpop.f32.mrb[0].mxu0
        %3984 = vmatprep.mubr.bf16.mxu0 0
        %3985 = vmatmul.mubr.bf16.gmra.mrb[0].mxu0 %v567
        %v3986 = vpop.f32.mrb[0].mxu0
        %v3987 = vadd.f32 %v3878, %v3986
        %v3988 = vpop.f32.mrb[0].mxu0
        %v3989 = vpop.f32.mrb[0].mxu0
        %v3990 = vadd.f32 %v3878, %v3989
        %v3991 = vpop.f32.mrb[0].mxu0
        %3992 = vmatprep.mubr.bf16.mxu0 0
        %3993 = vmatmul.mubr.bf16.gmra.mrb[0].mxu0 %v568
        %v3994 = vpop.f32.mrb[0].mxu0
        %v3995 = vadd.f32 %v3878, %v3994
        %v3996 = vpop.f32.mrb[0].mxu0
        %v3997 = vpop.f32.mrb[0].mxu0
        %v3998 = vadd.f32 %v3878, %v3997
        %v3999 = vpop.f32.mrb[0].mxu0
        %4000 = vmatprep.mubr.bf16.mxu0 0
        %4001 = vmatmul.mubr.bf16.gmra.mrb[0].mxu0 %v569
        %v4002 = vpop.f32.mrb[0].mxu0
        %v4003 = vadd.f32 %v3878, %v4002
        %v4004 = vpop.f32.mrb[0].mxu0
        %v4005 = vpop.f32.mrb[0].mxu0
        %v4006 = vadd.f32 %v3878, %v4005
        %v4007 = vpop.f32.mrb[0].mxu0
        %4008 = vmatprep.mubr.bf16.mxu0 0
        %4009 = vmatmul.mubr.bf16.gmra.mrb[0].mxu0 %v570
        %v4010 = vpop.f32.mrb[0].mxu0
        %v4011 = vadd.f32 %v3878, %v4010
        %v4012 = vpop.f32.mrb[0].mxu0
        %v4013 = vpop.f32.mrb[0].mxu0
        %v4014 = vadd.f32 %v3878, %v4013
        %v4015 = vpop.f32.mrb[0].mxu0
        %4016 = vmatprep.mubr.bf16.mxu0 0
        %4017 = vmatmul.mubr.bf16.gmra.mrb[0].mxu0 %v571
        %v4018 = vpop.f32.mrb[0].mxu0
        %v4019 = vadd.f32 %v3878, %v4018
        %v4020 = vpop.f32.mrb[0].mxu0
        %v4021 = vpop.f32.mrb[0].mxu0
        %v4022 = vadd.f32 %v3878, %v4021
        %v4023 = vpop.f32.mrb[0].mxu0
        %4024 = vdwg.mxu0
        %s4025 = scalar_lea.vmem %s3, 192
        %v4026 = vld [vmem:[%s4025] sm:$0xf]
        %v4027 = vld [vmem:[%s4025 + $0x4] sm:$0xf]
        %v4028 = vld [vmem:[%s4025 + $0x8] sm:$0xf]
        %v4029 = vld [vmem:[%s4025 + $0xc] sm:$0xf]
        %v4030 = vld [vmem:[%s4025 + $0x10] sm:$0xf]
        %v4031 = vld [vmem:[%s4025 + $0x14] sm:$0xf]
        %v4032 = vld [vmem:[%s4025 + $0x18] sm:$0xf]
        %v4033 = vld [vmem:[%s4025 + $0x1c] sm:$0xf]
        %v4034 = vld [vmem:[%s4025 + $0x20] sm:$0xf]
        %v4035 = vld [vmem:[%s4025 + $0x24] sm:$0xf]
        %v4036 = vld [vmem:[%s4025 + $0x28] sm:$0xf]
        %v4037 = vld [vmem:[%s4025 + $0x2c] sm:$0xf]
        %v4038 = vld [vmem:[%s4025 + $0x30] sm:$0xf]
        %v4039 = vld [vmem:[%s4025 + $0x34] sm:$0xf]
        %v4040 = vld [vmem:[%s4025 + $0x38] sm:$0xf]
        %v4041 = vld [vmem:[%s4025 + $0x3c] sm:$0xf]
        %s4042 = scalar_lea.vmem %s4, 3
        %v4043 = vld [vmem:[%s4042] sm:$0x1]
        %v4045 = vlaneseq
        %v4046 = vshrl.u32 %v4045, 7
        %v4047 = vsub.s32 0, %v4046
        %v4048 = vrot.slane %v4043, %v4047
        %v4066 = vunpack.c.l.b16 %v4026
        %v4067 = vunpack.c.l.b16 %v4027
        %v4068 = vunpack.c.l.b16 %v4028
        %v4069 = vunpack.c.l.b16 %v4029
        %v4070 = vunpack.c.l.b16 %v4030
        %v4071 = vunpack.c.l.b16 %v4031
        %v4072 = vunpack.c.l.b16 %v4032
        %v4073 = vunpack.c.l.b16 %v4033
        %v4074 = vunpack.c.l.b16 %v4034
        %v4075 = vunpack.c.l.b16 %v4035
        %v4076 = vunpack.c.l.b16 %v4036
        %v4077 = vunpack.c.l.b16 %v4037
        %v4078 = vunpack.c.l.b16 %v4038
        %v4079 = vunpack.c.l.b16 %v4039
        %v4080 = vunpack.c.l.b16 %v4040
        %v4081 = vunpack.c.l.b16 %v4041
        %v4082 = vpack.c.b16 %v4067, %v4066
        %v4083 = vpack.c.b16 %v4069, %v4068
        %v4084 = vpack.c.b16 %v4071, %v4070
        %v4085 = vpack.c.b16 %v4073, %v4072
        %v4086 = vpack.c.b16 %v4075, %v4074
        %v4087 = vpack.c.b16 %v4077, %v4076
        %v4088 = vpack.c.b16 %v4079, %v4078
        %v4089 = vpack.c.b16 %v4081, %v4080
        %4098 = vmatprep.subr.bf16.mxu0 0
        %4099 = vmatpush1.bf16.msra.mxu0 %v4082
        %4100 = vmatprep.subr.bf16.mxu0 0
        %4101 = vmatpush1.bf16.msra.mxu0 %v4083
        %4102 = vmatprep.subr.bf16.mxu0 0
        %4103 = vmatpush1.bf16.msra.mxu0 %v4084
        %4104 = vmatprep.subr.bf16.mxu0 0
        %4105 = vmatpush1.bf16.msra.mxu0 %v4085
        %4106 = vmatprep.subr.bf16.mxu0 0
        %4107 = vmatpush1.bf16.msra.mxu0 %v4086
        %4108 = vmatprep.subr.bf16.mxu0 0
        %4109 = vmatpush1.bf16.msra.mxu0 %v4087
        %4110 = vmatprep.subr.bf16.mxu0 0
        %4111 = vmatpush1.bf16.msra.mxu0 %v4088
        %4112 = vmatprep.subr.bf16.mxu0 0
        %4113 = vmatpush1.bf16.msra.mxu0 %v4089
        %4114 = vmatprep.subr.bf16.mxu0 0
        %4115 = vmatpush1.bf16.msra.mxu0 0
        %4116 = vmatprep.subr.bf16.mxu0 0
        %4117 = vmatpush1.bf16.msra.mxu0 0
        %4118 = vmatprep.subr.bf16.mxu0 0
        %4119 = vmatpush1.bf16.msra.mxu0 0
        %4120 = vmatprep.subr.bf16.mxu0 0
        %4121 = vmatpush1.bf16.msra.mxu0 0
        %4122 = vmatprep.subr.bf16.mxu0 0
        %4123 = vmatpush1.bf16.msra.mxu0 0
        %4124 = vmatprep.subr.bf16.mxu0 0
        %4125 = vmatpush1.bf16.msra.mxu0 0
        %4126 = vmatprep.subr.bf16.mxu0 0
        %4127 = vmatpush1.bf16.msra.mxu0 0
        %4128 = vmatprep.subr.bf16.mxu0 0
        %4129 = vmatpush1.bf16.msra.mxu0 0
        %4130 = vmatprep.mubr.bf16.mxu0 0
        %4131 = vmatmul.mubr.bf16.gmra.mrb[0].mxu0 %v564
        %v4132 = vpop.f32.mrb[0].mxu0
        %v4133 = vadd.f32 %v4048, %v4132
        %v4134 = vpop.f32.mrb[0].mxu0
        %v4135 = vpop.f32.mrb[0].mxu0
        %v4136 = vadd.f32 %v4048, %v4135
        %v4137 = vpop.f32.mrb[0].mxu0
        %4138 = vmatprep.mubr.bf16.mxu0 0
        %4139 = vmatmul.mubr.bf16.gmra.mrb[0].mxu0 %v565
        %v4140 = vpop.f32.mrb[0].mxu0
        %v4141 = vadd.f32 %v4048, %v4140
        %v4142 = vpop.f32.mrb[0].mxu0
        %v4143 = vpop.f32.mrb[0].mxu0
        %v4144 = vadd.f32 %v4048, %v4143
        %v4145 = vpop.f32.mrb[0].mxu0
        %4146 = vmatprep.mubr.bf16.mxu0 0
        %4147 = vmatmul.mubr.bf16.gmra.mrb[0].mxu0 %v566
        %v4148 = vpop.f32.mrb[0].mxu0
        %v4149 = vadd.f32 %v4048, %v4148
        %v4150 = vpop.f32.mrb[0].mxu0
        %v4151 = vpop.f32.mrb[0].mxu0
        %v4152 = vadd.f32 %v4048, %v4151
        %v4153 = vpop.f32.mrb[0].mxu0
        %4154 = vmatprep.mubr.bf16.mxu0 0
        %4155 = vmatmul.mubr.bf16.gmra.mrb[0].mxu0 %v567
        %v4156 = vpop.f32.mrb[0].mxu0
        %v4157 = vadd.f32 %v4048, %v4156
        %v4158 = vpop.f32.mrb[0].mxu0
        %v4159 = vpop.f32.mrb[0].mxu0
        %v4160 = vadd.f32 %v4048, %v4159
        %v4161 = vpop.f32.mrb[0].mxu0
        %4162 = vmatprep.mubr.bf16.mxu0 0
        %4163 = vmatmul.mubr.bf16.gmra.mrb[0].mxu0 %v568
        %v4164 = vpop.f32.mrb[0].mxu0
        %v4165 = vadd.f32 %v4048, %v4164
        %v4166 = vpop.f32.mrb[0].mxu0
        %v4167 = vpop.f32.mrb[0].mxu0
        %v4168 = vadd.f32 %v4048, %v4167
        %v4169 = vpop.f32.mrb[0].mxu0
        %4170 = vmatprep.mubr.bf16.mxu0 0
        %4171 = vmatmul.mubr.bf16.gmra.mrb[0].mxu0 %v569
        %v4172 = vpop.f32.mrb[0].mxu0
        %v4173 = vadd.f32 %v4048, %v4172
        %v4174 = vpop.f32.mrb[0].mxu0
        %v4175 = vpop.f32.mrb[0].mxu0
        %v4176 = vadd.f32 %v4048, %v4175
        %v4177 = vpop.f32.mrb[0].mxu0
        %4178 = vmatprep.mubr.bf16.mxu0 0
        %4179 = vmatmul.mubr.bf16.gmra.mrb[0].mxu0 %v570
        %v4180 = vpop.f32.mrb[0].mxu0
        %v4181 = vadd.f32 %v4048, %v4180
        %v4182 = vpop.f32.mrb[0].mxu0
        %v4183 = vpop.f32.mrb[0].mxu0
        %v4184 = vadd.f32 %v4048, %v4183
        %v4185 = vpop.f32.mrb[0].mxu0
        %4186 = vmatprep.mubr.bf16.mxu0 0
        %4187 = vmatmul.mubr.bf16.gmra.mrb[0].mxu0 %v571
        %v4188 = vpop.f32.mrb[0].mxu0
        %v4189 = vadd.f32 %v4048, %v4188
        %v4190 = vpop.f32.mrb[0].mxu0
        %v4191 = vpop.f32.mrb[0].mxu0
        %v4192 = vadd.f32 %v4048, %v4191
        %v4193 = vpop.f32.mrb[0].mxu0
        %4194 = vdwg.mxu0
        %s4195 = scalar_lea.vmem %s5, 192
        %v4196 = vld [vmem:[%s4195] sm:$0xf]
        %v4197 = vld [vmem:[%s4195 + $0x4] sm:$0xf]
        %v4198 = vld [vmem:[%s4195 + $0x8] sm:$0xf]
        %v4199 = vld [vmem:[%s4195 + $0xc] sm:$0xf]
        %v4200 = vld [vmem:[%s4195 + $0x10] sm:$0xf]
        %v4201 = vld [vmem:[%s4195 + $0x14] sm:$0xf]
        %v4202 = vld [vmem:[%s4195 + $0x18] sm:$0xf]
        %v4203 = vld [vmem:[%s4195 + $0x1c] sm:$0xf]
        %v4204 = vld [vmem:[%s4195 + $0x20] sm:$0xf]
        %v4205 = vld [vmem:[%s4195 + $0x24] sm:$0xf]
        %v4206 = vld [vmem:[%s4195 + $0x28] sm:$0xf]
        %v4207 = vld [vmem:[%s4195 + $0x2c] sm:$0xf]
        %v4208 = vld [vmem:[%s4195 + $0x30] sm:$0xf]
        %v4209 = vld [vmem:[%s4195 + $0x34] sm:$0xf]
        %v4210 = vld [vmem:[%s4195 + $0x38] sm:$0xf]
        %v4211 = vld [vmem:[%s4195 + $0x3c] sm:$0xf]
        %s4212 = scalar_lea.vmem %s6, 3
        %v4213 = vld [vmem:[%s4212] sm:$0x1]
        %v4215 = vlaneseq
        %v4216 = vshrl.u32 %v4215, 7
        %v4217 = vsub.s32 0, %v4216
        %v4218 = vrot.slane %v4213, %v4217
        %v4236 = vunpack.c.l.b16 %v4196
        %v4237 = vunpack.c.l.b16 %v4197
        %v4238 = vunpack.c.l.b16 %v4198
        %v4239 = vunpack.c.l.b16 %v4199
        %v4240 = vunpack.c.l.b16 %v4200
        %v4241 = vunpack.c.l.b16 %v4201
        %v4242 = vunpack.c.l.b16 %v4202
        %v4243 = vunpack.c.l.b16 %v4203
        %v4244 = vunpack.c.l.b16 %v4204
        %v4245 = vunpack.c.l.b16 %v4205
        %v4246 = vunpack.c.l.b16 %v4206
        %v4247 = vunpack.c.l.b16 %v4207
        %v4248 = vunpack.c.l.b16 %v4208
        %v4249 = vunpack.c.l.b16 %v4209
        %v4250 = vunpack.c.l.b16 %v4210
        %v4251 = vunpack.c.l.b16 %v4211
        %v4252 = vpack.c.b16 %v4237, %v4236
        %v4253 = vpack.c.b16 %v4239, %v4238
        %v4254 = vpack.c.b16 %v4241, %v4240
        %v4255 = vpack.c.b16 %v4243, %v4242
        %v4256 = vpack.c.b16 %v4245, %v4244
        %v4257 = vpack.c.b16 %v4247, %v4246
        %v4258 = vpack.c.b16 %v4249, %v4248
        %v4259 = vpack.c.b16 %v4251, %v4250
        %4268 = vmatprep.subr.bf16.mxu0 0
        %4269 = vmatpush1.bf16.msra.mxu0 %v4252
        %4270 = vmatprep.subr.bf16.mxu0 0
        %4271 = vmatpush1.bf16.msra.mxu0 %v4253
        %4272 = vmatprep.subr.bf16.mxu0 0
        %4273 = vmatpush1.bf16.msra.mxu0 %v4254
        %4274 = vmatprep.subr.bf16.mxu0 0
        %4275 = vmatpush1.bf16.msra.mxu0 %v4255
        %4276 = vmatprep.subr.bf16.mxu0 0
        %4277 = vmatpush1.bf16.msra.mxu0 %v4256
        %4278 = vmatprep.subr.bf16.mxu0 0
        %4279 = vmatpush1.bf16.msra.mxu0 %v4257
        %4280 = vmatprep.subr.bf16.mxu0 0
        %4281 = vmatpush1.bf16.msra.mxu0 %v4258
        %4282 = vmatprep.subr.bf16.mxu0 0
        %4283 = vmatpush1.bf16.msra.mxu0 %v4259
        %4284 = vmatprep.subr.bf16.mxu0 0
        %4285 = vmatpush1.bf16.msra.mxu0 0
        %4286 = vmatprep.subr.bf16.mxu0 0
        %4287 = vmatpush1.bf16.msra.mxu0 0
        %4288 = vmatprep.subr.bf16.mxu0 0
        %4289 = vmatpush1.bf16.msra.mxu0 0
        %4290 = vmatprep.subr.bf16.mxu0 0
        %4291 = vmatpush1.bf16.msra.mxu0 0
        %4292 = vmatprep.subr.bf16.mxu0 0
        %4293 = vmatpush1.bf16.msra.mxu0 0
        %4294 = vmatprep.subr.bf16.mxu0 0
        %4295 = vmatpush1.bf16.msra.mxu0 0
        %4296 = vmatprep.subr.bf16.mxu0 0
        %4297 = vmatpush1.bf16.msra.mxu0 0
        %4298 = vmatprep.subr.bf16.mxu0 0
        %4299 = vmatpush1.bf16.msra.mxu0 0
        %4300 = vmatprep.mubr.bf16.mxu0 0
        %4301 = vmatmul.mubr.bf16.gmra.mrb[0].mxu0 %v564
        %v4302 = vpop.f32.mrb[0].mxu0
        %v4303 = vadd.f32 %v4218, %v4302
        %v4304 = vpop.f32.mrb[0].mxu0
        %v4305 = vpop.f32.mrb[0].mxu0
        %v4306 = vadd.f32 %v4218, %v4305
        %v4307 = vpop.f32.mrb[0].mxu0
        %4308 = vmatprep.mubr.bf16.mxu0 0
        %4309 = vmatmul.mubr.bf16.gmra.mrb[0].mxu0 %v565
        %v4310 = vpop.f32.mrb[0].mxu0
        %v4311 = vadd.f32 %v4218, %v4310
        %v4312 = vpop.f32.mrb[0].mxu0
        %v4313 = vpop.f32.mrb[0].mxu0
        %v4314 = vadd.f32 %v4218, %v4313
        %v4315 = vpop.f32.mrb[0].mxu0
        %4316 = vmatprep.mubr.bf16.mxu0 0
        %4317 = vmatmul.mubr.bf16.gmra.mrb[0].mxu0 %v566
        %v4318 = vpop.f32.mrb[0].mxu0
        %v4319 = vadd.f32 %v4218, %v4318
        %v4320 = vpop.f32.mrb[0].mxu0
        %v4321 = vpop.f32.mrb[0].mxu0
        %v4322 = vadd.f32 %v4218, %v4321
        %v4323 = vpop.f32.mrb[0].mxu0
        %4324 = vmatprep.mubr.bf16.mxu0 0
        %4325 = vmatmul.mubr.bf16.gmra.mrb[0].mxu0 %v567
        %v4326 = vpop.f32.mrb[0].mxu0
        %v4327 = vadd.f32 %v4218, %v4326
        %v4328 = vpop.f32.mrb[0].mxu0
        %v4329 = vpop.f32.mrb[0].mxu0
        %v4330 = vadd.f32 %v4218, %v4329
        %v4331 = vpop.f32.mrb[0].mxu0
        %4332 = vmatprep.mubr.bf16.mxu0 0
        %4333 = vmatmul.mubr.bf16.gmra.mrb[0].mxu0 %v568
        %v4334 = vpop.f32.mrb[0].mxu0
        %v4335 = vadd.f32 %v4218, %v4334
        %v4336 = vpop.f32.mrb[0].mxu0
        %v4337 = vpop.f32.mrb[0].mxu0
        %v4338 = vadd.f32 %v4218, %v4337
        %v4339 = vpop.f32.mrb[0].mxu0
        %4340 = vmatprep.mubr.bf16.mxu0 0
        %4341 = vmatmul.mubr.bf16.gmra.mrb[0].mxu0 %v569
        %v4342 = vpop.f32.mrb[0].mxu0
        %v4343 = vadd.f32 %v4218, %v4342
        %v4344 = vpop.f32.mrb[0].mxu0
        %v4345 = vpop.f32.mrb[0].mxu0
        %v4346 = vadd.f32 %v4218, %v4345
        %v4347 = vpop.f32.mrb[0].mxu0
        %4348 = vmatprep.mubr.bf16.mxu0 0
        %4349 = vmatmul.mubr.bf16.gmra.mrb[0].mxu0 %v570
        %v4350 = vpop.f32.mrb[0].mxu0
        %v4351 = vadd.f32 %v4218, %v4350
        %v4352 = vpop.f32.mrb[0].mxu0
        %v4353 = vpop.f32.mrb[0].mxu0
        %v4354 = vadd.f32 %v4218, %v4353
        %v4355 = vpop.f32.mrb[0].mxu0
        %4356 = vmatprep.mubr.bf16.mxu0 0
        %4357 = vmatmul.mubr.bf16.gmra.mrb[0].mxu0 %v571
        %v4358 = vpop.f32.mrb[0].mxu0
        %v4359 = vadd.f32 %v4218, %v4358
        %v4360 = vpop.f32.mrb[0].mxu0
        %v4361 = vpop.f32.mrb[0].mxu0
        %v4362 = vadd.f32 %v4218, %v4361
        %v4363 = vpop.f32.mrb[0].mxu0
        %4364 = vdwg.mxu0
        %v4365 = vpack.c.bf16 %v3966, %v3963
        %v4366 = vpack.c.bf16 %v3974, %v3971
        %v4367 = vpack.c.bf16 %v3982, %v3979
        %v4368 = vpack.c.bf16 %v3990, %v3987
        %v4369 = vpack.c.bf16 %v3998, %v3995
        %v4370 = vpack.c.bf16 %v4006, %v4003
        %v4371 = vpack.c.bf16 %v4014, %v4011
        %v4372 = vpack.c.bf16 %v4022, %v4019
        %v4373 = vpack.c.bf16 %v4136, %v4133
        %v4374 = vpack.c.bf16 %v4144, %v4141
        %v4375 = vpack.c.bf16 %v4152, %v4149
        %v4376 = vpack.c.bf16 %v4160, %v4157
        %v4377 = vpack.c.bf16 %v4168, %v4165
        %v4378 = vpack.c.bf16 %v4176, %v4173
        %v4379 = vpack.c.bf16 %v4184, %v4181
        %v4380 = vpack.c.bf16 %v4192, %v4189
        %v4382 = vsel %vm1143, %v4365, 0
        %v4385 = vsel %vm1143, %v4366, 0
        %v4388 = vsel %vm1143, %v4367, 0
        %v4391 = vsel %vm1143, %v4368, 0
        %v4394 = vsel %vm1143, %v4369, 0
        %v4397 = vsel %vm1143, %v4370, 0
        %v4400 = vsel %vm1143, %v4371, 0
        %v4403 = vsel %vm1143, %v4372, 0
        %v4406 = vsel %vm1143, %v4373, 0
        %v4409 = vsel %vm1143, %v4374, 0
        %v4412 = vsel %vm1143, %v4375, 0
        %v4415 = vsel %vm1143, %v4376, 0
        %v4418 = vsel %vm1143, %v4377, 0
        %v4421 = vsel %vm1143, %v4378, 0
        %v4424 = vsel %vm1143, %v4379, 0
        %v4427 = vsel %vm1143, %v4380, 0
        %4429 = vmatprep.subr.bf16.mxu0 0
        %4430 = vmatpush1.bf16.xpose.msra.mxu0 %v4406
        %4431 = vmatprep.subr.bf16.mxu0 0
        %4432 = vmatpush1.bf16.xpose.msra.mxu0 %v4409
        %4433 = vmatprep.subr.bf16.mxu0 0
        %4434 = vmatpush1.bf16.xpose.msra.mxu0 %v4412
        %4435 = vmatprep.subr.bf16.mxu0 0
        %4436 = vmatpush1.bf16.xpose.msra.mxu0 %v4415
        %4437 = vmatprep.subr.bf16.mxu0 0
        %4438 = vmatpush1.bf16.xpose.msra.mxu0 %v4418
        %4439 = vmatprep.subr.bf16.mxu0 0
        %4440 = vmatpush1.bf16.xpose.msra.mxu0 %v4421
        %4441 = vmatprep.subr.bf16.mxu0 0
        %4442 = vmatpush1.bf16.xpose.msra.mxu0 %v4424
        %4443 = vmatprep.subr.bf16.mxu0 0
        %4444 = vmatpush1.bf16.xpose.msra.mxu0 %v4427
        %4445 = vmatprep.subr.bf16.mxu0 0
        %4446 = vmatpush1.bf16.xpose.msra.mxu0 0
        %4447 = vmatprep.subr.bf16.mxu0 0
        %4448 = vmatpush1.bf16.xpose.msra.mxu0 0
        %4449 = vmatprep.subr.bf16.mxu0 0
        %4450 = vmatpush1.bf16.xpose.msra.mxu0 0
        %4451 = vmatprep.subr.bf16.mxu0 0
        %4452 = vmatpush1.bf16.xpose.msra.mxu0 0
        %4453 = vmatprep.subr.bf16.mxu0 0
        %4454 = vmatpush1.bf16.xpose.msra.mxu0 0
        %4455 = vmatprep.subr.bf16.mxu0 0
        %4456 = vmatpush1.bf16.xpose.msra.mxu0 0
        %4457 = vmatprep.subr.bf16.mxu0 0
        %4458 = vmatpush1.bf16.xpose.msra.mxu0 0
        %4459 = vmatprep.subr.bf16.mxu0 0
        %4460 = vmatpush1.bf16.xpose.msra.mxu0 0
        %4461 = vmatprep.mubr.bf16.mxu0 0
        %4462 = vmatmul.mubr.bf16.gmra.mrb[0].mxu0 %v4382
        %v4463 = vpop.f32.mrb[0].mxu0
        %v4464 = vadd.f32 %v607, %v4463
        %v4465 = vpop.f32.mrb[0].mxu0
        %v4466 = vpop.f32.mrb[0].mxu0
        %v4467 = vadd.f32 %v608, %v4466
        %v4468 = vpop.f32.mrb[0].mxu0
        %4469 = vmatprep.mubr.bf16.mxu0 0
        %4470 = vmatmul.mubr.bf16.gmra.mrb[0].mxu0 %v4385
        %v4471 = vpop.f32.mrb[0].mxu0
        %v4472 = vadd.f32 %v609, %v4471
        %v4473 = vpop.f32.mrb[0].mxu0
        %v4474 = vpop.f32.mrb[0].mxu0
        %v4475 = vadd.f32 %v610, %v4474
        %v4476 = vpop.f32.mrb[0].mxu0
        %4477 = vmatprep.mubr.bf16.mxu0 0
        %4478 = vmatmul.mubr.bf16.gmra.mrb[0].mxu0 %v4388
        %v4479 = vpop.f32.mrb[0].mxu0
        %v4480 = vadd.f32 %v611, %v4479
        %v4481 = vpop.f32.mrb[0].mxu0
        %v4482 = vpop.f32.mrb[0].mxu0
        %v4483 = vadd.f32 %v612, %v4482
        %v4484 = vpop.f32.mrb[0].mxu0
        %4485 = vmatprep.mubr.bf16.mxu0 0
        %4486 = vmatmul.mubr.bf16.gmra.mrb[0].mxu0 %v4391
        %v4487 = vpop.f32.mrb[0].mxu0
        %v4488 = vadd.f32 %v613, %v4487
        %v4489 = vpop.f32.mrb[0].mxu0
        %v4490 = vpop.f32.mrb[0].mxu0
        %v4491 = vadd.f32 %v614, %v4490
        %v4492 = vpop.f32.mrb[0].mxu0
        %4493 = vmatprep.mubr.bf16.mxu0 0
        %4494 = vmatmul.mubr.bf16.gmra.mrb[0].mxu0 %v4394
        %v4495 = vpop.f32.mrb[0].mxu0
        %v4496 = vadd.f32 %v615, %v4495
        %v4497 = vpop.f32.mrb[0].mxu0
        %v4498 = vpop.f32.mrb[0].mxu0
        %v4499 = vadd.f32 %v616, %v4498
        %v4500 = vpop.f32.mrb[0].mxu0
        %4501 = vmatprep.mubr.bf16.mxu0 0
        %4502 = vmatmul.mubr.bf16.gmra.mrb[0].mxu0 %v4397
        %v4503 = vpop.f32.mrb[0].mxu0
        %v4504 = vadd.f32 %v617, %v4503
        %v4505 = vpop.f32.mrb[0].mxu0
        %v4506 = vpop.f32.mrb[0].mxu0
        %v4507 = vadd.f32 %v618, %v4506
        %v4508 = vpop.f32.mrb[0].mxu0
        %4509 = vmatprep.mubr.bf16.mxu0 0
        %4510 = vmatmul.mubr.bf16.gmra.mrb[0].mxu0 %v4400
        %v4511 = vpop.f32.mrb[0].mxu0
        %v4512 = vadd.f32 %v619, %v4511
        %v4513 = vpop.f32.mrb[0].mxu0
        %v4514 = vpop.f32.mrb[0].mxu0
        %v4515 = vadd.f32 %v620, %v4514
        %v4516 = vpop.f32.mrb[0].mxu0
        %4517 = vmatprep.mubr.bf16.mxu0 0
        %4518 = vmatmul.mubr.bf16.gmra.mrb[0].mxu0 %v4403
        %v4519 = vpop.f32.mrb[0].mxu0
        %v4520 = vadd.f32 %v621, %v4519
        %v4521 = vpop.f32.mrb[0].mxu0
        %v4522 = vpop.f32.mrb[0].mxu0
        %v4523 = vadd.f32 %v622, %v4522
        %v4524 = vpop.f32.mrb[0].mxu0
        %4525 = vdwg.mxu0
        %4526 = vmax.xlane.f32.xlu0 %v4464
        %v4527 = vpop.xlane.xlu0 %4526
        %4528 = vmax.xlane.f32.xlu0 %v4467
        %v4529 = vpop.xlane.xlu0 %4528
        %4530 = vmax.xlane.f32.xlu0 %v4472
        %v4531 = vpop.xlane.xlu0 %4530
        %4532 = vmax.xlane.f32.xlu0 %v4475
        %v4533 = vpop.xlane.xlu0 %4532
        %4534 = vmax.xlane.f32.xlu0 %v4480
        %v4535 = vpop.xlane.xlu0 %4534
        %4536 = vmax.xlane.f32.xlu0 %v4483
        %v4537 = vpop.xlane.xlu0 %4536
        %4538 = vmax.xlane.f32.xlu0 %v4488
        %v4539 = vpop.xlane.xlu0 %4538
        %4540 = vmax.xlane.f32.xlu0 %v4491
        %v4541 = vpop.xlane.xlu0 %4540
        %4542 = vmax.xlane.f32.xlu0 %v4496
        %v4543 = vpop.xlane.xlu0 %4542
        %4544 = vmax.xlane.f32.xlu0 %v4499
        %v4545 = vpop.xlane.xlu0 %4544
        %4546 = vmax.xlane.f32.xlu0 %v4504
        %v4547 = vpop.xlane.xlu0 %4546
        %4548 = vmax.xlane.f32.xlu0 %v4507
        %v4549 = vpop.xlane.xlu0 %4548
        %4550 = vmax.xlane.f32.xlu0 %v4512
        %v4551 = vpop.xlane.xlu0 %4550
        %4552 = vmax.xlane.f32.xlu0 %v4515
        %v4553 = vpop.xlane.xlu0 %4552
        %4554 = vmax.xlane.f32.xlu0 %v4520
        %v4555 = vpop.xlane.xlu0 %4554
        %4556 = vmax.xlane.f32.xlu0 %v4523
        %v4557 = vpop.xlane.xlu0 %4556
        %v4558 = vsub.f32 %v4464, %v4527
        %v4559 = vsub.f32 %v4467, %v4529
        %v4560 = vsub.f32 %v4472, %v4531
        %v4561 = vsub.f32 %v4475, %v4533
        %v4562 = vsub.f32 %v4480, %v4535
        %v4563 = vsub.f32 %v4483, %v4537
        %v4564 = vsub.f32 %v4488, %v4539
        %v4565 = vsub.f32 %v4491, %v4541
        %v4566 = vsub.f32 %v4496, %v4543
        %v4567 = vsub.f32 %v4499, %v4545
        %v4568 = vsub.f32 %v4504, %v4547
        %v4569 = vsub.f32 %v4507, %v4549
        %v4570 = vsub.f32 %v4512, %v4551
        %v4571 = vsub.f32 %v4515, %v4553
        %v4572 = vsub.f32 %v4520, %v4555
        %v4573 = vsub.f32 %v4523, %v4557
        %v4574 = vmul.f32 %v4558, 1.442695
        %v4575 = vpow.pop %v4574
        %v4576 = vmul.f32 %v4559, 1.442695
        %v4577 = vpow.pop %v4576
        %v4578 = vmul.f32 %v4560, 1.442695
        %v4579 = vpow.pop %v4578
        %v4580 = vmul.f32 %v4561, 1.442695
        %v4581 = vpow.pop %v4580
        %v4582 = vmul.f32 %v4562, 1.442695
        %v4583 = vpow.pop %v4582
        %v4584 = vmul.f32 %v4563, 1.442695
        %v4585 = vpow.pop %v4584
        %v4586 = vmul.f32 %v4564, 1.442695
        %v4587 = vpow.pop %v4586
        %v4588 = vmul.f32 %v4565, 1.442695
        %v4589 = vpow.pop %v4588
        %v4590 = vmul.f32 %v4566, 1.442695
        %v4591 = vpow.pop %v4590
        %v4592 = vmul.f32 %v4567, 1.442695
        %v4593 = vpow.pop %v4592
        %v4594 = vmul.f32 %v4568, 1.442695
        %v4595 = vpow.pop %v4594
        %v4596 = vmul.f32 %v4569, 1.442695
        %v4597 = vpow.pop %v4596
        %v4598 = vmul.f32 %v4570, 1.442695
        %v4599 = vpow.pop %v4598
        %v4600 = vmul.f32 %v4571, 1.442695
        %v4601 = vpow.pop %v4600
        %v4602 = vmul.f32 %v4572, 1.442695
        %v4603 = vpow.pop %v4602
        %v4604 = vmul.f32 %v4573, 1.442695
        %v4605 = vpow.pop %v4604
        %4606 = vadd.xlane.f32.xlu0 %v4575
        %v4607 = vpop.xlane.xlu0 %4606
        %4608 = vadd.xlane.f32.xlu0 %v4577
        %v4609 = vpop.xlane.xlu0 %4608
        %4610 = vadd.xlane.f32.xlu0 %v4579
        %v4611 = vpop.xlane.xlu0 %4610
        %4612 = vadd.xlane.f32.xlu0 %v4581
        %v4613 = vpop.xlane.xlu0 %4612
        %4614 = vadd.xlane.f32.xlu0 %v4583
        %v4615 = vpop.xlane.xlu0 %4614
        %4616 = vadd.xlane.f32.xlu0 %v4585
        %v4617 = vpop.xlane.xlu0 %4616
        %4618 = vadd.xlane.f32.xlu0 %v4587
        %v4619 = vpop.xlane.xlu0 %4618
        %4620 = vadd.xlane.f32.xlu0 %v4589
        %v4621 = vpop.xlane.xlu0 %4620
        %4622 = vadd.xlane.f32.xlu0 %v4591
        %v4623 = vpop.xlane.xlu0 %4622
        %4624 = vadd.xlane.f32.xlu0 %v4593
        %v4625 = vpop.xlane.xlu0 %4624
        %4626 = vadd.xlane.f32.xlu0 %v4595
        %v4627 = vpop.xlane.xlu0 %4626
        %4628 = vadd.xlane.f32.xlu0 %v4597
        %v4629 = vpop.xlane.xlu0 %4628
        %4630 = vadd.xlane.f32.xlu0 %v4599
        %v4631 = vpop.xlane.xlu0 %4630
        %4632 = vadd.xlane.f32.xlu0 %v4601
        %v4633 = vpop.xlane.xlu0 %4632
        %4634 = vadd.xlane.f32.xlu0 %v4603
        %v4635 = vpop.xlane.xlu0 %4634
        %4636 = vadd.xlane.f32.xlu0 %v4605
        %v4637 = vpop.xlane.xlu0 %4636
        %v4638 = vrcp.pop %v4607
        %v4639 = vrcp.pop %v4609
        %v4640 = vrcp.pop %v4611
        %v4641 = vrcp.pop %v4613
        %v4642 = vrcp.pop %v4615
        %v4643 = vrcp.pop %v4617
        %v4644 = vrcp.pop %v4619
        %v4645 = vrcp.pop %v4621
        %v4646 = vrcp.pop %v4623
        %v4647 = vrcp.pop %v4625
        %v4648 = vrcp.pop %v4627
        %v4649 = vrcp.pop %v4629
        %v4650 = vrcp.pop %v4631
        %v4651 = vrcp.pop %v4633
        %v4652 = vrcp.pop %v4635
        %v4653 = vrcp.pop %v4637
        %v4654 = vmul.f32 %v4575, %v4638
        %v4655 = vmul.f32 %v4577, %v4639
        %v4656 = vmul.f32 %v4579, %v4640
        %v4657 = vmul.f32 %v4581, %v4641
        %v4658 = vmul.f32 %v4583, %v4642
        %v4659 = vmul.f32 %v4585, %v4643
        %v4660 = vmul.f32 %v4587, %v4644
        %v4661 = vmul.f32 %v4589, %v4645
        %v4662 = vmul.f32 %v4591, %v4646
        %v4663 = vmul.f32 %v4593, %v4647
        %v4664 = vmul.f32 %v4595, %v4648
        %v4665 = vmul.f32 %v4597, %v4649
        %v4666 = vmul.f32 %v4599, %v4650
        %v4667 = vmul.f32 %v4601, %v4651
        %v4668 = vmul.f32 %v4603, %v4652
        %v4669 = vmul.f32 %v4605, %v4653
        %v4670 = vpack.c.bf16 %v4655, %v4654
        %v4671 = vpack.c.bf16 %v4657, %v4656
        %v4672 = vpack.c.bf16 %v4659, %v4658
        %v4673 = vpack.c.bf16 %v4661, %v4660
        %v4674 = vpack.c.bf16 %v4663, %v4662
        %v4675 = vpack.c.bf16 %v4665, %v4664
        %v4676 = vpack.c.bf16 %v4667, %v4666
        %v4677 = vpack.c.bf16 %v4669, %v4668
        %v4678 = vpack.c.bf16 %v4306, %v4303
        %v4679 = vpack.c.bf16 %v4314, %v4311
        %v4680 = vpack.c.bf16 %v4322, %v4319
        %v4681 = vpack.c.bf16 %v4330, %v4327
        %v4682 = vpack.c.bf16 %v4338, %v4335
        %v4683 = vpack.c.bf16 %v4346, %v4343
        %v4684 = vpack.c.bf16 %v4354, %v4351
        %v4685 = vpack.c.bf16 %v4362, %v4359
        %4686 = vmatprep.subr.bf16.mxu0 0
        %4687 = vmatpush1.bf16.msra.mxu0 %v4678
        %4688 = vmatprep.subr.bf16.mxu0 0
        %4689 = vmatpush1.bf16.msra.mxu0 %v4679
        %4690 = vmatprep.subr.bf16.mxu0 0
        %4691 = vmatpush1.bf16.msra.mxu0 %v4680
        %4692 = vmatprep.subr.bf16.mxu0 0
        %4693 = vmatpush1.bf16.msra.mxu0 %v4681
        %4694 = vmatprep.subr.bf16.mxu0 0
        %4695 = vmatpush1.bf16.msra.mxu0 %v4682
        %4696 = vmatprep.subr.bf16.mxu0 0
        %4697 = vmatpush1.bf16.msra.mxu0 %v4683
        %4698 = vmatprep.subr.bf16.mxu0 0
        %4699 = vmatpush1.bf16.msra.mxu0 %v4684
        %4700 = vmatprep.subr.bf16.mxu0 0
        %4701 = vmatpush1.bf16.msra.mxu0 %v4685
        %4702 = vmatprep.subr.bf16.mxu0 0
        %4703 = vmatpush1.bf16.msra.mxu0 0
        %4704 = vmatprep.subr.bf16.mxu0 0
        %4705 = vmatpush1.bf16.msra.mxu0 0
        %4706 = vmatprep.subr.bf16.mxu0 0
        %4707 = vmatpush1.bf16.msra.mxu0 0
        %4708 = vmatprep.subr.bf16.mxu0 0
        %4709 = vmatpush1.bf16.msra.mxu0 0
        %4710 = vmatprep.subr.bf16.mxu0 0
        %4711 = vmatpush1.bf16.msra.mxu0 0
        %4712 = vmatprep.subr.bf16.mxu0 0
        %4713 = vmatpush1.bf16.msra.mxu0 0
        %4714 = vmatprep.subr.bf16.mxu0 0
        %4715 = vmatpush1.bf16.msra.mxu0 0
        %4716 = vmatprep.subr.bf16.mxu0 0
        %4717 = vmatpush1.bf16.msra.mxu0 0
        %4718 = vmatprep.mubr.bf16.mxu0 0
        %4719 = vmatmul.mubr.bf16.gmra.mrb[0].mxu0 %v4670
        %v4720 = vpop.f32.mrb[0].mxu0
        %v4721 = vadd.f32 0.0, %v4720
        %v4722 = vpop.f32.mrb[0].mxu0
        %v4723 = vpop.f32.mrb[0].mxu0
        %v4724 = vadd.f32 0.0, %v4723
        %v4725 = vpop.f32.mrb[0].mxu0
        %4726 = vmatprep.mubr.bf16.mxu0 0
        %4727 = vmatmul.mubr.bf16.gmra.mrb[0].mxu0 %v4671
        %v4728 = vpop.f32.mrb[0].mxu0
        %v4729 = vadd.f32 0.0, %v4728
        %v4730 = vpop.f32.mrb[0].mxu0
        %v4731 = vpop.f32.mrb[0].mxu0
        %v4732 = vadd.f32 0.0, %v4731
        %v4733 = vpop.f32.mrb[0].mxu0
        %4734 = vmatprep.mubr.bf16.mxu0 0
        %4735 = vmatmul.mubr.bf16.gmra.mrb[0].mxu0 %v4672
        %v4736 = vpop.f32.mrb[0].mxu0
        %v4737 = vadd.f32 0.0, %v4736
        %v4738 = vpop.f32.mrb[0].mxu0
        %v4739 = vpop.f32.mrb[0].mxu0
        %v4740 = vadd.f32 0.0, %v4739
        %v4741 = vpop.f32.mrb[0].mxu0
        %4742 = vmatprep.mubr.bf16.mxu0 0
        %4743 = vmatmul.mubr.bf16.gmra.mrb[0].mxu0 %v4673
        %v4744 = vpop.f32.mrb[0].mxu0
        %v4745 = vadd.f32 0.0, %v4744
        %v4746 = vpop.f32.mrb[0].mxu0
        %v4747 = vpop.f32.mrb[0].mxu0
        %v4748 = vadd.f32 0.0, %v4747
        %v4749 = vpop.f32.mrb[0].mxu0
        %4750 = vmatprep.mubr.bf16.mxu0 0
        %4751 = vmatmul.mubr.bf16.gmra.mrb[0].mxu0 %v4674
        %v4752 = vpop.f32.mrb[0].mxu0
        %v4753 = vadd.f32 0.0, %v4752
        %v4754 = vpop.f32.mrb[0].mxu0
        %v4755 = vpop.f32.mrb[0].mxu0
        %v4756 = vadd.f32 0.0, %v4755
        %v4757 = vpop.f32.mrb[0].mxu0
        %4758 = vmatprep.mubr.bf16.mxu0 0
        %4759 = vmatmul.mubr.bf16.gmra.mrb[0].mxu0 %v4675
        %v4760 = vpop.f32.mrb[0].mxu0
        %v4761 = vadd.f32 0.0, %v4760
        %v4762 = vpop.f32.mrb[0].mxu0
        %v4763 = vpop.f32.mrb[0].mxu0
        %v4764 = vadd.f32 0.0, %v4763
        %v4765 = vpop.f32.mrb[0].mxu0
        %4766 = vmatprep.mubr.bf16.mxu0 0
        %4767 = vmatmul.mubr.bf16.gmra.mrb[0].mxu0 %v4676
        %v4768 = vpop.f32.mrb[0].mxu0
        %v4769 = vadd.f32 0.0, %v4768
        %v4770 = vpop.f32.mrb[0].mxu0
        %v4771 = vpop.f32.mrb[0].mxu0
        %v4772 = vadd.f32 0.0, %v4771
        %v4773 = vpop.f32.mrb[0].mxu0
        %4774 = vmatprep.mubr.bf16.mxu0 0
        %4775 = vmatmul.mubr.bf16.gmra.mrb[0].mxu0 %v4677
        %v4776 = vpop.f32.mrb[0].mxu0
        %v4777 = vadd.f32 0.0, %v4776
        %v4778 = vpop.f32.mrb[0].mxu0
        %v4779 = vpop.f32.mrb[0].mxu0
        %v4780 = vadd.f32 0.0, %v4779
        %v4781 = vpop.f32.mrb[0].mxu0
        %4782 = vdwg.mxu0
        %v4783 = vpack.c.bf16 %v4724, %v4721
        %v4784 = vpack.c.bf16 %v4732, %v4729
        %v4785 = vpack.c.bf16 %v4740, %v4737
        %v4786 = vpack.c.bf16 %v4748, %v4745
        %v4787 = vpack.c.bf16 %v4756, %v4753
        %v4788 = vpack.c.bf16 %v4764, %v4761
        %v4789 = vpack.c.bf16 %v4772, %v4769
        %v4790 = vpack.c.bf16 %v4780, %v4777
        %s4791 = scalar_lea.vmem %s7, 48
        %v4792 = vld [vmem:[%s4791] sm:$0xf]
        %v4793 = vld [vmem:[%s4791 + $0x4] sm:$0xf]
        %v4794 = vld [vmem:[%s4791 + $0x8] sm:$0xf]
        %v4795 = vld [vmem:[%s4791 + $0xc] sm:$0xf]
        %v4800 = vunpack.c.l.b16 %v4792
        %v4801 = vunpack.c.l.b16 %v4793
        %v4802 = vunpack.c.l.b16 %v4794
        %v4803 = vunpack.c.l.b16 %v4795
        %v4804 = vpack.c.b16 %v4801, %v4800
        %v4805 = vpack.c.b16 %v4803, %v4802
        %v4809 = vsel %vm1143, %v4783, 0
        %v4812 = vsel %vm1143, %v4784, 0
        %v4815 = vsel %vm1143, %v4785, 0
        %v4818 = vsel %vm1143, %v4786, 0
        %v4821 = vsel %vm1143, %v4787, 0
        %v4824 = vsel %vm1143, %v4788, 0
        %v4827 = vsel %vm1143, %v4789, 0
        %v4830 = vsel %vm1143, %v4790, 0
        %4832 = vmatprep.subr.bf16.mxu0 0
        %4833 = vmatpush1.bf16.msra.mxu0 %v4804
        %4834 = vmatprep.subr.bf16.mxu0 0
        %4835 = vmatpush1.bf16.msra.mxu0 %v4805
        %4836 = vmatprep.subr.bf16.mxu0 0
        %4837 = vmatpush1.bf16.msra.mxu0 0
        %4838 = vmatprep.subr.bf16.mxu0 0
        %4839 = vmatpush1.bf16.msra.mxu0 0
        %4840 = vmatprep.subr.bf16.mxu0 0
        %4841 = vmatpush1.bf16.msra.mxu0 0
        %4842 = vmatprep.subr.bf16.mxu0 0
        %4843 = vmatpush1.bf16.msra.mxu0 0
        %4844 = vmatprep.subr.bf16.mxu0 0
        %4845 = vmatpush1.bf16.msra.mxu0 0
        %4846 = vmatprep.subr.bf16.mxu0 0
        %4847 = vmatpush1.bf16.msra.mxu0 0
        %4848 = vmatprep.subr.bf16.mxu0 0
        %4849 = vmatpush1.bf16.msra.mxu0 0
        %4850 = vmatprep.subr.bf16.mxu0 0
        %4851 = vmatpush1.bf16.msra.mxu0 0
        %4852 = vmatprep.subr.bf16.mxu0 0
        %4853 = vmatpush1.bf16.msra.mxu0 0
        %4854 = vmatprep.subr.bf16.mxu0 0
        %4855 = vmatpush1.bf16.msra.mxu0 0
        %4856 = vmatprep.subr.bf16.mxu0 0
        %4857 = vmatpush1.bf16.msra.mxu0 0
        %4858 = vmatprep.subr.bf16.mxu0 0
        %4859 = vmatpush1.bf16.msra.mxu0 0
        %4860 = vmatprep.subr.bf16.mxu0 0
        %4861 = vmatpush1.bf16.msra.mxu0 0
        %4862 = vmatprep.subr.bf16.mxu0 0
        %4863 = vmatpush1.bf16.msra.mxu0 0
        %4864 = vmatprep.mubr.bf16.mxu0 0
        %4865 = vmatmul.mubr.bf16.gmra.mrb[0].mxu0 %v4809
        %v4866 = vpop.f32.mrb[0].mxu0
        %v4867 = vadd.f32 0.0, %v4866
        %v4868 = vpop.f32.mrb[0].mxu0
        %v4869 = vpop.f32.mrb[0].mxu0
        %v4870 = vadd.f32 0.0, %v4869
        %v4871 = vpop.f32.mrb[0].mxu0
        %4872 = vmatprep.mubr.bf16.mxu0 0
        %4873 = vmatmul.mubr.bf16.gmra.mrb[0].mxu0 %v4812
        %v4874 = vpop.f32.mrb[0].mxu0
        %v4875 = vadd.f32 0.0, %v4874
        %v4876 = vpop.f32.mrb[0].mxu0
        %v4877 = vpop.f32.mrb[0].mxu0
        %v4878 = vadd.f32 0.0, %v4877
        %v4879 = vpop.f32.mrb[0].mxu0
        %4880 = vmatprep.mubr.bf16.mxu0 0
        %4881 = vmatmul.mubr.bf16.gmra.mrb[0].mxu0 %v4815
        %v4882 = vpop.f32.mrb[0].mxu0
        %v4883 = vadd.f32 0.0, %v4882
        %v4884 = vpop.f32.mrb[0].mxu0
        %v4885 = vpop.f32.mrb[0].mxu0
        %v4886 = vadd.f32 0.0, %v4885
        %v4887 = vpop.f32.mrb[0].mxu0
        %4888 = vmatprep.mubr.bf16.mxu0 0
        %4889 = vmatmul.mubr.bf16.gmra.mrb[0].mxu0 %v4818
        %v4890 = vpop.f32.mrb[0].mxu0
        %v4891 = vadd.f32 0.0, %v4890
        %v4892 = vpop.f32.mrb[0].mxu0
        %v4893 = vpop.f32.mrb[0].mxu0
        %v4894 = vadd.f32 0.0, %v4893
        %v4895 = vpop.f32.mrb[0].mxu0
        %4896 = vmatprep.mubr.bf16.mxu0 0
        %4897 = vmatmul.mubr.bf16.gmra.mrb[0].mxu0 %v4821
        %v4898 = vpop.f32.mrb[0].mxu0
        %v4899 = vadd.f32 0.0, %v4898
        %v4900 = vpop.f32.mrb[0].mxu0
        %v4901 = vpop.f32.mrb[0].mxu0
        %v4902 = vadd.f32 0.0, %v4901
        %v4903 = vpop.f32.mrb[0].mxu0
        %4904 = vmatprep.mubr.bf16.mxu0 0
        %4905 = vmatmul.mubr.bf16.gmra.mrb[0].mxu0 %v4824
        %v4906 = vpop.f32.mrb[0].mxu0
        %v4907 = vadd.f32 0.0, %v4906
        %v4908 = vpop.f32.mrb[0].mxu0
        %v4909 = vpop.f32.mrb[0].mxu0
        %v4910 = vadd.f32 0.0, %v4909
        %v4911 = vpop.f32.mrb[0].mxu0
        %4912 = vmatprep.mubr.bf16.mxu0 0
        %4913 = vmatmul.mubr.bf16.gmra.mrb[0].mxu0 %v4827
        %v4914 = vpop.f32.mrb[0].mxu0
        %v4915 = vadd.f32 0.0, %v4914
        %v4916 = vpop.f32.mrb[0].mxu0
        %v4917 = vpop.f32.mrb[0].mxu0
        %v4918 = vadd.f32 0.0, %v4917
        %v4919 = vpop.f32.mrb[0].mxu0
        %4920 = vmatprep.mubr.bf16.mxu0 0
        %4921 = vmatmul.mubr.bf16.gmra.mrb[0].mxu0 %v4830
        %v4922 = vpop.f32.mrb[0].mxu0
        %v4923 = vadd.f32 0.0, %v4922
        %v4924 = vpop.f32.mrb[0].mxu0
        %v4925 = vpop.f32.mrb[0].mxu0
        %v4926 = vadd.f32 0.0, %v4925
        %v4927 = vpop.f32.mrb[0].mxu0
        %4928 = vdwg.mxu0
        %v4929 = vadd.f32 %v3839, %v4867
        %v4930 = vadd.f32 %v3840, %v4870
        %v4931 = vadd.f32 %v3841, %v4875
        %v4932 = vadd.f32 %v3842, %v4878
        %v4933 = vadd.f32 %v3843, %v4883
        %v4934 = vadd.f32 %v3844, %v4886
        %v4935 = vadd.f32 %v3845, %v4891
        %v4936 = vadd.f32 %v3846, %v4894
        %v4937 = vadd.f32 %v3847, %v4899
        %v4938 = vadd.f32 %v3848, %v4902
        %v4939 = vadd.f32 %v3849, %v4907
        %v4940 = vadd.f32 %v3850, %v4910
        %v4941 = vadd.f32 %v3851, %v4915
        %v4942 = vadd.f32 %v3852, %v4918
        %v4943 = vadd.f32 %v3853, %v4923
        %v4944 = vadd.f32 %v3854, %v4926
        %v4945 = vld [vmem:[%s8] sm:$0x1]
        %v4947 = vlaneseq
        %v4948 = vshrl.u32 %v4947, 7
        %v4949 = vsub.s32 0, %v4948
        %v4950 = vrot.slane %v4945, %v4949
        %v4952 = vadd.f32 %v4929, %v4950
        %v4953 = vadd.f32 %v4930, %v4950
        %v4954 = vadd.f32 %v4931, %v4950
        %v4955 = vadd.f32 %v4932, %v4950
        %v4956 = vadd.f32 %v4933, %v4950
        %v4957 = vadd.f32 %v4934, %v4950
        %v4958 = vadd.f32 %v4935, %v4950
        %v4959 = vadd.f32 %v4936, %v4950
        %v4960 = vadd.f32 %v4937, %v4950
        %v4961 = vadd.f32 %v4938, %v4950
        %v4962 = vadd.f32 %v4939, %v4950
        %v4963 = vadd.f32 %v4940, %v4950
        %v4964 = vadd.f32 %v4941, %v4950
        %v4965 = vadd.f32 %v4942, %v4950
        %v4966 = vadd.f32 %v4943, %v4950
        %v4967 = vadd.f32 %v4944, %v4950
        %v4968 = vadd.f32 %v548, %v4952
        %v4969 = vadd.f32 %v549, %v4953
        %v4970 = vadd.f32 %v550, %v4954
        %v4971 = vadd.f32 %v551, %v4955
        %v4972 = vadd.f32 %v552, %v4956
        %v4973 = vadd.f32 %v553, %v4957
        %v4974 = vadd.f32 %v554, %v4958
        %v4975 = vadd.f32 %v555, %v4959
        %v4976 = vadd.f32 %v556, %v4960
        %v4977 = vadd.f32 %v557, %v4961
        %v4978 = vadd.f32 %v558, %v4962
        %v4979 = vadd.f32 %v559, %v4963
        %v4980 = vadd.f32 %v560, %v4964
        %v4981 = vadd.f32 %v561, %v4965
        %v4982 = vadd.f32 %v562, %v4966
        %v4983 = vadd.f32 %v563, %v4967
        %v4984 = vld [vmem:[%s9] sm:$0x1]
        %v4985 = vld [vmem:[%s10] sm:$0x1]
        %4986 = vadd.xlane.f32.xlu0 %v4968
        %v4987 = vpop.xlane.xlu0 %4986
        %4988 = vadd.xlane.f32.xlu0 %v4969
        %v4989 = vpop.xlane.xlu0 %4988
        %4990 = vadd.xlane.f32.xlu0 %v4970
        %v4991 = vpop.xlane.xlu0 %4990
        %4992 = vadd.xlane.f32.xlu0 %v4971
        %v4993 = vpop.xlane.xlu0 %4992
        %4994 = vadd.xlane.f32.xlu0 %v4972
        %v4995 = vpop.xlane.xlu0 %4994
        %4996 = vadd.xlane.f32.xlu0 %v4973
        %v4997 = vpop.xlane.xlu0 %4996
        %4998 = vadd.xlane.f32.xlu0 %v4974
        %v4999 = vpop.xlane.xlu0 %4998
        %5000 = vadd.xlane.f32.xlu0 %v4975
        %v5001 = vpop.xlane.xlu0 %5000
        %5002 = vadd.xlane.f32.xlu0 %v4976
        %v5003 = vpop.xlane.xlu0 %5002
        %5004 = vadd.xlane.f32.xlu0 %v4977
        %v5005 = vpop.xlane.xlu0 %5004
        %5006 = vadd.xlane.f32.xlu0 %v4978
        %v5007 = vpop.xlane.xlu0 %5006
        %5008 = vadd.xlane.f32.xlu0 %v4979
        %v5009 = vpop.xlane.xlu0 %5008
        %5010 = vadd.xlane.f32.xlu0 %v4980
        %v5011 = vpop.xlane.xlu0 %5010
        %5012 = vadd.xlane.f32.xlu0 %v4981
        %v5013 = vpop.xlane.xlu0 %5012
        %5014 = vadd.xlane.f32.xlu0 %v4982
        %v5015 = vpop.xlane.xlu0 %5014
        %5016 = vadd.xlane.f32.xlu0 %v4983
        %v5017 = vpop.xlane.xlu0 %5016
        %v5018 = vrcp.pop 128.0
        %v5019 = vmul.f32 %v4987, %v5018
        %v5020 = vmul.f32 %v4989, %v5018
        %v5021 = vmul.f32 %v4991, %v5018
        %v5022 = vmul.f32 %v4993, %v5018
        %v5023 = vmul.f32 %v4995, %v5018
        %v5024 = vmul.f32 %v4997, %v5018
        %v5025 = vmul.f32 %v4999, %v5018
        %v5026 = vmul.f32 %v5001, %v5018
        %v5027 = vmul.f32 %v5003, %v5018
        %v5028 = vmul.f32 %v5005, %v5018
        %v5029 = vmul.f32 %v5007, %v5018
        %v5030 = vmul.f32 %v5009, %v5018
        %v5031 = vmul.f32 %v5011, %v5018
        %v5032 = vmul.f32 %v5013, %v5018
        %v5033 = vmul.f32 %v5015, %v5018
        %v5034 = vmul.f32 %v5017, %v5018
        %v5035 = vsub.f32 %v4968, %v5019
        %v5036 = vsub.f32 %v4969, %v5020
        %v5037 = vsub.f32 %v4970, %v5021
        %v5038 = vsub.f32 %v4971, %v5022
        %v5039 = vsub.f32 %v4972, %v5023
        %v5040 = vsub.f32 %v4973, %v5024
        %v5041 = vsub.f32 %v4974, %v5025
        %v5042 = vsub.f32 %v4975, %v5026
        %v5043 = vsub.f32 %v4976, %v5027
        %v5044 = vsub.f32 %v4977, %v5028
        %v5045 = vsub.f32 %v4978, %v5029
        %v5046 = vsub.f32 %v4979, %v5030
        %v5047 = vsub.f32 %v4980, %v5031
        %v5048 = vsub.f32 %v4981, %v5032
        %v5049 = vsub.f32 %v4982, %v5033
        %v5050 = vsub.f32 %v4983, %v5034
        %v5051 = vmul.f32 %v5035, %v5035
        %v5052 = vmul.f32 %v5036, %v5036
        %v5053 = vmul.f32 %v5037, %v5037
        %v5054 = vmul.f32 %v5038, %v5038
        %v5055 = vmul.f32 %v5039, %v5039
        %v5056 = vmul.f32 %v5040, %v5040
        %v5057 = vmul.f32 %v5041, %v5041
        %v5058 = vmul.f32 %v5042, %v5042
        %v5059 = vmul.f32 %v5043, %v5043
        %v5060 = vmul.f32 %v5044, %v5044
        %v5061 = vmul.f32 %v5045, %v5045
        %v5062 = vmul.f32 %v5046, %v5046
        %v5063 = vmul.f32 %v5047, %v5047
        %v5064 = vmul.f32 %v5048, %v5048
        %v5065 = vmul.f32 %v5049, %v5049
        %v5066 = vmul.f32 %v5050, %v5050
        %5067 = vadd.xlane.f32.xlu0 %v5051
        %v5068 = vpop.xlane.xlu0 %5067
        %5069 = vadd.xlane.f32.xlu0 %v5052
        %v5070 = vpop.xlane.xlu0 %5069
        %5071 = vadd.xlane.f32.xlu0 %v5053
        %v5072 = vpop.xlane.xlu0 %5071
        %5073 = vadd.xlane.f32.xlu0 %v5054
        %v5074 = vpop.xlane.xlu0 %5073
        %5075 = vadd.xlane.f32.xlu0 %v5055
        %v5076 = vpop.xlane.xlu0 %5075
        %5077 = vadd.xlane.f32.xlu0 %v5056
        %v5078 = vpop.xlane.xlu0 %5077
        %5079 = vadd.xlane.f32.xlu0 %v5057
        %v5080 = vpop.xlane.xlu0 %5079
        %5081 = vadd.xlane.f32.xlu0 %v5058
        %v5082 = vpop.xlane.xlu0 %5081
        %5083 = vadd.xlane.f32.xlu0 %v5059
        %v5084 = vpop.xlane.xlu0 %5083
        %5085 = vadd.xlane.f32.xlu0 %v5060
        %v5086 = vpop.xlane.xlu0 %5085
        %5087 = vadd.xlane.f32.xlu0 %v5061
        %v5088 = vpop.xlane.xlu0 %5087
        %5089 = vadd.xlane.f32.xlu0 %v5062
        %v5090 = vpop.xlane.xlu0 %5089
        %5091 = vadd.xlane.f32.xlu0 %v5063
        %v5092 = vpop.xlane.xlu0 %5091
        %5093 = vadd.xlane.f32.xlu0 %v5064
        %v5094 = vpop.xlane.xlu0 %5093
        %5095 = vadd.xlane.f32.xlu0 %v5065
        %v5096 = vpop.xlane.xlu0 %5095
        %5097 = vadd.xlane.f32.xlu0 %v5066
        %v5098 = vpop.xlane.xlu0 %5097
        %v5099 = vmul.f32 %v5068, %v5018
        %v5100 = vmul.f32 %v5070, %v5018
        %v5101 = vmul.f32 %v5072, %v5018
        %v5102 = vmul.f32 %v5074, %v5018
        %v5103 = vmul.f32 %v5076, %v5018
        %v5104 = vmul.f32 %v5078, %v5018
        %v5105 = vmul.f32 %v5080, %v5018
        %v5106 = vmul.f32 %v5082, %v5018
        %v5107 = vmul.f32 %v5084, %v5018
        %v5108 = vmul.f32 %v5086, %v5018
        %v5109 = vmul.f32 %v5088, %v5018
        %v5110 = vmul.f32 %v5090, %v5018
        %v5111 = vmul.f32 %v5092, %v5018
        %v5112 = vmul.f32 %v5094, %v5018
        %v5113 = vmul.f32 %v5096, %v5018
        %v5114 = vmul.f32 %v5098, %v5018
        %v5115 = vadd.f32 %v5099, 1e-05
        %v5116 = vadd.f32 %v5100, 1e-05
        %v5117 = vadd.f32 %v5101, 1e-05
        %v5118 = vadd.f32 %v5102, 1e-05
        %v5119 = vadd.f32 %v5103, 1e-05
        %v5120 = vadd.f32 %v5104, 1e-05
        %v5121 = vadd.f32 %v5105, 1e-05
        %v5122 = vadd.f32 %v5106, 1e-05
        %v5123 = vadd.f32 %v5107, 1e-05
        %v5124 = vadd.f32 %v5108, 1e-05
        %v5125 = vadd.f32 %v5109, 1e-05
        %v5126 = vadd.f32 %v5110, 1e-05
        %v5127 = vadd.f32 %v5111, 1e-05
        %v5128 = vadd.f32 %v5112, 1e-05
        %v5129 = vadd.f32 %v5113, 1e-05
        %v5130 = vadd.f32 %v5114, 1e-05
        %v5131 = vrsqrt.pop %v5115
        %v5132 = vrsqrt.pop %v5116
        %v5133 = vrsqrt.pop %v5117
        %v5134 = vrsqrt.pop %v5118
        %v5135 = vrsqrt.pop %v5119
        %v5136 = vrsqrt.pop %v5120
        %v5137 = vrsqrt.pop %v5121
        %v5138 = vrsqrt.pop %v5122
        %v5139 = vrsqrt.pop %v5123
        %v5140 = vrsqrt.pop %v5124
        %v5141 = vrsqrt.pop %v5125
        %v5142 = vrsqrt.pop %v5126
        %v5143 = vrsqrt.pop %v5127
        %v5144 = vrsqrt.pop %v5128
        %v5145 = vrsqrt.pop %v5129
        %v5146 = vrsqrt.pop %v5130
        %v5147 = vmul.f32 %v5035, %v5131
        %v5148 = vmul.f32 %v5036, %v5132
        %v5149 = vmul.f32 %v5037, %v5133
        %v5150 = vmul.f32 %v5038, %v5134
        %v5151 = vmul.f32 %v5039, %v5135
        %v5152 = vmul.f32 %v5040, %v5136
        %v5153 = vmul.f32 %v5041, %v5137
        %v5154 = vmul.f32 %v5042, %v5138
        %v5155 = vmul.f32 %v5043, %v5139
        %v5156 = vmul.f32 %v5044, %v5140
        %v5157 = vmul.f32 %v5045, %v5141
        %v5158 = vmul.f32 %v5046, %v5142
        %v5159 = vmul.f32 %v5047, %v5143
        %v5160 = vmul.f32 %v5048, %v5144
        %v5161 = vmul.f32 %v5049, %v5145
        %v5162 = vmul.f32 %v5050, %v5146
        %v5164 = vlaneseq
        %v5165 = vshrl.u32 %v5164, 7
        %v5166 = vsub.s32 0, %v5165
        %v5167 = vrot.slane %v4984, %v5166
        %v5169 = vmul.f32 %v5147, %v5167
        %v5170 = vmul.f32 %v5148, %v5167
        %v5171 = vmul.f32 %v5149, %v5167
        %v5172 = vmul.f32 %v5150, %v5167
        %v5173 = vmul.f32 %v5151, %v5167
        %v5174 = vmul.f32 %v5152, %v5167
        %v5175 = vmul.f32 %v5153, %v5167
        %v5176 = vmul.f32 %v5154, %v5167
        %v5177 = vmul.f32 %v5155, %v5167
        %v5178 = vmul.f32 %v5156, %v5167
        %v5179 = vmul.f32 %v5157, %v5167
        %v5180 = vmul.f32 %v5158, %v5167
        %v5181 = vmul.f32 %v5159, %v5167
        %v5182 = vmul.f32 %v5160, %v5167
        %v5183 = vmul.f32 %v5161, %v5167
        %v5184 = vmul.f32 %v5162, %v5167
        %v5186 = vlaneseq
        %v5187 = vshrl.u32 %v5186, 7
        %v5188 = vsub.s32 0, %v5187
        %v5189 = vrot.slane %v4985, %v5188
        %v5191 = vadd.f32 %v5169, %v5189
        %v5192 = vadd.f32 %v5170, %v5189
        %v5193 = vadd.f32 %v5171, %v5189
        %v5194 = vadd.f32 %v5172, %v5189
        %v5195 = vadd.f32 %v5173, %v5189
        %v5196 = vadd.f32 %v5174, %v5189
        %v5197 = vadd.f32 %v5175, %v5189
        %v5198 = vadd.f32 %v5176, %v5189
        %v5199 = vadd.f32 %v5177, %v5189
        %v5200 = vadd.f32 %v5178, %v5189
        %v5201 = vadd.f32 %v5179, %v5189
        %v5202 = vadd.f32 %v5180, %v5189
        %v5203 = vadd.f32 %v5181, %v5189
        %v5204 = vadd.f32 %v5182, %v5189
        %v5205 = vadd.f32 %v5183, %v5189
        %v5206 = vadd.f32 %v5184, %v5189
        %v5207 = vpack.c.bf16 %v5192, %v5191
        %v5208 = vpack.c.bf16 %v5194, %v5193
        %v5209 = vpack.c.bf16 %v5196, %v5195
        %v5210 = vpack.c.bf16 %v5198, %v5197
        %v5211 = vpack.c.bf16 %v5200, %v5199
        %v5212 = vpack.c.bf16 %v5202, %v5201
        %v5213 = vpack.c.bf16 %v5204, %v5203
        %v5214 = vpack.c.bf16 %v5206, %v5205
        %v5215 = vld [vmem:[%s11] sm:$0xff]
        %v5216 = vld [vmem:[%s11 + $0x8] sm:$0xff]
        %v5217 = vld [vmem:[%s11 + $0x10] sm:$0xff]
        %v5218 = vld [vmem:[%s11 + $0x18] sm:$0xff]
        %v5219 = vld [vmem:[%s11 + $0x20] sm:$0xff]
        %v5220 = vld [vmem:[%s11 + $0x28] sm:$0xff]
        %v5221 = vld [vmem:[%s11 + $0x30] sm:$0xff]
        %v5222 = vld [vmem:[%s11 + $0x38] sm:$0xff]
        %v5223 = vld [vmem:[%s11 + $0x40] sm:$0xff]
        %v5224 = vld [vmem:[%s11 + $0x48] sm:$0xff]
        %v5225 = vld [vmem:[%s11 + $0x50] sm:$0xff]
        %v5226 = vld [vmem:[%s11 + $0x58] sm:$0xff]
        %v5227 = vld [vmem:[%s11 + $0x60] sm:$0xff]
        %v5228 = vld [vmem:[%s11 + $0x68] sm:$0xff]
        %v5229 = vld [vmem:[%s11 + $0x70] sm:$0xff]
        %v5230 = vld [vmem:[%s11 + $0x78] sm:$0xff]
        %v5231 = vld [vmem:[%s12] sm:$0x3]
        %v5233 = vlaneseq
        %v5234 = vshrl.u32 %v5233, 7
        %v5235 = vsub.s32 0, %v5234
        %v5236 = vrot.slane %v5231, %v5235
        %v5237 = vlaneseq
        %v5238 = vshrl.u32 %v5237, 7
        %v5239 = vsub.s32 1, %v5238
        %v5240 = vrot.slane %v5231, %v5239
        %v5259 = vunpack.c.l.b16 %v5215
        %v5260 = vunpack.c.h.b16 %v5215
        %v5261 = vunpack.c.l.b16 %v5216
        %v5262 = vunpack.c.h.b16 %v5216
        %v5263 = vunpack.c.l.b16 %v5217
        %v5264 = vunpack.c.h.b16 %v5217
        %v5265 = vunpack.c.l.b16 %v5218
        %v5266 = vunpack.c.h.b16 %v5218
        %v5267 = vunpack.c.l.b16 %v5219
        %v5268 = vunpack.c.h.b16 %v5219
        %v5269 = vunpack.c.l.b16 %v5220
        %v5270 = vunpack.c.h.b16 %v5220
        %v5271 = vunpack.c.l.b16 %v5221
        %v5272 = vunpack.c.h.b16 %v5221
        %v5273 = vunpack.c.l.b16 %v5222
        %v5274 = vunpack.c.h.b16 %v5222
        %v5275 = vunpack.c.l.b16 %v5223
        %v5276 = vunpack.c.h.b16 %v5223
        %v5277 = vunpack.c.l.b16 %v5224
        %v5278 = vunpack.c.h.b16 %v5224
        %v5279 = vunpack.c.l.b16 %v5225
        %v5280 = vunpack.c.h.b16 %v5225
        %v5281 = vunpack.c.l.b16 %v5226
        %v5282 = vunpack.c.h.b16 %v5226
        %v5283 = vunpack.c.l.b16 %v5227
        %v5284 = vunpack.c.h.b16 %v5227
        %v5285 = vunpack.c.l.b16 %v5228
        %v5286 = vunpack.c.h.b16 %v5228
        %v5287 = vunpack.c.l.b16 %v5229
        %v5288 = vunpack.c.h.b16 %v5229
        %v5289 = vunpack.c.l.b16 %v5230
        %v5290 = vunpack.c.h.b16 %v5230
        %v5291 = vpack.c.b16 %v5261, %v5259
        %v5292 = vpack.c.b16 %v5262, %v5260
        %v5293 = vpack.c.b16 %v5265, %v5263
        %v5294 = vpack.c.b16 %v5266, %v5264
        %v5295 = vpack.c.b16 %v5269, %v5267
        %v5296 = vpack.c.b16 %v5270, %v5268
        %v5297 = vpack.c.b16 %v5273, %v5271
        %v5298 = vpack.c.b16 %v5274, %v5272
        %v5299 = vpack.c.b16 %v5277, %v5275
        %v5300 = vpack.c.b16 %v5278, %v5276
        %v5301 = vpack.c.b16 %v5281, %v5279
        %v5302 = vpack.c.b16 %v5282, %v5280
        %v5303 = vpack.c.b16 %v5285, %v5283
        %v5304 = vpack.c.b16 %v5286, %v5284
        %v5305 = vpack.c.b16 %v5289, %v5287
        %v5306 = vpack.c.b16 %v5290, %v5288
        %5323 = vmatprep.subr.bf16.mxu0 %v5292
        %5324 = vmatpush1.bf16.msra.mxu0 %v5291
        %5325 = vmatprep.subr.bf16.mxu0 %v5294
        %5326 = vmatpush1.bf16.msra.mxu0 %v5293
        %5327 = vmatprep.subr.bf16.mxu0 %v5296
        %5328 = vmatpush1.bf16.msra.mxu0 %v5295
        %5329 = vmatprep.subr.bf16.mxu0 %v5298
        %5330 = vmatpush1.bf16.msra.mxu0 %v5297
        %5331 = vmatprep.subr.bf16.mxu0 %v5300
        %5332 = vmatpush1.bf16.msra.mxu0 %v5299
        %5333 = vmatprep.subr.bf16.mxu0 %v5302
        %5334 = vmatpush1.bf16.msra.mxu0 %v5301
        %5335 = vmatprep.subr.bf16.mxu0 %v5304
        %5336 = vmatpush1.bf16.msra.mxu0 %v5303
        %5337 = vmatprep.subr.bf16.mxu0 %v5306
        %5338 = vmatpush1.bf16.msra.mxu0 %v5305
        %5339 = vmatprep.subr.bf16.mxu0 0
        %5340 = vmatpush1.bf16.msra.mxu0 0
        %5341 = vmatprep.subr.bf16.mxu0 0
        %5342 = vmatpush1.bf16.msra.mxu0 0
        %5343 = vmatprep.subr.bf16.mxu0 0
        %5344 = vmatpush1.bf16.msra.mxu0 0
        %5345 = vmatprep.subr.bf16.mxu0 0
        %5346 = vmatpush1.bf16.msra.mxu0 0
        %5347 = vmatprep.subr.bf16.mxu0 0
        %5348 = vmatpush1.bf16.msra.mxu0 0
        %5349 = vmatprep.subr.bf16.mxu0 0
        %5350 = vmatpush1.bf16.msra.mxu0 0
        %5351 = vmatprep.subr.bf16.mxu0 0
        %5352 = vmatpush1.bf16.msra.mxu0 0
        %5353 = vmatprep.subr.bf16.mxu0 0
        %5354 = vmatpush1.bf16.msra.mxu0 0
        %5355 = vmatprep.mubr.bf16.mxu0 0
        %5356 = vmatmul.mubr.bf16.gmra.mrb[0].mxu0 %v5207
        %v5357 = vpop.f32.mrb[0].mxu0
        %v5358 = vadd.f32 %v5236, %v5357
        %v5359 = vpop.f32.mrb[0].mxu0
        %v5360 = vadd.f32 %v5240, %v5359
        %v5361 = vpop.f32.mrb[0].mxu0
        %v5362 = vadd.f32 %v5236, %v5361
        %v5363 = vpop.f32.mrb[0].mxu0
        %v5364 = vadd.f32 %v5240, %v5363
        %5365 = vmatprep.mubr.bf16.mxu0 0
        %5366 = vmatmul.mubr.bf16.gmra.mrb[0].mxu0 %v5208
        %v5367 = vpop.f32.mrb[0].mxu0
        %v5368 = vadd.f32 %v5236, %v5367
        %v5369 = vpop.f32.mrb[0].mxu0
        %v5370 = vadd.f32 %v5240, %v5369
        %v5371 = vpop.f32.mrb[0].mxu0
        %v5372 = vadd.f32 %v5236, %v5371
        %v5373 = vpop.f32.mrb[0].mxu0
        %v5374 = vadd.f32 %v5240, %v5373
        %5375 = vmatprep.mubr.bf16.mxu0 0
        %5376 = vmatmul.mubr.bf16.gmra.mrb[0].mxu0 %v5209
        %v5377 = vpop.f32.mrb[0].mxu0
        %v5378 = vadd.f32 %v5236, %v5377
        %v5379 = vpop.f32.mrb[0].mxu0
        %v5380 = vadd.f32 %v5240, %v5379
        %v5381 = vpop.f32.mrb[0].mxu0
        %v5382 = vadd.f32 %v5236, %v5381
        %v5383 = vpop.f32.mrb[0].mxu0
        %v5384 = vadd.f32 %v5240, %v5383
        %5385 = vmatprep.mubr.bf16.mxu0 0
        %5386 = vmatmul.mubr.bf16.gmra.mrb[0].mxu0 %v5210
        %v5387 = vpop.f32.mrb[0].mxu0
        %v5388 = vadd.f32 %v5236, %v5387
        %v5389 = vpop.f32.mrb[0].mxu0
        %v5390 = vadd.f32 %v5240, %v5389
        %v5391 = vpop.f32.mrb[0].mxu0
        %v5392 = vadd.f32 %v5236, %v5391
        %v5393 = vpop.f32.mrb[0].mxu0
        %v5394 = vadd.f32 %v5240, %v5393
        %5395 = vmatprep.mubr.bf16.mxu0 0
        %5396 = vmatmul.mubr.bf16.gmra.mrb[0].mxu0 %v5211
        %v5397 = vpop.f32.mrb[0].mxu0
        %v5398 = vadd.f32 %v5236, %v5397
        %v5399 = vpop.f32.mrb[0].mxu0
        %v5400 = vadd.f32 %v5240, %v5399
        %v5401 = vpop.f32.mrb[0].mxu0
        %v5402 = vadd.f32 %v5236, %v5401
        %v5403 = vpop.f32.mrb[0].mxu0
        %v5404 = vadd.f32 %v5240, %v5403
        %5405 = vmatprep.mubr.bf16.mxu0 0
        %5406 = vmatmul.mubr.bf16.gmra.mrb[0].mxu0 %v5212
        %v5407 = vpop.f32.mrb[0].mxu0
        %v5408 = vadd.f32 %v5236, %v5407
        %v5409 = vpop.f32.mrb[0].mxu0
        %v5410 = vadd.f32 %v5240, %v5409
        %v5411 = vpop.f32.mrb[0].mxu0
        %v5412 = vadd.f32 %v5236, %v5411
        %v5413 = vpop.f32.mrb[0].mxu0
        %v5414 = vadd.f32 %v5240, %v5413
        %5415 = vmatprep.mubr.bf16.mxu0 0
        %5416 = vmatmul.mubr.bf16.gmra.mrb[0].mxu0 %v5213
        %v5417 = vpop.f32.mrb[0].mxu0
        %v5418 = vadd.f32 %v5236, %v5417
        %v5419 = vpop.f32.mrb[0].mxu0
        %v5420 = vadd.f32 %v5240, %v5419
        %v5421 = vpop.f32.mrb[0].mxu0
        %v5422 = vadd.f32 %v5236, %v5421
        %v5423 = vpop.f32.mrb[0].mxu0
        %v5424 = vadd.f32 %v5240, %v5423
        %5425 = vmatprep.mubr.bf16.mxu0 0
        %5426 = vmatmul.mubr.bf16.gmra.mrb[0].mxu0 %v5214
        %v5427 = vpop.f32.mrb[0].mxu0
        %v5428 = vadd.f32 %v5236, %v5427
        %v5429 = vpop.f32.mrb[0].mxu0
        %v5430 = vadd.f32 %v5240, %v5429
        %v5431 = vpop.f32.mrb[0].mxu0
        %v5432 = vadd.f32 %v5236, %v5431
        %v5433 = vpop.f32.mrb[0].mxu0
        %v5434 = vadd.f32 %v5240, %v5433
        %5435 = vdwg.mxu0
        %v5436 = vmax.f32 %v5358, 0.0
        %v5437 = vmax.f32 %v5360, 0.0
        %v5438 = vmax.f32 %v5362, 0.0
        %v5439 = vmax.f32 %v5364, 0.0
        %v5440 = vmax.f32 %v5368, 0.0
        %v5441 = vmax.f32 %v5370, 0.0
        %v5442 = vmax.f32 %v5372, 0.0
        %v5443 = vmax.f32 %v5374, 0.0
        %v5444 = vmax.f32 %v5378, 0.0
        %v5445 = vmax.f32 %v5380, 0.0
        %v5446 = vmax.f32 %v5382, 0.0
        %v5447 = vmax.f32 %v5384, 0.0
        %v5448 = vmax.f32 %v5388, 0.0
        %v5449 = vmax.f32 %v5390, 0.0
        %v5450 = vmax.f32 %v5392, 0.0
        %v5451 = vmax.f32 %v5394, 0.0
        %v5452 = vmax.f32 %v5398, 0.0
        %v5453 = vmax.f32 %v5400, 0.0
        %v5454 = vmax.f32 %v5402, 0.0
        %v5455 = vmax.f32 %v5404, 0.0
        %v5456 = vmax.f32 %v5408, 0.0
        %v5457 = vmax.f32 %v5410, 0.0
        %v5458 = vmax.f32 %v5412, 0.0
        %v5459 = vmax.f32 %v5414, 0.0
        %v5460 = vmax.f32 %v5418, 0.0
        %v5461 = vmax.f32 %v5420, 0.0
        %v5462 = vmax.f32 %v5422, 0.0
        %v5463 = vmax.f32 %v5424, 0.0
        %v5464 = vmax.f32 %v5428, 0.0
        %v5465 = vmax.f32 %v5430, 0.0
        %v5466 = vmax.f32 %v5432, 0.0
        %v5467 = vmax.f32 %v5434, 0.0
        %v5468 = vpack.c.bf16 %v5438, %v5436
        %v5469 = vpack.c.bf16 %v5439, %v5437
        %v5470 = vpack.c.bf16 %v5442, %v5440
        %v5471 = vpack.c.bf16 %v5443, %v5441
        %v5472 = vpack.c.bf16 %v5446, %v5444
        %v5473 = vpack.c.bf16 %v5447, %v5445
        %v5474 = vpack.c.bf16 %v5450, %v5448
        %v5475 = vpack.c.bf16 %v5451, %v5449
        %v5476 = vpack.c.bf16 %v5454, %v5452
        %v5477 = vpack.c.bf16 %v5455, %v5453
        %v5478 = vpack.c.bf16 %v5458, %v5456
        %v5479 = vpack.c.bf16 %v5459, %v5457
        %v5480 = vpack.c.bf16 %v5462, %v5460
        %v5481 = vpack.c.bf16 %v5463, %v5461
        %v5482 = vpack.c.bf16 %v5466, %v5464
        %v5483 = vpack.c.bf16 %v5467, %v5465
        %v5484 = vld [vmem:[%s13] sm:$0xf]
        %v5485 = vld [vmem:[%s13 + $0x4] sm:$0xf]
        %v5486 = vld [vmem:[%s13 + $0x8] sm:$0xf]
        %v5487 = vld [vmem:[%s13 + $0xc] sm:$0xf]
        %v5488 = vld [vmem:[%s13 + $0x10] sm:$0xf]
        %v5489 = vld [vmem:[%s13 + $0x14] sm:$0xf]
        %v5490 = vld [vmem:[%s13 + $0x18] sm:$0xf]
        %v5491 = vld [vmem:[%s13 + $0x1c] sm:$0xf]
        %v5492 = vld [vmem:[%s13 + $0x20] sm:$0xf]
        %v5493 = vld [vmem:[%s13 + $0x24] sm:$0xf]
        %v5494 = vld [vmem:[%s13 + $0x28] sm:$0xf]
        %v5495 = vld [vmem:[%s13 + $0x2c] sm:$0xf]
        %v5496 = vld [vmem:[%s13 + $0x30] sm:$0xf]
        %v5497 = vld [vmem:[%s13 + $0x34] sm:$0xf]
        %v5498 = vld [vmem:[%s13 + $0x38] sm:$0xf]
        %v5499 = vld [vmem:[%s13 + $0x3c] sm:$0xf]
        %v5500 = vld [vmem:[%s13 + $0x40] sm:$0xf]
        %v5501 = vld [vmem:[%s13 + $0x44] sm:$0xf]
        %v5502 = vld [vmem:[%s13 + $0x48] sm:$0xf]
        %v5503 = vld [vmem:[%s13 + $0x4c] sm:$0xf]
        %v5504 = vld [vmem:[%s13 + $0x50] sm:$0xf]
        %v5505 = vld [vmem:[%s13 + $0x54] sm:$0xf]
        %v5506 = vld [vmem:[%s13 + $0x58] sm:$0xf]
        %v5507 = vld [vmem:[%s13 + $0x5c] sm:$0xf]
        %v5508 = vld [vmem:[%s13 + $0x60] sm:$0xf]
        %v5509 = vld [vmem:[%s13 + $0x64] sm:$0xf]
        %v5510 = vld [vmem:[%s13 + $0x68] sm:$0xf]
        %v5511 = vld [vmem:[%s13 + $0x6c] sm:$0xf]
        %v5512 = vld [vmem:[%s13 + $0x70] sm:$0xf]
        %v5513 = vld [vmem:[%s13 + $0x74] sm:$0xf]
        %v5514 = vld [vmem:[%s13 + $0x78] sm:$0xf]
        %v5515 = vld [vmem:[%s13 + $0x7c] sm:$0xf]
        %v5516 = vld [vmem:[%s14] sm:$0x1]
        %v5518 = vlaneseq
        %v5519 = vshrl.u32 %v5518, 7
        %v5520 = vsub.s32 0, %v5519
        %v5521 = vrot.slane %v5516, %v5520
        %v5555 = vunpack.c.l.b16 %v5484
        %v5556 = vunpack.c.l.b16 %v5485
        %v5557 = vunpack.c.l.b16 %v5486
        %v5558 = vunpack.c.l.b16 %v5487
        %v5559 = vunpack.c.l.b16 %v5488
        %v5560 = vunpack.c.l.b16 %v5489
        %v5561 = vunpack.c.l.b16 %v5490
        %v5562 = vunpack.c.l.b16 %v5491
        %v5563 = vunpack.c.l.b16 %v5492
        %v5564 = vunpack.c.l.b16 %v5493
        %v5565 = vunpack.c.l.b16 %v5494
        %v5566 = vunpack.c.l.b16 %v5495
        %v5567 = vunpack.c.l.b16 %v5496
        %v5568 = vunpack.c.l.b16 %v5497
        %v5569 = vunpack.c.l.b16 %v5498
        %v5570 = vunpack.c.l.b16 %v5499
        %v5571 = vunpack.c.l.b16 %v5500
        %v5572 = vunpack.c.l.b16 %v5501
        %v5573 = vunpack.c.l.b16 %v5502
        %v5574 = vunpack.c.l.b16 %v5503
        %v5575 = vunpack.c.l.b16 %v5504
        %v5576 = vunpack.c.l.b16 %v5505
        %v5577 = vunpack.c.l.b16 %v5506
        %v5578 = vunpack.c.l.b16 %v5507
        %v5579 = vunpack.c.l.b16 %v5508
        %v5580 = vunpack.c.l.b16 %v5509
        %v5581 = vunpack.c.l.b16 %v5510
        %v5582 = vunpack.c.l.b16 %v5511
        %v5583 = vunpack.c.l.b16 %v5512
        %v5584 = vunpack.c.l.b16 %v5513
        %v5585 = vunpack.c.l.b16 %v5514
        %v5586 = vunpack.c.l.b16 %v5515
        %v5587 = vpack.c.b16 %v5556, %v5555
        %v5588 = vpack.c.b16 %v5558, %v5557
        %v5589 = vpack.c.b16 %v5560, %v5559
        %v5590 = vpack.c.b16 %v5562, %v5561
        %v5591 = vpack.c.b16 %v5564, %v5563
        %v5592 = vpack.c.b16 %v5566, %v5565
        %v5593 = vpack.c.b16 %v5568, %v5567
        %v5594 = vpack.c.b16 %v5570, %v5569
        %v5595 = vpack.c.b16 %v5572, %v5571
        %v5596 = vpack.c.b16 %v5574, %v5573
        %v5597 = vpack.c.b16 %v5576, %v5575
        %v5598 = vpack.c.b16 %v5578, %v5577
        %v5599 = vpack.c.b16 %v5580, %v5579
        %v5600 = vpack.c.b16 %v5582, %v5581
        %v5601 = vpack.c.b16 %v5584, %v5583
        %v5602 = vpack.c.b16 %v5586, %v5585
        %5619 = vmatprep.subr.bf16.mxu0 0
        %5620 = vmatpush1.bf16.msra.mxu0 %v5587
        %5621 = vmatprep.subr.bf16.mxu0 0
        %5622 = vmatpush1.bf16.msra.mxu0 %v5588
        %5623 = vmatprep.subr.bf16.mxu0 0
        %5624 = vmatpush1.bf16.msra.mxu0 %v5589
        %5625 = vmatprep.subr.bf16.mxu0 0
        %5626 = vmatpush1.bf16.msra.mxu0 %v5590
        %5627 = vmatprep.subr.bf16.mxu0 0
        %5628 = vmatpush1.bf16.msra.mxu0 %v5591
        %5629 = vmatprep.subr.bf16.mxu0 0
        %5630 = vmatpush1.bf16.msra.mxu0 %v5592
        %5631 = vmatprep.subr.bf16.mxu0 0
        %5632 = vmatpush1.bf16.msra.mxu0 %v5593
        %5633 = vmatprep.subr.bf16.mxu0 0
        %5634 = vmatpush1.bf16.msra.mxu0 %v5594
        %5635 = vmatprep.subr.bf16.mxu0 0
        %5636 = vmatpush1.bf16.msra.mxu0 %v5595
        %5637 = vmatprep.subr.bf16.mxu0 0
        %5638 = vmatpush1.bf16.msra.mxu0 %v5596
        %5639 = vmatprep.subr.bf16.mxu0 0
        %5640 = vmatpush1.bf16.msra.mxu0 %v5597
        %5641 = vmatprep.subr.bf16.mxu0 0
        %5642 = vmatpush1.bf16.msra.mxu0 %v5598
        %5643 = vmatprep.subr.bf16.mxu0 0
        %5644 = vmatpush1.bf16.msra.mxu0 %v5599
        %5645 = vmatprep.subr.bf16.mxu0 0
        %5646 = vmatpush1.bf16.msra.mxu0 %v5600
        %5647 = vmatprep.subr.bf16.mxu0 0
        %5648 = vmatpush1.bf16.msra.mxu0 %v5601
        %5649 = vmatprep.subr.bf16.mxu0 0
        %5650 = vmatpush1.bf16.msra.mxu0 %v5602
        %5651 = vmatprep.mubr.bf16.mxu0 %v5469
        %5652 = vmatmul.mubr.bf16.gmra.mrb[0].mxu0 %v5468
        %v5653 = vpop.f32.mrb[0].mxu0
        %v5654 = vadd.f32 %v5521, %v5653
        %v5655 = vpop.f32.mrb[0].mxu0
        %v5656 = vpop.f32.mrb[0].mxu0
        %v5657 = vadd.f32 %v5521, %v5656
        %v5658 = vpop.f32.mrb[0].mxu0
        %5659 = vmatprep.mubr.bf16.mxu0 %v5471
        %5660 = vmatmul.mubr.bf16.gmra.mrb[0].mxu0 %v5470
        %v5661 = vpop.f32.mrb[0].mxu0
        %v5662 = vadd.f32 %v5521, %v5661
        %v5663 = vpop.f32.mrb[0].mxu0
        %v5664 = vpop.f32.mrb[0].mxu0
        %v5665 = vadd.f32 %v5521, %v5664
        %v5666 = vpop.f32.mrb[0].mxu0
        %5667 = vmatprep.mubr.bf16.mxu0 %v5473
        %5668 = vmatmul.mubr.bf16.gmra.mrb[0].mxu0 %v5472
        %v5669 = vpop.f32.mrb[0].mxu0
        %v5670 = vadd.f32 %v5521, %v5669
        %v5671 = vpop.f32.mrb[0].mxu0
        %v5672 = vpop.f32.mrb[0].mxu0
        %v5673 = vadd.f32 %v5521, %v5672
        %v5674 = vpop.f32.mrb[0].mxu0
        %5675 = vmatprep.mubr.bf16.mxu0 %v5475
        %5676 = vmatmul.mubr.bf16.gmra.mrb[0].mxu0 %v5474
        %v5677 = vpop.f32.mrb[0].mxu0
        %v5678 = vadd.f32 %v5521, %v5677
        %v5679 = vpop.f32.mrb[0].mxu0
        %v5680 = vpop.f32.mrb[0].mxu0
        %v5681 = vadd.f32 %v5521, %v5680
        %v5682 = vpop.f32.mrb[0].mxu0
        %5683 = vmatprep.mubr.bf16.mxu0 %v5477
        %5684 = vmatmul.mubr.bf16.gmra.mrb[0].mxu0 %v5476
        %v5685 = vpop.f32.mrb[0].mxu0
        %v5686 = vadd.f32 %v5521, %v5685
        %v5687 = vpop.f32.mrb[0].mxu0
        %v5688 = vpop.f32.mrb[0].mxu0
        %v5689 = vadd.f32 %v5521, %v5688
        %v5690 = vpop.f32.mrb[0].mxu0
        %5691 = vmatprep.mubr.bf16.mxu0 %v5479
        %5692 = vmatmul.mubr.bf16.gmra.mrb[0].mxu0 %v5478
        %v5693 = vpop.f32.mrb[0].mxu0
        %v5694 = vadd.f32 %v5521, %v5693
        %v5695 = vpop.f32.mrb[0].mxu0
        %v5696 = vpop.f32.mrb[0].mxu0
        %v5697 = vadd.f32 %v5521, %v5696
        %v5698 = vpop.f32.mrb[0].mxu0
        %5699 = vmatprep.mubr.bf16.mxu0 %v5481
        %5700 = vmatmul.mubr.bf16.gmra.mrb[0].mxu0 %v5480
        %v5701 = vpop.f32.mrb[0].mxu0
        %v5702 = vadd.f32 %v5521, %v5701
        %v5703 = vpop.f32.mrb[0].mxu0
        %v5704 = vpop.f32.mrb[0].mxu0
        %v5705 = vadd.f32 %v5521, %v5704
        %v5706 = vpop.f32.mrb[0].mxu0
        %5707 = vmatprep.mubr.bf16.mxu0 %v5483
        %5708 = vmatmul.mubr.bf16.gmra.mrb[0].mxu0 %v5482
        %v5709 = vpop.f32.mrb[0].mxu0
        %v5710 = vadd.f32 %v5521, %v5709
        %v5711 = vpop.f32.mrb[0].mxu0
        %v5712 = vpop.f32.mrb[0].mxu0
        %v5713 = vadd.f32 %v5521, %v5712
        %v5714 = vpop.f32.mrb[0].mxu0
        %5715 = vdwg.mxu0
        %v5716 = vadd.f32 %v5191, %v5654
        %v5717 = vadd.f32 %v5192, %v5657
        %v5718 = vadd.f32 %v5193, %v5662
        %v5719 = vadd.f32 %v5194, %v5665
        %v5720 = vadd.f32 %v5195, %v5670
        %v5721 = vadd.f32 %v5196, %v5673
        %v5722 = vadd.f32 %v5197, %v5678
        %v5723 = vadd.f32 %v5198, %v5681
        %v5724 = vadd.f32 %v5199, %v5686
        %v5725 = vadd.f32 %v5200, %v5689
        %v5726 = vadd.f32 %v5201, %v5694
        %v5727 = vadd.f32 %v5202, %v5697
        %v5728 = vadd.f32 %v5203, %v5702
        %v5729 = vadd.f32 %v5204, %v5705
        %v5730 = vadd.f32 %v5205, %v5710
        %v5731 = vadd.f32 %v5206, %v5713
        %v5732 = vld [vmem:[%s15] sm:$0x1]
        %v5733 = vld [vmem:[%s16] sm:$0x1]
        %5734 = vadd.xlane.f32.xlu0 %v5716
        %v5735 = vpop.xlane.xlu0 %5734
        %5736 = vadd.xlane.f32.xlu0 %v5717
        %v5737 = vpop.xlane.xlu0 %5736
        %5738 = vadd.xlane.f32.xlu0 %v5718
        %v5739 = vpop.xlane.xlu0 %5738
        %5740 = vadd.xlane.f32.xlu0 %v5719
        %v5741 = vpop.xlane.xlu0 %5740
        %5742 = vadd.xlane.f32.xlu0 %v5720
        %v5743 = vpop.xlane.xlu0 %5742
        %5744 = vadd.xlane.f32.xlu0 %v5721
        %v5745 = vpop.xlane.xlu0 %5744
        %5746 = vadd.xlane.f32.xlu0 %v5722
        %v5747 = vpop.xlane.xlu0 %5746
        %5748 = vadd.xlane.f32.xlu0 %v5723
        %v5749 = vpop.xlane.xlu0 %5748
        %5750 = vadd.xlane.f32.xlu0 %v5724
        %v5751 = vpop.xlane.xlu0 %5750
        %5752 = vadd.xlane.f32.xlu0 %v5725
        %v5753 = vpop.xlane.xlu0 %5752
        %5754 = vadd.xlane.f32.xlu0 %v5726
        %v5755 = vpop.xlane.xlu0 %5754
        %5756 = vadd.xlane.f32.xlu0 %v5727
        %v5757 = vpop.xlane.xlu0 %5756
        %5758 = vadd.xlane.f32.xlu0 %v5728
        %v5759 = vpop.xlane.xlu0 %5758
        %5760 = vadd.xlane.f32.xlu0 %v5729
        %v5761 = vpop.xlane.xlu0 %5760
        %5762 = vadd.xlane.f32.xlu0 %v5730
        %v5763 = vpop.xlane.xlu0 %5762
        %5764 = vadd.xlane.f32.xlu0 %v5731
        %v5765 = vpop.xlane.xlu0 %5764
        %v5766 = vmul.f32 %v5735, %v5018
        %v5767 = vmul.f32 %v5737, %v5018
        %v5768 = vmul.f32 %v5739, %v5018
        %v5769 = vmul.f32 %v5741, %v5018
        %v5770 = vmul.f32 %v5743, %v5018
        %v5771 = vmul.f32 %v5745, %v5018
        %v5772 = vmul.f32 %v5747, %v5018
        %v5773 = vmul.f32 %v5749, %v5018
        %v5774 = vmul.f32 %v5751, %v5018
        %v5775 = vmul.f32 %v5753, %v5018
        %v5776 = vmul.f32 %v5755, %v5018
        %v5777 = vmul.f32 %v5757, %v5018
        %v5778 = vmul.f32 %v5759, %v5018
        %v5779 = vmul.f32 %v5761, %v5018
        %v5780 = vmul.f32 %v5763, %v5018
        %v5781 = vmul.f32 %v5765, %v5018
        %v5782 = vsub.f32 %v5716, %v5766
        %v5783 = vsub.f32 %v5717, %v5767
        %v5784 = vsub.f32 %v5718, %v5768
        %v5785 = vsub.f32 %v5719, %v5769
        %v5786 = vsub.f32 %v5720, %v5770
        %v5787 = vsub.f32 %v5721, %v5771
        %v5788 = vsub.f32 %v5722, %v5772
        %v5789 = vsub.f32 %v5723, %v5773
        %v5790 = vsub.f32 %v5724, %v5774
        %v5791 = vsub.f32 %v5725, %v5775
        %v5792 = vsub.f32 %v5726, %v5776
        %v5793 = vsub.f32 %v5727, %v5777
        %v5794 = vsub.f32 %v5728, %v5778
        %v5795 = vsub.f32 %v5729, %v5779
        %v5796 = vsub.f32 %v5730, %v5780
        %v5797 = vsub.f32 %v5731, %v5781
        %v5798 = vmul.f32 %v5782, %v5782
        %v5799 = vmul.f32 %v5783, %v5783
        %v5800 = vmul.f32 %v5784, %v5784
        %v5801 = vmul.f32 %v5785, %v5785
        %v5802 = vmul.f32 %v5786, %v5786
        %v5803 = vmul.f32 %v5787, %v5787
        %v5804 = vmul.f32 %v5788, %v5788
        %v5805 = vmul.f32 %v5789, %v5789
        %v5806 = vmul.f32 %v5790, %v5790
        %v5807 = vmul.f32 %v5791, %v5791
        %v5808 = vmul.f32 %v5792, %v5792
        %v5809 = vmul.f32 %v5793, %v5793
        %v5810 = vmul.f32 %v5794, %v5794
        %v5811 = vmul.f32 %v5795, %v5795
        %v5812 = vmul.f32 %v5796, %v5796
        %v5813 = vmul.f32 %v5797, %v5797
        %5814 = vadd.xlane.f32.xlu0 %v5798
        %v5815 = vpop.xlane.xlu0 %5814
        %5816 = vadd.xlane.f32.xlu0 %v5799
        %v5817 = vpop.xlane.xlu0 %5816
        %5818 = vadd.xlane.f32.xlu0 %v5800
        %v5819 = vpop.xlane.xlu0 %5818
        %5820 = vadd.xlane.f32.xlu0 %v5801
        %v5821 = vpop.xlane.xlu0 %5820
        %5822 = vadd.xlane.f32.xlu0 %v5802
        %v5823 = vpop.xlane.xlu0 %5822
        %5824 = vadd.xlane.f32.xlu0 %v5803
        %v5825 = vpop.xlane.xlu0 %5824
        %5826 = vadd.xlane.f32.xlu0 %v5804
        %v5827 = vpop.xlane.xlu0 %5826
        %5828 = vadd.xlane.f32.xlu0 %v5805
        %v5829 = vpop.xlane.xlu0 %5828
        %5830 = vadd.xlane.f32.xlu0 %v5806
        %v5831 = vpop.xlane.xlu0 %5830
        %5832 = vadd.xlane.f32.xlu0 %v5807
        %v5833 = vpop.xlane.xlu0 %5832
        %5834 = vadd.xlane.f32.xlu0 %v5808
        %v5835 = vpop.xlane.xlu0 %5834
        %5836 = vadd.xlane.f32.xlu0 %v5809
        %v5837 = vpop.xlane.xlu0 %5836
        %5838 = vadd.xlane.f32.xlu0 %v5810
        %v5839 = vpop.xlane.xlu0 %5838
        %5840 = vadd.xlane.f32.xlu0 %v5811
        %v5841 = vpop.xlane.xlu0 %5840
        %5842 = vadd.xlane.f32.xlu0 %v5812
        %v5843 = vpop.xlane.xlu0 %5842
        %5844 = vadd.xlane.f32.xlu0 %v5813
        %v5845 = vpop.xlane.xlu0 %5844
        %v5846 = vmul.f32 %v5815, %v5018
        %v5847 = vmul.f32 %v5817, %v5018
        %v5848 = vmul.f32 %v5819, %v5018
        %v5849 = vmul.f32 %v5821, %v5018
        %v5850 = vmul.f32 %v5823, %v5018
        %v5851 = vmul.f32 %v5825, %v5018
        %v5852 = vmul.f32 %v5827, %v5018
        %v5853 = vmul.f32 %v5829, %v5018
        %v5854 = vmul.f32 %v5831, %v5018
        %v5855 = vmul.f32 %v5833, %v5018
        %v5856 = vmul.f32 %v5835, %v5018
        %v5857 = vmul.f32 %v5837, %v5018
        %v5858 = vmul.f32 %v5839, %v5018
        %v5859 = vmul.f32 %v5841, %v5018
        %v5860 = vmul.f32 %v5843, %v5018
        %v5861 = vmul.f32 %v5845, %v5018
        %v5862 = vadd.f32 %v5846, 1e-05
        %v5863 = vadd.f32 %v5847, 1e-05
        %v5864 = vadd.f32 %v5848, 1e-05
        %v5865 = vadd.f32 %v5849, 1e-05
        %v5866 = vadd.f32 %v5850, 1e-05
        %v5867 = vadd.f32 %v5851, 1e-05
        %v5868 = vadd.f32 %v5852, 1e-05
        %v5869 = vadd.f32 %v5853, 1e-05
        %v5870 = vadd.f32 %v5854, 1e-05
        %v5871 = vadd.f32 %v5855, 1e-05
        %v5872 = vadd.f32 %v5856, 1e-05
        %v5873 = vadd.f32 %v5857, 1e-05
        %v5874 = vadd.f32 %v5858, 1e-05
        %v5875 = vadd.f32 %v5859, 1e-05
        %v5876 = vadd.f32 %v5860, 1e-05
        %v5877 = vadd.f32 %v5861, 1e-05
        %v5878 = vrsqrt.pop %v5862
        %v5879 = vrsqrt.pop %v5863
        %v5880 = vrsqrt.pop %v5864
        %v5881 = vrsqrt.pop %v5865
        %v5882 = vrsqrt.pop %v5866
        %v5883 = vrsqrt.pop %v5867
        %v5884 = vrsqrt.pop %v5868
        %v5885 = vrsqrt.pop %v5869
        %v5886 = vrsqrt.pop %v5870
        %v5887 = vrsqrt.pop %v5871
        %v5888 = vrsqrt.pop %v5872
        %v5889 = vrsqrt.pop %v5873
        %v5890 = vrsqrt.pop %v5874
        %v5891 = vrsqrt.pop %v5875
        %v5892 = vrsqrt.pop %v5876
        %v5893 = vrsqrt.pop %v5877
        %v5894 = vmul.f32 %v5782, %v5878
        %v5895 = vmul.f32 %v5783, %v5879
        %v5896 = vmul.f32 %v5784, %v5880
        %v5897 = vmul.f32 %v5785, %v5881
        %v5898 = vmul.f32 %v5786, %v5882
        %v5899 = vmul.f32 %v5787, %v5883
        %v5900 = vmul.f32 %v5788, %v5884
        %v5901 = vmul.f32 %v5789, %v5885
        %v5902 = vmul.f32 %v5790, %v5886
        %v5903 = vmul.f32 %v5791, %v5887
        %v5904 = vmul.f32 %v5792, %v5888
        %v5905 = vmul.f32 %v5793, %v5889
        %v5906 = vmul.f32 %v5794, %v5890
        %v5907 = vmul.f32 %v5795, %v5891
        %v5908 = vmul.f32 %v5796, %v5892
        %v5909 = vmul.f32 %v5797, %v5893
        %v5911 = vlaneseq
        %v5912 = vshrl.u32 %v5911, 7
        %v5913 = vsub.s32 0, %v5912
        %v5914 = vrot.slane %v5732, %v5913
        %v5916 = vmul.f32 %v5894, %v5914
        %v5917 = vmul.f32 %v5895, %v5914
        %v5918 = vmul.f32 %v5896, %v5914
        %v5919 = vmul.f32 %v5897, %v5914
        %v5920 = vmul.f32 %v5898, %v5914
        %v5921 = vmul.f32 %v5899, %v5914
        %v5922 = vmul.f32 %v5900, %v5914
        %v5923 = vmul.f32 %v5901, %v5914
        %v5924 = vmul.f32 %v5902, %v5914
        %v5925 = vmul.f32 %v5903, %v5914
        %v5926 = vmul.f32 %v5904, %v5914
        %v5927 = vmul.f32 %v5905, %v5914
        %v5928 = vmul.f32 %v5906, %v5914
        %v5929 = vmul.f32 %v5907, %v5914
        %v5930 = vmul.f32 %v5908, %v5914
        %v5931 = vmul.f32 %v5909, %v5914
        %v5933 = vlaneseq
        %v5934 = vshrl.u32 %v5933, 7
        %v5935 = vsub.s32 0, %v5934
        %v5936 = vrot.slane %v5733, %v5935
        %v5938 = vadd.f32 %v5916, %v5936
        %v5939 = vadd.f32 %v5917, %v5936
        %v5940 = vadd.f32 %v5918, %v5936
        %v5941 = vadd.f32 %v5919, %v5936
        %v5942 = vadd.f32 %v5920, %v5936
        %v5943 = vadd.f32 %v5921, %v5936
        %v5944 = vadd.f32 %v5922, %v5936
        %v5945 = vadd.f32 %v5923, %v5936
        %v5946 = vadd.f32 %v5924, %v5936
        %v5947 = vadd.f32 %v5925, %v5936
        %v5948 = vadd.f32 %v5926, %v5936
        %v5949 = vadd.f32 %v5927, %v5936
        %v5950 = vadd.f32 %v5928, %v5936
        %v5951 = vadd.f32 %v5929, %v5936
        %v5952 = vadd.f32 %v5930, %v5936
        %v5953 = vadd.f32 %v5931, %v5936
        %5954 = vst [vmem:[%s541] sm:$0xff] %v5938
        %5955 = vst [vmem:[%s541 + $0x8] sm:$0xff] %v5939
        %5956 = vst [vmem:[%s541 + $0x10] sm:$0xff] %v5940
        %5957 = vst [vmem:[%s541 + $0x18] sm:$0xff] %v5941
        %5958 = vst [vmem:[%s541 + $0x20] sm:$0xff] %v5942
        %5959 = vst [vmem:[%s541 + $0x28] sm:$0xff] %v5943
        %5960 = vst [vmem:[%s541 + $0x30] sm:$0xff] %v5944
        %5961 = vst [vmem:[%s541 + $0x38] sm:$0xff] %v5945
        %5962 = vst [vmem:[%s541 + $0x40] sm:$0xff] %v5946
        %5963 = vst [vmem:[%s541 + $0x48] sm:$0xff] %v5947
        %5964 = vst [vmem:[%s541 + $0x50] sm:$0xff] %v5948
        %5965 = vst [vmem:[%s541 + $0x58] sm:$0xff] %v5949
        %5966 = vst [vmem:[%s541 + $0x60] sm:$0xff] %v5950
        %5967 = vst [vmem:[%s541 + $0x68] sm:$0xff] %v5951
        %5968 = vst [vmem:[%s541 + $0x70] sm:$0xff] %v5952
        %5969 = vst [vmem:[%s541 + $0x78] sm:$0xff] %v5953
        %s5970 = sand.u32 %s401, 1
        %s5971 = scalar_lea.sflag [#allocation3], %s5970
        %s5972 = sand.u32 %s401, 1
        %s5973 = smul.addr %s5972, 128
        %s5974 = scalar_lea.vmem [#allocation2], %s5973
        // Predicated region
        $region89: #{tpu_custom_call.1} parent=87 // pred_check
          %p5975 = pneg %p411
        $region90: #{tpu_custom_call.1} parent=87 // pred_check_branch
          %5977 = sbr.rel (%p5975) target = $region92
        $region91: #{tpu_custom_call.1} parent=87 // pred_region
          %s5979 = ssub.s32 2048, 2048
          %5980 = vsyncadd %s5971, %s5979
          %s5981 = smul.addr %s31, 16
          %s5982 = smul.addr %s5981, 128
          %s5983 = scalar_lea.hbm %s17, %s5982
          %s5984 = sshll.u32 %s5974, 4
          %s5985 = int_to_ptr.vmem [resolvable:$true] %s5984
          %5990 = dma.vmem_to_hbm [thread:$0]  %s5985, 2048, %s5983, %s5971, 128, 128, 8
        $region92: #{tpu_custom_call.1} parent=87 // pred_fallthru
          _
      $region88: #{tpu_custom_call.1} parent=5 // pred_fallthru
        _
      %p5991 = scmp.le.s32.totalorder 2, %s26
      // Predicated region
      $region93: #{tpu_custom_call.1} parent=5 // pred_check
        %p5992 = pneg %p5991
      $region94: #{tpu_custom_call.1} parent=5 // pred_check_branch
        %5994 = sbr.rel (%p5992) target = $region96
      $region95: #{tpu_custom_call.1} parent=5 // pred_region
        %s5995 = ssub.s32 %s26, 2
        // Predicated region
        $region97: #{tpu_custom_call.1} parent=95 // pred_check
          %p5996 = pneg %p417
        $region98: #{tpu_custom_call.1} parent=95 // pred_check_branch
          %5998 = sbr.rel (%p5996) target = $region100
        $region99: #{tpu_custom_call.1} parent=95 // pred_region
          %s5999 = sand.u32 %s402, 1
          %s6000 = scalar_lea.sflag [#allocation3], %s5999
          %s6001 = sand.u32 %s402, 1
          %s6002 = smul.addr %s6001, 128
          %s6003 = scalar_lea.vmem [#allocation2], %s6002
          %6004 = dma.done %s6000, 2048
        $region100: #{tpu_custom_call.1} parent=95 // pred_fallthru
          _
      $region96: #{tpu_custom_call.1} parent=5 // pred_fallthru
        _
    $region6: #{tpu_custom_call.1} parent=1 // loop_footer
      %s30 = sadd.s32 1, %s26
    $region7: #{tpu_custom_call.1} parent=1 // loop_footer_branch
      %25 = sbr.rel target = $region3
    $region8: #{tpu_custom_call.1} parent=1 // loop_exit
      _
    %6005 = vsyncpa [#allocation3], 1
    %s6006 = scalar_lea.sflag [#allocation3], 1
    %6007 = vsyncpa %s6006, 1

</llo_original>
